<compile_context>
chip_gen: v7x
topology: tpu7x:2x2x1
jax: 0.10.0
libtpu: 0.0.40
codegen_flags: <defaults>
</compile_context>

<pallas_src>
import functools

import jax
import jax.numpy as jnp
import numpy as np
from jax.experimental import pallas as pl
from jax.experimental.pallas import tpu as pltpu


def _sector_splits(D, K):
    """Replicates EdgePart.sector(): list of (offset, size) contiguous chunks."""
    rr = D % K
    sizes = [D // K + (1 if i < rr else 0) for i in range(K)]
    splits, off = [], 0
    for s in sizes:
        splits.append((off, s))
        off += s
    return tuple(splits)


def _pick_row_tile(N):
    """Largest row tile that divides N, preferring >=2 grid steps for pipelining."""
    for tm in (512, 256, 128):
        if N % tm == 0 and N // tm >= 2:
            return tm
    for tm in (512, 256, 128):
        if N % tm == 0:
            return tm
    return N


def _edgepart_kernel(phi_row_ref, phi_all_ref, adj_ref, out_ref, *,
                     splits, inv_tau, inv_tau_row):
    phi_r = phi_row_ref[...]                       # (TM, D) rows of this tile
    phi_c = phi_all_ref[...]                       # (N, D)  all columns (resident)
    edge = adj_ref[...].astype(jnp.float32)        # (TM, N) 0/1 pattern (from int8)

    # Per-community Gram scores on contiguous embedding slices (sector split),
    # already scaled by 1/tau.  MXU matmuls with only D/K contraction dims each.
    s = [
        jax.lax.dot_general(
            phi_r[:, off:off + dk], phi_c[:, off:off + dk],
            (((1,), (1,)), ((), ())),
            preferred_element_type=jnp.float32) * inv_tau
        for off, dk in splits
    ]

    # Softmax over the community axis: running max / running sum over K planes
    # (elementwise across planes -> cheap VPU work, no cross-lane reduce).
    m = s[0]
    for sk in s[1:]:
        m = jnp.maximum(m, sk)
    e = [jnp.exp(sk - m) for sk in s]
    tot = e[0]
    for ek in e[1:]:
        tot = tot + ek
    inv_tot = pl.reciprocal(tot, approx=True)      # EUP, one per (r, c)

    # Row-wise softmax over edges.  w = community weight is in [0, 1] and
    # inv_tau_row = 2, so exp(w * 2) <= e^2: no max subtraction needed.
    for k, ek in enumerate(e):
        w = ek * inv_tot                                         # (TM, N)
        num = jnp.exp(w * inv_tau_row) * edge                    # zero off-edge
        denom = jnp.sum(num, axis=-1, keepdims=True)             # (TM, 1)
        inv_d = pl.reciprocal(jnp.maximum(denom, 1e-30), approx=True)
        out_ref[k, :, :] = (num * inv_d).astype(out_ref.dtype)   # empty rows -> 0


def edgepart_pallas(phi, adj_mask, K, tau=1.0, tau_row=0.5):
    phi = phi.astype(jnp.float32)
    N, D = phi.shape
    adj_i8 = (adj_mask > 0).astype(jnp.int8)       # 0/1 pattern, 1 byte per entry

    TM = _pick_row_tile(N)
    splits = _sector_splits(D, K)
    kernel = functools.partial(
        _edgepart_kernel, splits=splits,
        inv_tau=float(1.0 / tau), inv_tau_row=float(1.0 / tau_row))

    return pl.pallas_call(
        kernel,
        out_shape=jax.ShapeDtypeStruct((K, N, N), jnp.float32),
        grid=(N // TM,),
        in_specs=[
            pl.BlockSpec((TM, D), lambda i: (i, 0)),   # phi rows of this tile
            pl.BlockSpec((N, D), lambda i: (0, 0)),    # full phi, stays resident
            pl.BlockSpec((TM, N), lambda i: (i, 0)),   # adjacency row tile (int8)
        ],
        out_specs=pl.BlockSpec((K, TM, N), lambda i: (0, i, 0)),
        compiler_params=pltpu.CompilerParams(
            dimension_semantics=("parallel",),         # row tiles are independent
            vmem_limit_bytes=32 * 1024 * 1024),
    )(phi, phi, adj_i8)


def edgepart_ref(phi, adj_mask, K, tau=1.0, tau_row=0.5):
    """Pure numpy reference mirroring the sparse PyTorch path (edge-list based)."""
    phi = np.asarray(phi, dtype=np.float64)
    adj = np.asarray(adj_mask) > 0
    N, D = phi.shape
    rr = D % K
    sizes = [D // K + (1 if i < rr else 0) for i in range(K)]
    offs = np.cumsum([0] + sizes)
    rows, cols = np.nonzero(adj)
    eg = np.stack(
        [np.sum(phi[rows, offs[k]:offs[k + 1]] * phi[cols, offs[k]:offs[k + 1]], axis=-1)
         for k in range(K)], axis=0)                       # (K, E)
    z = eg / tau
    z = z - z.max(0, keepdims=True)
    e = np.exp(z)
    w = e / e.sum(0, keepdims=True)                        # (K, E)
    out = np.zeros((K, N, N))
    for k in range(K):
        dense = np.full((N, N), -np.inf)
        dense[rows, cols] = w[k] / tau_row
        mx = dense.max(axis=1, keepdims=True)
        mx = np.where(np.isfinite(mx), mx, 0.0)
        ee = np.exp(dense - mx) * adj
        s = ee.sum(axis=1, keepdims=True)
        out[k] = np.where(s > 0, ee / np.maximum(s, 1e-30), 0.0)
    return out


if __name__ == "__main__":
    key = jax.random.PRNGKey(0)
    N, D, K = 256, 30, 4                   # D % K != 0 exercises sector() remainder
    k1, k2 = jax.random.split(key)
    phi = jax.random.normal(k1, (N, D), dtype=jnp.float32)
    # Random sparse adjacency pattern (~6% density) with self-loops.
    adj = (jax.random.uniform(k2, (N, N)) < 0.06).astype(jnp.float32)
    adj = jnp.maximum(adj, jnp.eye(N, dtype=jnp.float32))

    out = edgepart_pallas(phi, adj, K)
    out = jax.block_until_ready(out)

    ref = edgepart_ref(np.asarray(phi), np.asarray(adj), K)
    np.testing.assert_allclose(np.asarray(out), ref, rtol=5e-3, atol=5e-3)
    print("KERNEL_OK")
</pallas_src>

<mosaic_0001>
module attributes {stable_mosaic.version = 11 : i64} {
  func.func @_edgepart_kernel(%arg0: i32, %arg1: memref<128x30xf32, #tpu.memory_space<vmem>>, %arg2: memref<256x30xf32, #tpu.memory_space<vmem>>, %arg3: memref<128x256xi8, #tpu.memory_space<vmem>>, %arg4: memref<4x128x256xf32, #tpu.memory_space<vmem>>) attributes {dimension_semantics = [#tpu.dimension_semantics<parallel>], iteration_bounds = array<i64: 2>, scalar_prefetch = 0 : i64, scratch_operands = 0 : i64, tpu.core_type = #tpu.core_type<tc>, window_params = [{transform_indices = @transform_0, window_bounds = array<i64: 128, 30>}, {pipeline_mode = #tpu.pipeline_mode<synchronous>, transform_indices = @transform_1, window_bounds = array<i64: 256, 30>}, {transform_indices = @transform_2, window_bounds = array<i64: 128, 256>}, {transform_indices = @transform_3, window_bounds = array<i64: 4, 128, 256>}]} {
    %c0 = arith.constant 0 : index
    %c0_0 = arith.constant 0 : index
    %0 = vector.load %arg1[%c0, %c0_0] : memref<128x30xf32, #tpu.memory_space<vmem>>, vector<128x30xf32>
    %c0_1 = arith.constant 0 : index
    %c0_2 = arith.constant 0 : index
    %1 = vector.load %arg2[%c0_1, %c0_2] : memref<256x30xf32, #tpu.memory_space<vmem>>, vector<256x30xf32>
    %c0_3 = arith.constant 0 : index
    %c0_4 = arith.constant 0 : index
    %2 = vector.load %arg3[%c0_3, %c0_4] : memref<128x256xi8, #tpu.memory_space<vmem>>, vector<128x256xi8>
    %3 = arith.sitofp %2 : vector<128x256xi8> to vector<128x256xf32>
    %4 = vector.extract_strided_slice %0 {offsets = [0, 0], sizes = [128, 8], strides = [1, 1]} : vector<128x30xf32> to vector<128x8xf32>
    %5 = vector.extract_strided_slice %1 {offsets = [0, 0], sizes = [256, 8], strides = [1, 1]} : vector<256x30xf32> to vector<256x8xf32>
    %cst = arith.constant dense<0.000000e+00> : vector<128x256xf32>
    %6 = tpu.matmul %4, %5, %cst {dimension_numbers = #tpu.dot_dimension_numbers<[1], [1], [0], [0], [0, 0, 1, 0], [], []>} : vector<128x8xf32>, vector<256x8xf32>, vector<128x256xf32> -> vector<128x256xf32>
    %cst_5 = arith.constant 1.000000e+00 : f32
    %7 = vector.broadcast %cst_5 : f32 to vector<128x256xf32>
    %8 = arith.mulf %6, %7 : vector<128x256xf32>
    %9 = vector.extract_strided_slice %0 {offsets = [0, 8], sizes = [128, 8], strides = [1, 1]} : vector<128x30xf32> to vector<128x8xf32>
    %10 = vector.extract_strided_slice %1 {offsets = [0, 8], sizes = [256, 8], strides = [1, 1]} : vector<256x30xf32> to vector<256x8xf32>
    %cst_6 = arith.constant dense<0.000000e+00> : vector<128x256xf32>
    %11 = tpu.matmul %9, %10, %cst_6 {dimension_numbers = #tpu.dot_dimension_numbers<[1], [1], [0], [0], [0, 0, 1, 0], [], []>} : vector<128x8xf32>, vector<256x8xf32>, vector<128x256xf32> -> vector<128x256xf32>
    %cst_7 = arith.constant 1.000000e+00 : f32
    %12 = vector.broadcast %cst_7 : f32 to vector<128x256xf32>
    %13 = arith.mulf %11, %12 : vector<128x256xf32>
    %14 = vector.extract_strided_slice %0 {offsets = [0, 16], sizes = [128, 7], strides = [1, 1]} : vector<128x30xf32> to vector<128x7xf32>
    %15 = vector.extract_strided_slice %1 {offsets = [0, 16], sizes = [256, 7], strides = [1, 1]} : vector<256x30xf32> to vector<256x7xf32>
    %cst_8 = arith.constant dense<0.000000e+00> : vector<128x256xf32>
    %16 = tpu.matmul %14, %15, %cst_8 {dimension_numbers = #tpu.dot_dimension_numbers<[1], [1], [0], [0], [0, 0, 1, 0], [], []>} : vector<128x7xf32>, vector<256x7xf32>, vector<128x256xf32> -> vector<128x256xf32>
    %cst_9 = arith.constant 1.000000e+00 : f32
    %17 = vector.broadcast %cst_9 : f32 to vector<128x256xf32>
    %18 = arith.mulf %16, %17 : vector<128x256xf32>
    %19 = vector.extract_strided_slice %0 {offsets = [0, 23], sizes = [128, 7], strides = [1, 1]} : vector<128x30xf32> to vector<128x7xf32>
    %20 = vector.extract_strided_slice %1 {offsets = [0, 23], sizes = [256, 7], strides = [1, 1]} : vector<256x30xf32> to vector<256x7xf32>
    %cst_10 = arith.constant dense<0.000000e+00> : vector<128x256xf32>
    %21 = tpu.matmul %19, %20, %cst_10 {dimension_numbers = #tpu.dot_dimension_numbers<[1], [1], [0], [0], [0, 0, 1, 0], [], []>} : vector<128x7xf32>, vector<256x7xf32>, vector<128x256xf32> -> vector<128x256xf32>
    %cst_11 = arith.constant 1.000000e+00 : f32
    %22 = vector.broadcast %cst_11 : f32 to vector<128x256xf32>
    %23 = arith.mulf %21, %22 : vector<128x256xf32>
    %24 = arith.maximumf %8, %13 : vector<128x256xf32>
    %25 = arith.maximumf %24, %18 : vector<128x256xf32>
    %26 = arith.maximumf %25, %23 : vector<128x256xf32>
    %27 = arith.subf %8, %26 : vector<128x256xf32>
    %28 = math.exp %27 : vector<128x256xf32>
    %29 = arith.subf %13, %26 : vector<128x256xf32>
    %30 = math.exp %29 : vector<128x256xf32>
    %31 = arith.subf %18, %26 : vector<128x256xf32>
    %32 = math.exp %31 : vector<128x256xf32>
    %33 = arith.subf %23, %26 : vector<128x256xf32>
    %34 = math.exp %33 : vector<128x256xf32>
    %35 = arith.addf %28, %30 : vector<128x256xf32>
    %36 = arith.addf %35, %32 : vector<128x256xf32>
    %37 = arith.addf %36, %34 : vector<128x256xf32>
    %38 = tpu.reciprocal %37 {approx = true} : vector<128x256xf32> -> vector<128x256xf32>
    %39 = arith.mulf %28, %38 : vector<128x256xf32>
    %cst_12 = arith.constant 2.000000e+00 : f32
    %40 = vector.broadcast %cst_12 : f32 to vector<128x256xf32>
    %41 = arith.mulf %39, %40 : vector<128x256xf32>
    %42 = math.exp %41 : vector<128x256xf32>
    %43 = arith.mulf %42, %3 : vector<128x256xf32>
    %cst_13 = arith.constant dense<0.000000e+00> : vector<128xf32>
    %44 = vector.multi_reduction <add>, %43, %cst_13 [1] : vector<128x256xf32> to vector<128xf32>
    %45 = vector.shape_cast %44 : vector<128xf32> to vector<128x1xf32>
    %cst_14 = arith.constant 1.000000e-30 : f32
    %46 = vector.broadcast %cst_14 : f32 to vector<128x1xf32>
    %47 = arith.maximumf %45, %46 : vector<128x1xf32>
    %48 = tpu.reciprocal %47 {approx = true} : vector<128x1xf32> -> vector<128x1xf32>
    %49 = vector.broadcast %48 : vector<128x1xf32> to vector<128x256xf32>
    %50 = arith.mulf %43, %49 : vector<128x256xf32>
    %c0_15 = arith.constant 0 : index
    %c0_16 = arith.constant 0 : index
    %c0_17 = arith.constant 0 : index
    %51 = vector.load %arg4[%c0_15, %c0_16, %c0_17] : memref<4x128x256xf32, #tpu.memory_space<vmem>>, vector<1x128x256xf32>
    %52 = vector.shape_cast %51 : vector<1x128x256xf32> to vector<128x256xf32>
    %53 = vector.shape_cast %50 : vector<128x256xf32> to vector<1x128x256xf32>
    tpu.vector_store %arg4[%c0_15, %c0_16, %c0_17], %53 {strides = array<i32>} : memref<4x128x256xf32, #tpu.memory_space<vmem>>, vector<1x128x256xf32>,
    %54 = arith.mulf %30, %38 : vector<128x256xf32>
    %cst_18 = arith.constant 2.000000e+00 : f32
    %55 = vector.broadcast %cst_18 : f32 to vector<128x256xf32>
    %56 = arith.mulf %54, %55 : vector<128x256xf32>
    %57 = math.exp %56 : vector<128x256xf32>
    %58 = arith.mulf %57, %3 : vector<128x256xf32>
    %cst_19 = arith.constant dense<0.000000e+00> : vector<128xf32>
    %59 = vector.multi_reduction <add>, %58, %cst_19 [1] : vector<128x256xf32> to vector<128xf32>
    %60 = vector.shape_cast %59 : vector<128xf32> to vector<128x1xf32>
    %cst_20 = arith.constant 1.000000e-30 : f32
    %61 = vector.broadcast %cst_20 : f32 to vector<128x1xf32>
    %62 = arith.maximumf %60, %61 : vector<128x1xf32>
    %63 = tpu.reciprocal %62 {approx = true} : vector<128x1xf32> -> vector<128x1xf32>
    %64 = vector.broadcast %63 : vector<128x1xf32> to vector<128x256xf32>
    %65 = arith.mulf %58, %64 : vector<128x256xf32>
    %c1 = arith.constant 1 : index
    %c0_21 = arith.constant 0 : index
    %c0_22 = arith.constant 0 : index
    %66 = vector.load %arg4[%c1, %c0_21, %c0_22] : memref<4x128x256xf32, #tpu.memory_space<vmem>>, vector<1x128x256xf32>
    %67 = vector.shape_cast %66 : vector<1x128x256xf32> to vector<128x256xf32>
    %68 = vector.shape_cast %65 : vector<128x256xf32> to vector<1x128x256xf32>
    tpu.vector_store %arg4[%c1, %c0_21, %c0_22], %68 {strides = array<i32>} : memref<4x128x256xf32, #tpu.memory_space<vmem>>, vector<1x128x256xf32>,
    %69 = arith.mulf %32, %38 : vector<128x256xf32>
    %cst_23 = arith.constant 2.000000e+00 : f32
    %70 = vector.broadcast %cst_23 : f32 to vector<128x256xf32>
    %71 = arith.mulf %69, %70 : vector<128x256xf32>
    %72 = math.exp %71 : vector<128x256xf32>
    %73 = arith.mulf %72, %3 : vector<128x256xf32>
    %cst_24 = arith.constant dense<0.000000e+00> : vector<128xf32>
    %74 = vector.multi_reduction <add>, %73, %cst_24 [1] : vector<128x256xf32> to vector<128xf32>
    %75 = vector.shape_cast %74 : vector<128xf32> to vector<128x1xf32>
    %cst_25 = arith.constant 1.000000e-30 : f32
    %76 = vector.broadcast %cst_25 : f32 to vector<128x1xf32>
    %77 = arith.maximumf %75, %76 : vector<128x1xf32>
    %78 = tpu.reciprocal %77 {approx = true} : vector<128x1xf32> -> vector<128x1xf32>
    %79 = vector.broadcast %78 : vector<128x1xf32> to vector<128x256xf32>
    %80 = arith.mulf %73, %79 : vector<128x256xf32>
    %c2 = arith.constant 2 : index
    %c0_26 = arith.constant 0 : index
    %c0_27 = arith.constant 0 : index
    %81 = vector.load %arg4[%c2, %c0_26, %c0_27] : memref<4x128x256xf32, #tpu.memory_space<vmem>>, vector<1x128x256xf32>
    %82 = vector.shape_cast %81 : vector<1x128x256xf32> to vector<128x256xf32>
    %83 = vector.shape_cast %80 : vector<128x256xf32> to vector<1x128x256xf32>
    tpu.vector_store %arg4[%c2, %c0_26, %c0_27], %83 {strides = array<i32>} : memref<4x128x256xf32, #tpu.memory_space<vmem>>, vector<1x128x256xf32>,
    %84 = arith.mulf %34, %38 : vector<128x256xf32>
    %cst_28 = arith.constant 2.000000e+00 : f32
    %85 = vector.broadcast %cst_28 : f32 to vector<128x256xf32>
    %86 = arith.mulf %84, %85 : vector<128x256xf32>
    %87 = math.exp %86 : vector<128x256xf32>
    %88 = arith.mulf %87, %3 : vector<128x256xf32>
    %cst_29 = arith.constant dense<0.000000e+00> : vector<128xf32>
    %89 = vector.multi_reduction <add>, %88, %cst_29 [1] : vector<128x256xf32> to vector<128xf32>
    %90 = vector.shape_cast %89 : vector<128xf32> to vector<128x1xf32>
    %cst_30 = arith.constant 1.000000e-30 : f32
    %91 = vector.broadcast %cst_30 : f32 to vector<128x1xf32>
    %92 = arith.maximumf %90, %91 : vector<128x1xf32>
    %93 = tpu.reciprocal %92 {approx = true} : vector<128x1xf32> -> vector<128x1xf32>
    %94 = vector.broadcast %93 : vector<128x1xf32> to vector<128x256xf32>
    %95 = arith.mulf %88, %94 : vector<128x256xf32>
    %c3 = arith.constant 3 : index
    %c0_31 = arith.constant 0 : index
    %c0_32 = arith.constant 0 : index
    %96 = vector.load %arg4[%c3, %c0_31, %c0_32] : memref<4x128x256xf32, #tpu.memory_space<vmem>>, vector<1x128x256xf32>
    %97 = vector.shape_cast %96 : vector<1x128x256xf32> to vector<128x256xf32>
    %98 = vector.shape_cast %95 : vector<128x256xf32> to vector<1x128x256xf32>
    tpu.vector_store %arg4[%c3, %c0_31, %c0_32], %98 {strides = array<i32>} : memref<4x128x256xf32, #tpu.memory_space<vmem>>, vector<1x128x256xf32>,
    return
  }
  func.func @transform_0(%arg0: i32) -> (i32, i32) {
    %c0_i32 = arith.constant 0 : i32
    %c0_i32_0 = arith.constant 0 : i32
    return %arg0, %c0_i32 : i32, i32
  }
  func.func @transform_1(%arg0: i32) -> (i32, i32) {
    %c0_i32 = arith.constant 0 : i32
    %c0_i32_0 = arith.constant 0 : i32
    %c0_i32_1 = arith.constant 0 : i32
    return %c0_i32, %c0_i32_0 : i32, i32
  }
  func.func @transform_2(%arg0: i32) -> (i32, i32) {
    %c0_i32 = arith.constant 0 : i32
    %c0_i32_0 = arith.constant 0 : i32
    return %arg0, %c0_i32 : i32, i32
  }
  func.func @transform_3(%arg0: i32) -> (i32, i32, i32) {
    %c0_i32 = arith.constant 0 : i32
    %c0_i32_0 = arith.constant 0 : i32
    %c0_i32_1 = arith.constant 0 : i32
    return %c0_i32, %arg0, %c0_i32_0 : i32, i32, i32
  }
}

</mosaic_0001>

<llo_original>
// kernel: tpu_custom_call.1
$region0: #{tpu_custom_call.1}
  #allocation0 [shape = 'u32[]', space=smem, size = 0x4, offset = 0x4, fixed_abs, tag = 'smem constant byte address 0x4 - core index']
  #allocation1 [shape = 'u32[144,128]{1,0:T(1,128)}', space=vmem, size = 0x12000, scoped, tag = 'internal scratch']
  #allocation4 [shape = 's32[]', space=sflag, size = 0x4, offset = 0, fixed_abs, tag = 'sflag constant byte address 0x0 - dummy sync flag']
  %s0 = inlined_call_operand.vmem [shape: f32[256,30], index: 0, kind: input, shape index: {}]
  %s1 = inlined_call_operand.vmem [shape: f32[256,30], index: 1, kind: input, shape index: {}]
  %s2 = inlined_call_operand.vmem [shape: s8[256,256], index: 2, kind: input, shape index: {}]
  %s3 = inlined_call_operand.hbm [shape: f32[4,256,256], index: 3, kind: output, shape index: {}]
  %s4 = sld [smem:[#allocation0]]
  $region45: #{tpu_custom_call.1} parent=0
    _
  %s6 = ssub.s32 1, %s4
  %s7 = scalar_select 0, %s6, %s4
  $region1: #{tpu_custom_call.1} parent=0
    #allocation2 [shape = 'u8[1048576]{0}', space=vmem, size = 0x100000, scoped, tag = 'output window, operand 0']
    #allocation3 [shape = 's32[2]{0}', space=sflag, size = 0x8, scoped, tag = 'scoped memory for tpu_custom_call.1']
    %8 = vsyncpa [#allocation3], 0
    %s9 = scalar_lea.sflag [#allocation3], 1
    %10 = vsyncpa %s9, 0
    loop: start=0, step=1, limit=4
    $region2: #{tpu_custom_call.1} parent=1 // loop_pre_header
      _
    $region3: #{tpu_custom_call.1} parent=1 // loop_header
      %s12 = sphi 0, %s16
      %p13 = scmp.ge.s32.totalorder %s12, 4
      %s22 = sphi 0, %s24
      %s25 = sphi 0, %s22
      %s26 = sphi 0, %s25
      %s42 = sphi 0, %s26
      %s46 = sphi 0, %s46
      %s48 = sphi 0, %s46
      %s49 = sphi 0, %s48
      %s63 = sphi 0, %s49
      %s69 = sphi 0, %s71
      %s72 = sphi 0, %s69
      %s73 = sphi 0, %s72
      %s89 = sphi 0, %s73
      %s95 = sphi 0, %s97
      %s98 = sphi 0, %s95
      %s99 = sphi 0, %s98
      %s115 = sphi 0, %s99
    $region4: #{tpu_custom_call.1} parent=1 // loop_header_branch
      %15 = sbr.rel (%p13) target = $region8
    $region5: #{tpu_custom_call.1} parent=1 // loop_body
      %s17 = ssub.s32 %s12, 1
      %s18 = ssub.s32 %s12, 2
      %s19 = sadd.s32 %s12, 1
      %s20 = ssub.s32 %s12, %s19
      %p21 = scmp.eq.s32.totalorder %s20, 0
      %s23 = sadd.s32 %s22, 1
      %s24 = scalar_select %p21, %s22, %s23
      %p27 = pneg %p21
      %p28 = scmp.eq.s32.totalorder %s12, 1
      %p29 = por %p27, %p28
      %p30 = scmp.ne.s32.totalorder %s22, %s25
      %p31 = scmp.eq.s32.totalorder %s12, 0
      %p32 = por %p30, %p31
      %p33 = scmp.ne.s32.totalorder %s22, %s25
      %p34 = scmp.eq.s32.totalorder %s17, 1
      %p35 = por %p33, %p34
      %p36 = scmp.ne.s32.totalorder %s25, %s26
      %p37 = scmp.eq.s32.totalorder %s17, 0
      %p38 = por %p36, %p37
      %p39 = scmp.ne.s32.totalorder %s25, %s26
      %p40 = scmp.eq.s32.totalorder %s18, 1
      %p41 = por %p39, %p40
      %p43 = scmp.ne.s32.totalorder %s26, %s42
      %p44 = scmp.eq.s32.totalorder %s18, 0
      %p45 = por %p43, %p44
      %s47 = sadd.s32 %s46, 1
      %p50 = scmp.eq.s32.totalorder %s12, 1
      %p51 = scmp.ne.s32.totalorder %s46, %s48
      %p52 = scmp.eq.s32.totalorder %s12, 0
      %p53 = por %p51, %p52
      %p54 = scmp.ne.s32.totalorder %s46, %s48
      %p55 = scmp.eq.s32.totalorder %s17, 1
      %p56 = por %p54, %p55
      %p57 = scmp.ne.s32.totalorder %s48, %s49
      %p58 = scmp.eq.s32.totalorder %s17, 0
      %p59 = por %p57, %p58
      %p60 = scmp.ne.s32.totalorder %s48, %s49
      %p61 = scmp.eq.s32.totalorder %s18, 1
      %p62 = por %p60, %p61
      %p64 = scmp.ne.s32.totalorder %s49, %s63
      %p65 = scmp.eq.s32.totalorder %s18, 0
      %p66 = por %p64, %p65
      %s67 = ssub.s32 %s12, %s19
      %p68 = scmp.eq.s32.totalorder %s67, 0
      %s70 = sadd.s32 %s69, 1
      %s71 = scalar_select %p68, %s69, %s70
      %p74 = pneg %p68
      %p75 = scmp.eq.s32.totalorder %s12, 1
      %p76 = por %p74, %p75
      %p77 = scmp.ne.s32.totalorder %s69, %s72
      %p78 = scmp.eq.s32.totalorder %s12, 0
      %p79 = por %p77, %p78
      %p80 = scmp.ne.s32.totalorder %s69, %s72
      %p81 = scmp.eq.s32.totalorder %s17, 1
      %p82 = por %p80, %p81
      %p83 = scmp.ne.s32.totalorder %s72, %s73
      %p84 = scmp.eq.s32.totalorder %s17, 0
      %p85 = por %p83, %p84
      %p86 = scmp.ne.s32.totalorder %s72, %s73
      %p87 = scmp.eq.s32.totalorder %s18, 1
      %p88 = por %p86, %p87
      %p90 = scmp.ne.s32.totalorder %s73, %s89
      %p91 = scmp.eq.s32.totalorder %s18, 0
      %p92 = por %p90, %p91
      %s93 = ssub.s32 %s12, %s19
      %p94 = scmp.eq.s32.totalorder %s93, 0
      %s96 = sadd.s32 %s95, 1
      %s97 = scalar_select %p94, %s95, %s96
      %p100 = pneg %p94
      %p101 = scmp.eq.s32.totalorder %s12, 1
      %p102 = por %p100, %p101
      %p103 = scmp.ne.s32.totalorder %s95, %s98
      %p104 = scmp.eq.s32.totalorder %s12, 0
      %p105 = por %p103, %p104
      %p106 = scmp.ne.s32.totalorder %s95, %s98
      %p107 = scmp.eq.s32.totalorder %s17, 1
      %p108 = por %p106, %p107
      %p109 = scmp.ne.s32.totalorder %s98, %s99
      %p110 = scmp.eq.s32.totalorder %s17, 0
      %p111 = por %p109, %p110
      %p112 = scmp.ne.s32.totalorder %s98, %s99
      %p113 = scmp.eq.s32.totalorder %s18, 1
      %p114 = por %p112, %p113
      %p116 = scmp.ne.s32.totalorder %s99, %s115
      %p117 = scmp.eq.s32.totalorder %s18, 0
      %p118 = por %p116, %p117
      %p119 = scmp.le.s32.totalorder 1, %s12
      %p120 = scmp.lt.s32.totalorder %s12, 3
      %p121 = pnand %p119, %p120
      %p122 = pneg %p121
      // Predicated region
      $region9: #{tpu_custom_call.1} parent=5 // pred_check
        _
      $region10: #{tpu_custom_call.1} parent=5 // pred_check_branch
        %124 = sbr.rel (%p121) target = $region12
      $region11: #{tpu_custom_call.1} parent=5 // pred_region
        %s125 = ssub.s32 %s12, 1
        // Predicated region
        $region13: #{tpu_custom_call.1} parent=11 // pred_check
          %p126 = pneg %p59
        $region14: #{tpu_custom_call.1} parent=11 // pred_check_branch
          %128 = sbr.rel (%p126) target = $region16
        $region15: #{tpu_custom_call.1} parent=11 // pred_region
          _
        $region16: #{tpu_custom_call.1} parent=11 // pred_fallthru
          _
      $region12: #{tpu_custom_call.1} parent=5 // pred_fallthru
        _
      %p129 = scmp.lt.s32.totalorder %s12, 2
      // Predicated region
      $region17: #{tpu_custom_call.1} parent=5 // pred_check
        %p130 = pneg %p129
      $region18: #{tpu_custom_call.1} parent=5 // pred_check_branch
        %132 = sbr.rel (%p130) target = $region20
      $region19: #{tpu_custom_call.1} parent=5 // pred_region
        // Predicated region
        $region21: #{tpu_custom_call.1} parent=19 // pred_check
          %p133 = pneg %p32
        $region22: #{tpu_custom_call.1} parent=19 // pred_check_branch
          %135 = sbr.rel (%p133) target = $region24
        $region23: #{tpu_custom_call.1} parent=19 // pred_region
          %s136 = smul.u32 16, %s12
          %p137 = scmp.lt.s32.totalorder %s136, 31
          %s138 = scalar_select %p137, %s136, 31
          %s139 = smul.addr %s138, 8
          %s140 = scalar_lea.vmem %s0, %s139
          %s141 = smul.u32 16, %s12
        $region24: #{tpu_custom_call.1} parent=19 // pred_fallthru
          _
        // Predicated region
        $region25: #{tpu_custom_call.1} parent=19 // pred_check
          %p142 = pneg %p79
        $region26: #{tpu_custom_call.1} parent=19 // pred_check_branch
          %144 = sbr.rel (%p142) target = $region28
        $region27: #{tpu_custom_call.1} parent=19 // pred_region
          %s145 = smul.u32 4, %s12
          %p146 = scmp.lt.s32.totalorder %s145, 7
          %s147 = scalar_select %p146, %s145, 7
          %s148 = smul.addr %s147, 2
          %s149 = smul.addr %s148, 8
          %s150 = scalar_lea.vmem %s2, %s149
          %s151 = smul.u32 4, %s12
        $region28: #{tpu_custom_call.1} parent=19 // pred_fallthru
          _
      $region20: #{tpu_custom_call.1} parent=5 // pred_fallthru
        _
      %p152 = scmp.le.s32.totalorder 1, %s12
      %p153 = scmp.lt.s32.totalorder %s12, 3
      %p154 = pnand %p152, %p153
      %p155 = pneg %p154
      // Predicated region
      $region29: #{tpu_custom_call.1} parent=5 // pred_check
        _
      $region30: #{tpu_custom_call.1} parent=5 // pred_check_branch
        %157 = sbr.rel (%p154) target = $region32
      $region31: #{tpu_custom_call.1} parent=5 // pred_region
        %s158 = ssub.s32 %s12, 1
        %s159 = smul.u32 16, %s17
        %p160 = scmp.lt.s32.totalorder %s159, 31
        %s161 = scalar_select %p160, %s159, 31
        %s162 = smul.addr %s161, 8
        %s163 = scalar_lea.vmem %s0, %s162
        %p164 = pneg %p38
        %p165 = pneg %p35
        %p166 = pneg %p59
        %p167 = pneg %p56
        %s168 = smul.u32 4, %s17
        %p169 = scmp.lt.s32.totalorder %s168, 7
        %s170 = scalar_select %p169, %s168, 7
        %s171 = smul.addr %s170, 2
        %s172 = smul.addr %s171, 8
        %s173 = scalar_lea.vmem %s2, %s172
        %p174 = pneg %p85
        %p175 = pneg %p82
        %p176 = pneg %p111
        %p177 = pneg %p108
        %s178 = sand.u32 %s98, 1
        %s179 = scalar_lea.sflag [#allocation3], %s178
        %s180 = sand.u32 %s98, 1
        %s181 = smul.addr %s180, 1024
        %s182 = scalar_lea.vmem [#allocation2], %s181
        %s183 = smul.u32 16, %s17
        %p184 = scmp.lt.s32.totalorder %s183, 31
        %s185 = scalar_select %p184, %s183, 31
        %s186 = smul.addr %s185, 8
        %s187 = scalar_lea.vmem %s0, %s186
        %s188 = smul.u32 16, %s17
        %s189 = smul.u32 4, %s17
        %p190 = scmp.lt.s32.totalorder %s189, 7
        %s191 = scalar_select %p190, %s189, 7
        %s192 = smul.addr %s191, 2
        %s193 = smul.addr %s192, 8
        %s194 = scalar_lea.vmem %s2, %s193
        %s195 = smul.u32 4, %s17
        %s196 = smul.u32 16, %s17
        %v197 = vld [vmem:[%s187] sm:$0xff]
        %v198 = vld [vmem:[%s187 + $0x8] sm:$0xff]
        %v199 = vld [vmem:[%s187 + $0x10] sm:$0xff]
        %v200 = vld [vmem:[%s187 + $0x18] sm:$0xff]
        %v201 = vld [vmem:[%s187 + $0x20] sm:$0xff]
        %v202 = vld [vmem:[%s187 + $0x28] sm:$0xff]
        %v203 = vld [vmem:[%s187 + $0x30] sm:$0xff]
        %v204 = vld [vmem:[%s187 + $0x38] sm:$0xff]
        %v205 = vld [vmem:[%s187 + $0x40] sm:$0xff]
        %v206 = vld [vmem:[%s187 + $0x48] sm:$0xff]
        %v207 = vld [vmem:[%s187 + $0x50] sm:$0xff]
        %v208 = vld [vmem:[%s187 + $0x58] sm:$0xff]
        %v209 = vld [vmem:[%s187 + $0x60] sm:$0xff]
        %v210 = vld [vmem:[%s187 + $0x68] sm:$0xff]
        %v211 = vld [vmem:[%s187 + $0x70] sm:$0xff]
        %v212 = vld [vmem:[%s187 + $0x78] sm:$0xff]
        %v213 = vld [vmem:[%s1] sm:$0xff]
        %v214 = vld [vmem:[%s1 + $0x8] sm:$0xff]
        %v215 = vld [vmem:[%s1 + $0x10] sm:$0xff]
        %v216 = vld [vmem:[%s1 + $0x18] sm:$0xff]
        %v217 = vld [vmem:[%s1 + $0x20] sm:$0xff]
        %v218 = vld [vmem:[%s1 + $0x28] sm:$0xff]
        %v219 = vld [vmem:[%s1 + $0x30] sm:$0xff]
        %v220 = vld [vmem:[%s1 + $0x38] sm:$0xff]
        %v221 = vld [vmem:[%s1 + $0x40] sm:$0xff]
        %v222 = vld [vmem:[%s1 + $0x48] sm:$0xff]
        %v223 = vld [vmem:[%s1 + $0x50] sm:$0xff]
        %v224 = vld [vmem:[%s1 + $0x58] sm:$0xff]
        %v225 = vld [vmem:[%s1 + $0x60] sm:$0xff]
        %v226 = vld [vmem:[%s1 + $0x68] sm:$0xff]
        %v227 = vld [vmem:[%s1 + $0x70] sm:$0xff]
        %v228 = vld [vmem:[%s1 + $0x78] sm:$0xff]
        %v229 = vld [vmem:[%s1 + $0x80] sm:$0xff]
        %v230 = vld [vmem:[%s1 + $0x88] sm:$0xff]
        %v231 = vld [vmem:[%s1 + $0x90] sm:$0xff]
        %v232 = vld [vmem:[%s1 + $0x98] sm:$0xff]
        %v233 = vld [vmem:[%s1 + $0xa0] sm:$0xff]
        %v234 = vld [vmem:[%s1 + $0xa8] sm:$0xff]
        %v235 = vld [vmem:[%s1 + $0xb0] sm:$0xff]
        %v236 = vld [vmem:[%s1 + $0xb8] sm:$0xff]
        %v237 = vld [vmem:[%s1 + $0xc0] sm:$0xff]
        %v238 = vld [vmem:[%s1 + $0xc8] sm:$0xff]
        %v239 = vld [vmem:[%s1 + $0xd0] sm:$0xff]
        %v240 = vld [vmem:[%s1 + $0xd8] sm:$0xff]
        %v241 = vld [vmem:[%s1 + $0xe0] sm:$0xff]
        %v242 = vld [vmem:[%s1 + $0xe8] sm:$0xff]
        %v243 = vld [vmem:[%s1 + $0xf0] sm:$0xff]
        %v244 = vld [vmem:[%s1 + $0xf8] sm:$0xff]
        %v245 = vld [vmem:[%s194] sm:$0xff]
        %v246 = vld [vmem:[%s194 + $0x8] sm:$0xff]
        %v247 = vld [vmem:[%s194 + $0x10] sm:$0xff]
        %v248 = vld [vmem:[%s194 + $0x18] sm:$0xff]
        %v249 = vld [vmem:[%s194 + $0x20] sm:$0xff]
        %v250 = vld [vmem:[%s194 + $0x28] sm:$0xff]
        %v251 = vld [vmem:[%s194 + $0x30] sm:$0xff]
        %v252 = vld [vmem:[%s194 + $0x38] sm:$0xff]
        %v253 = vunpack.c.0.s8 %v245
        %v254 = vunpack.c.0.s8 %v246
        %v255 = vunpack.c.1.s8 %v245
        %v256 = vunpack.c.1.s8 %v246
        %v257 = vunpack.c.2.s8 %v245
        %v258 = vunpack.c.2.s8 %v246
        %v259 = vunpack.c.3.s8 %v245
        %v260 = vunpack.c.3.s8 %v246
        %v261 = vunpack.c.0.s8 %v247
        %v262 = vunpack.c.0.s8 %v248
        %v263 = vunpack.c.1.s8 %v247
        %v264 = vunpack.c.1.s8 %v248
        %v265 = vunpack.c.2.s8 %v247
        %v266 = vunpack.c.2.s8 %v248
        %v267 = vunpack.c.3.s8 %v247
        %v268 = vunpack.c.3.s8 %v248
        %v269 = vunpack.c.0.s8 %v249
        %v270 = vunpack.c.0.s8 %v250
        %v271 = vunpack.c.1.s8 %v249
        %v272 = vunpack.c.1.s8 %v250
        %v273 = vunpack.c.2.s8 %v249
        %v274 = vunpack.c.2.s8 %v250
        %v275 = vunpack.c.3.s8 %v249
        %v276 = vunpack.c.3.s8 %v250
        %v277 = vunpack.c.0.s8 %v251
        %v278 = vunpack.c.0.s8 %v252
        %v279 = vunpack.c.1.s8 %v251
        %v280 = vunpack.c.1.s8 %v252
        %v281 = vunpack.c.2.s8 %v251
        %v282 = vunpack.c.2.s8 %v252
        %v283 = vunpack.c.3.s8 %v251
        %v284 = vunpack.c.3.s8 %v252
        %v285 = vcvt.s32.f32 %v253
        %v286 = vcvt.s32.f32 %v254
        %v287 = vcvt.s32.f32 %v255
        %v288 = vcvt.s32.f32 %v256
        %v289 = vcvt.s32.f32 %v257
        %v290 = vcvt.s32.f32 %v258
        %v291 = vcvt.s32.f32 %v259
        %v292 = vcvt.s32.f32 %v260
        %v293 = vcvt.s32.f32 %v261
        %v294 = vcvt.s32.f32 %v262
        %v295 = vcvt.s32.f32 %v263
        %v296 = vcvt.s32.f32 %v264
        %v297 = vcvt.s32.f32 %v265
        %v298 = vcvt.s32.f32 %v266
        %v299 = vcvt.s32.f32 %v267
        %v300 = vcvt.s32.f32 %v268
        %v301 = vcvt.s32.f32 %v269
        %v302 = vcvt.s32.f32 %v270
        %v303 = vcvt.s32.f32 %v271
        %v304 = vcvt.s32.f32 %v272
        %v305 = vcvt.s32.f32 %v273
        %v306 = vcvt.s32.f32 %v274
        %v307 = vcvt.s32.f32 %v275
        %v308 = vcvt.s32.f32 %v276
        %v309 = vcvt.s32.f32 %v277
        %v310 = vcvt.s32.f32 %v278
        %v311 = vcvt.s32.f32 %v279
        %v312 = vcvt.s32.f32 %v280
        %v313 = vcvt.s32.f32 %v281
        %v314 = vcvt.s32.f32 %v282
        %v315 = vcvt.s32.f32 %v283
        %v316 = vcvt.s32.f32 %v284
        %vm317 = vcmask 64512
        %v319 = vsel %vm317, %v197, 0
        %v322 = vsel %vm317, %v198, 0
        %v325 = vsel %vm317, %v199, 0
        %v328 = vsel %vm317, %v200, 0
        %v331 = vsel %vm317, %v201, 0
        %v334 = vsel %vm317, %v202, 0
        %v337 = vsel %vm317, %v203, 0
        %v340 = vsel %vm317, %v204, 0
        %v343 = vsel %vm317, %v205, 0
        %v346 = vsel %vm317, %v206, 0
        %v349 = vsel %vm317, %v207, 0
        %v352 = vsel %vm317, %v208, 0
        %v355 = vsel %vm317, %v209, 0
        %v358 = vsel %vm317, %v210, 0
        %v361 = vsel %vm317, %v211, 0
        %v364 = vsel %vm317, %v212, 0
        %v367 = vsel %vm317, %v213, 0
        %v370 = vsel %vm317, %v214, 0
        %v373 = vsel %vm317, %v215, 0
        %v376 = vsel %vm317, %v216, 0
        %v379 = vsel %vm317, %v217, 0
        %v382 = vsel %vm317, %v218, 0
        %v385 = vsel %vm317, %v219, 0
        %v388 = vsel %vm317, %v220, 0
        %v391 = vsel %vm317, %v221, 0
        %v394 = vsel %vm317, %v222, 0
        %v397 = vsel %vm317, %v223, 0
        %v400 = vsel %vm317, %v224, 0
        %v403 = vsel %vm317, %v225, 0
        %v406 = vsel %vm317, %v226, 0
        %v409 = vsel %vm317, %v227, 0
        %v412 = vsel %vm317, %v228, 0
        %v415 = vsel %vm317, %v229, 0
        %v418 = vsel %vm317, %v230, 0
        %v421 = vsel %vm317, %v231, 0
        %v424 = vsel %vm317, %v232, 0
        %v427 = vsel %vm317, %v233, 0
        %v430 = vsel %vm317, %v234, 0
        %v433 = vsel %vm317, %v235, 0
        %v436 = vsel %vm317, %v236, 0
        %v439 = vsel %vm317, %v237, 0
        %v442 = vsel %vm317, %v238, 0
        %v445 = vsel %vm317, %v239, 0
        %v448 = vsel %vm317, %v240, 0
        %v451 = vsel %vm317, %v241, 0
        %v454 = vsel %vm317, %v242, 0
        %v457 = vsel %vm317, %v243, 0
        %v460 = vsel %vm317, %v244, 0
        %462 = vmatprep.subr.mxu0 0.0
        %463 = vmatpush1.xpose.msra.mxu0 %v367
        %464 = vmatprep.subr.mxu0 0.0
        %465 = vmatpush1.xpose.msra.mxu0 %v370
        %466 = vmatprep.subr.mxu0 0.0
        %467 = vmatpush1.xpose.msra.mxu0 %v373
        %468 = vmatprep.subr.mxu0 0.0
        %469 = vmatpush1.xpose.msra.mxu0 %v376
        %470 = vmatprep.subr.mxu0 0.0
        %471 = vmatpush1.xpose.msra.mxu0 %v379
        %472 = vmatprep.subr.mxu0 0.0
        %473 = vmatpush1.xpose.msra.mxu0 %v382
        %474 = vmatprep.subr.mxu0 0.0
        %475 = vmatpush1.xpose.msra.mxu0 %v385
        %476 = vmatprep.subr.mxu0 0.0
        %477 = vmatpush1.xpose.msra.mxu0 %v388
        %478 = vmatprep.subr.mxu0 0.0
        %479 = vmatpush1.xpose.msra.mxu0 %v391
        %480 = vmatprep.subr.mxu0 0.0
        %481 = vmatpush1.xpose.msra.mxu0 %v394
        %482 = vmatprep.subr.mxu0 0.0
        %483 = vmatpush1.xpose.msra.mxu0 %v397
        %484 = vmatprep.subr.mxu0 0.0
        %485 = vmatpush1.xpose.msra.mxu0 %v400
        %486 = vmatprep.subr.mxu0 0.0
        %487 = vmatpush1.xpose.msra.mxu0 %v403
        %488 = vmatprep.subr.mxu0 0.0
        %489 = vmatpush1.xpose.msra.mxu0 %v406
        %490 = vmatprep.subr.mxu0 0.0
        %491 = vmatpush1.xpose.msra.mxu0 %v409
        %492 = vmatprep.subr.mxu0 0.0
        %493 = vmatpush1.xpose.msra.mxu0 %v412
        %494 = vmatprep.subr.mxu0 0.0
        %495 = vmatpush1.xpose.msra.mxu0 %v415
        %496 = vmatprep.subr.mxu0 0.0
        %497 = vmatpush1.xpose.msra.mxu0 %v418
        %498 = vmatprep.subr.mxu0 0.0
        %499 = vmatpush1.xpose.msra.mxu0 %v421
        %500 = vmatprep.subr.mxu0 0.0
        %501 = vmatpush1.xpose.msra.mxu0 %v424
        %502 = vmatprep.subr.mxu0 0.0
        %503 = vmatpush1.xpose.msra.mxu0 %v427
        %504 = vmatprep.subr.mxu0 0.0
        %505 = vmatpush1.xpose.msra.mxu0 %v430
        %506 = vmatprep.subr.mxu0 0.0
        %507 = vmatpush1.xpose.msra.mxu0 %v433
        %508 = vmatprep.subr.mxu0 0.0
        %509 = vmatpush1.xpose.msra.mxu0 %v436
        %510 = vmatprep.subr.mxu0 0.0
        %511 = vmatpush1.xpose.msra.mxu0 %v439
        %512 = vmatprep.subr.mxu0 0.0
        %513 = vmatpush1.xpose.msra.mxu0 %v442
        %514 = vmatprep.subr.mxu0 0.0
        %515 = vmatpush1.xpose.msra.mxu0 %v445
        %516 = vmatprep.subr.mxu0 0.0
        %517 = vmatpush1.xpose.msra.mxu0 %v448
        %518 = vmatprep.subr.mxu0 0.0
        %519 = vmatpush1.xpose.msra.mxu0 %v451
        %520 = vmatprep.subr.mxu0 0.0
        %521 = vmatpush1.xpose.msra.mxu0 %v454
        %522 = vmatprep.subr.mxu0 0.0
        %523 = vmatpush1.xpose.msra.mxu0 %v457
        %524 = vmatprep.subr.mxu0 0.0
        %525 = vmatpush1.xpose.msra.mxu0 %v460
        %526 = vmatprep.mubr.f32.mxu0 0.0
        %527 = vmatmul.mubr.f32.gmra.mrb[0].mxu0 %v319
        %v528 = vpop.f32.mrb[0].mxu0
        %v529 = vadd.f32 0.0, %v528
        %v530 = vpop.f32.mrb[0].mxu0
        %v531 = vadd.f32 0.0, %v530
        %532 = vmatprep.mubr.f32.mxu0 0.0
        %533 = vmatmul.mubr.f32.gmra.mrb[0].mxu0 %v322
        %v534 = vpop.f32.mrb[0].mxu0
        %v535 = vadd.f32 0.0, %v534
        %v536 = vpop.f32.mrb[0].mxu0
        %v537 = vadd.f32 0.0, %v536
        %538 = vmatprep.mubr.f32.mxu0 0.0
        %539 = vmatmul.mubr.f32.gmra.mrb[0].mxu0 %v325
        %v540 = vpop.f32.mrb[0].mxu0
        %v541 = vadd.f32 0.0, %v540
        %v542 = vpop.f32.mrb[0].mxu0
        %v543 = vadd.f32 0.0, %v542
        %544 = vmatprep.mubr.f32.mxu0 0.0
        %545 = vmatmul.mubr.f32.gmra.mrb[0].mxu0 %v328
        %v546 = vpop.f32.mrb[0].mxu0
        %v547 = vadd.f32 0.0, %v546
        %v548 = vpop.f32.mrb[0].mxu0
        %v549 = vadd.f32 0.0, %v548
        %550 = vmatprep.mubr.f32.mxu0 0.0
        %551 = vmatmul.mubr.f32.gmra.mrb[0].mxu0 %v331
        %v552 = vpop.f32.mrb[0].mxu0
        %v553 = vadd.f32 0.0, %v552
        %v554 = vpop.f32.mrb[0].mxu0
        %v555 = vadd.f32 0.0, %v554
        %556 = vmatprep.mubr.f32.mxu0 0.0
        %557 = vmatmul.mubr.f32.gmra.mrb[0].mxu0 %v334
        %v558 = vpop.f32.mrb[0].mxu0
        %v559 = vadd.f32 0.0, %v558
        %v560 = vpop.f32.mrb[0].mxu0
        %v561 = vadd.f32 0.0, %v560
        %562 = vmatprep.mubr.f32.mxu0 0.0
        %563 = vmatmul.mubr.f32.gmra.mrb[0].mxu0 %v337
        %v564 = vpop.f32.mrb[0].mxu0
        %v565 = vadd.f32 0.0, %v564
        %v566 = vpop.f32.mrb[0].mxu0
        %v567 = vadd.f32 0.0, %v566
        %568 = vmatprep.mubr.f32.mxu0 0.0
        %569 = vmatmul.mubr.f32.gmra.mrb[0].mxu0 %v340
        %v570 = vpop.f32.mrb[0].mxu0
        %v571 = vadd.f32 0.0, %v570
        %v572 = vpop.f32.mrb[0].mxu0
        %v573 = vadd.f32 0.0, %v572
        %574 = vmatprep.mubr.f32.mxu0 0.0
        %575 = vmatmul.mubr.f32.gmra.mrb[0].mxu0 %v343
        %v576 = vpop.f32.mrb[0].mxu0
        %v577 = vadd.f32 0.0, %v576
        %v578 = vpop.f32.mrb[0].mxu0
        %v579 = vadd.f32 0.0, %v578
        %580 = vmatprep.mubr.f32.mxu0 0.0
        %581 = vmatmul.mubr.f32.gmra.mrb[0].mxu0 %v346
        %v582 = vpop.f32.mrb[0].mxu0
        %v583 = vadd.f32 0.0, %v582
        %v584 = vpop.f32.mrb[0].mxu0
        %v585 = vadd.f32 0.0, %v584
        %586 = vmatprep.mubr.f32.mxu0 0.0
        %587 = vmatmul.mubr.f32.gmra.mrb[0].mxu0 %v349
        %v588 = vpop.f32.mrb[0].mxu0
        %v589 = vadd.f32 0.0, %v588
        %v590 = vpop.f32.mrb[0].mxu0
        %v591 = vadd.f32 0.0, %v590
        %592 = vmatprep.mubr.f32.mxu0 0.0
        %593 = vmatmul.mubr.f32.gmra.mrb[0].mxu0 %v352
        %v594 = vpop.f32.mrb[0].mxu0
        %v595 = vadd.f32 0.0, %v594
        %v596 = vpop.f32.mrb[0].mxu0
        %v597 = vadd.f32 0.0, %v596
        %598 = vmatprep.mubr.f32.mxu0 0.0
        %599 = vmatmul.mubr.f32.gmra.mrb[0].mxu0 %v355
        %v600 = vpop.f32.mrb[0].mxu0
        %v601 = vadd.f32 0.0, %v600
        %v602 = vpop.f32.mrb[0].mxu0
        %v603 = vadd.f32 0.0, %v602
        %604 = vmatprep.mubr.f32.mxu0 0.0
        %605 = vmatmul.mubr.f32.gmra.mrb[0].mxu0 %v358
        %v606 = vpop.f32.mrb[0].mxu0
        %v607 = vadd.f32 0.0, %v606
        %v608 = vpop.f32.mrb[0].mxu0
        %v609 = vadd.f32 0.0, %v608
        %610 = vmatprep.mubr.f32.mxu0 0.0
        %611 = vmatmul.mubr.f32.gmra.mrb[0].mxu0 %v361
        %v612 = vpop.f32.mrb[0].mxu0
        %v613 = vadd.f32 0.0, %v612
        %v614 = vpop.f32.mrb[0].mxu0
        %v615 = vadd.f32 0.0, %v614
        %616 = vmatprep.mubr.f32.mxu0 0.0
        %617 = vmatmul.mubr.f32.gmra.mrb[0].mxu0 %v364
        %v618 = vpop.f32.mrb[0].mxu0
        %v619 = vadd.f32 0.0, %v618
        %v620 = vpop.f32.mrb[0].mxu0
        %v621 = vadd.f32 0.0, %v620
        %622 = vdwg.mxu0
        %623 = vrot.lane.b32.xlu0 %v197, 120
        %v624 = vpop.permute.xlu0 %623
        %625 = vrot.lane.b32.xlu0 %v198, 120
        %v626 = vpop.permute.xlu0 %625
        %627 = vrot.lane.b32.xlu0 %v199, 120
        %v628 = vpop.permute.xlu0 %627
        %629 = vrot.lane.b32.xlu0 %v200, 120
        %v630 = vpop.permute.xlu0 %629
        %631 = vrot.lane.b32.xlu0 %v201, 120
        %v632 = vpop.permute.xlu0 %631
        %633 = vrot.lane.b32.xlu0 %v202, 120
        %v634 = vpop.permute.xlu0 %633
        %635 = vrot.lane.b32.xlu0 %v203, 120
        %v636 = vpop.permute.xlu0 %635
        %637 = vrot.lane.b32.xlu0 %v204, 120
        %v638 = vpop.permute.xlu0 %637
        %639 = vrot.lane.b32.xlu0 %v205, 120
        %v640 = vpop.permute.xlu0 %639
        %641 = vrot.lane.b32.xlu0 %v206, 120
        %v642 = vpop.permute.xlu0 %641
        %643 = vrot.lane.b32.xlu0 %v207, 120
        %v644 = vpop.permute.xlu0 %643
        %645 = vrot.lane.b32.xlu0 %v208, 120
        %v646 = vpop.permute.xlu0 %645
        %647 = vrot.lane.b32.xlu0 %v209, 120
        %v648 = vpop.permute.xlu0 %647
        %649 = vrot.lane.b32.xlu0 %v210, 120
        %v650 = vpop.permute.xlu0 %649
        %651 = vrot.lane.b32.xlu0 %v211, 120
        %v652 = vpop.permute.xlu0 %651
        %653 = vrot.lane.b32.xlu0 %v212, 120
        %v654 = vpop.permute.xlu0 %653
        %655 = vrot.lane.b32.xlu0 %v213, 120
        %v656 = vpop.permute.xlu0 %655
        %657 = vrot.lane.b32.xlu0 %v214, 120
        %v658 = vpop.permute.xlu0 %657
        %659 = vrot.lane.b32.xlu0 %v215, 120
        %v660 = vpop.permute.xlu0 %659
        %661 = vrot.lane.b32.xlu0 %v216, 120
        %v662 = vpop.permute.xlu0 %661
        %663 = vrot.lane.b32.xlu0 %v217, 120
        %v664 = vpop.permute.xlu0 %663
        %665 = vrot.lane.b32.xlu0 %v218, 120
        %v666 = vpop.permute.xlu0 %665
        %667 = vrot.lane.b32.xlu0 %v219, 120
        %v668 = vpop.permute.xlu0 %667
        %669 = vrot.lane.b32.xlu0 %v220, 120
        %v670 = vpop.permute.xlu0 %669
        %671 = vrot.lane.b32.xlu0 %v221, 120
        %v672 = vpop.permute.xlu0 %671
        %673 = vrot.lane.b32.xlu0 %v222, 120
        %v674 = vpop.permute.xlu0 %673
        %675 = vrot.lane.b32.xlu0 %v223, 120
        %v676 = vpop.permute.xlu0 %675
        %677 = vrot.lane.b32.xlu0 %v224, 120
        %v678 = vpop.permute.xlu0 %677
        %679 = vrot.lane.b32.xlu0 %v225, 120
        %v680 = vpop.permute.xlu0 %679
        %681 = vrot.lane.b32.xlu0 %v226, 120
        %v682 = vpop.permute.xlu0 %681
        %683 = vrot.lane.b32.xlu0 %v227, 120
        %v684 = vpop.permute.xlu0 %683
        %685 = vrot.lane.b32.xlu0 %v228, 120
        %v686 = vpop.permute.xlu0 %685
        %687 = vrot.lane.b32.xlu0 %v229, 120
        %v688 = vpop.permute.xlu0 %687
        %689 = vrot.lane.b32.xlu0 %v230, 120
        %v690 = vpop.permute.xlu0 %689
        %691 = vrot.lane.b32.xlu0 %v231, 120
        %v692 = vpop.permute.xlu0 %691
        %693 = vrot.lane.b32.xlu0 %v232, 120
        %v694 = vpop.permute.xlu0 %693
        %695 = vrot.lane.b32.xlu0 %v233, 120
        %v696 = vpop.permute.xlu0 %695
        %697 = vrot.lane.b32.xlu0 %v234, 120
        %v698 = vpop.permute.xlu0 %697
        %699 = vrot.lane.b32.xlu0 %v235, 120
        %v700 = vpop.permute.xlu0 %699
        %701 = vrot.lane.b32.xlu0 %v236, 120
        %v702 = vpop.permute.xlu0 %701
        %703 = vrot.lane.b32.xlu0 %v237, 120
        %v704 = vpop.permute.xlu0 %703
        %705 = vrot.lane.b32.xlu0 %v238, 120
        %v706 = vpop.permute.xlu0 %705
        %707 = vrot.lane.b32.xlu0 %v239, 120
        %v708 = vpop.permute.xlu0 %707
        %709 = vrot.lane.b32.xlu0 %v240, 120
        %v710 = vpop.permute.xlu0 %709
        %711 = vrot.lane.b32.xlu0 %v241, 120
        %v712 = vpop.permute.xlu0 %711
        %713 = vrot.lane.b32.xlu0 %v242, 120
        %v714 = vpop.permute.xlu0 %713
        %715 = vrot.lane.b32.xlu0 %v243, 120
        %v716 = vpop.permute.xlu0 %715
        %717 = vrot.lane.b32.xlu0 %v244, 120
        %v718 = vpop.permute.xlu0 %717
        %v719 = vsel %vm317, %v624, 0
        %v721 = vsel %vm317, %v626, 0
        %v723 = vsel %vm317, %v628, 0
        %v725 = vsel %vm317, %v630, 0
        %v727 = vsel %vm317, %v632, 0
        %v729 = vsel %vm317, %v634, 0
        %v731 = vsel %vm317, %v636, 0
        %v733 = vsel %vm317, %v638, 0
        %v735 = vsel %vm317, %v640, 0
        %v737 = vsel %vm317, %v642, 0
        %v739 = vsel %vm317, %v644, 0
        %v741 = vsel %vm317, %v646, 0
        %v743 = vsel %vm317, %v648, 0
        %v745 = vsel %vm317, %v650, 0
        %v747 = vsel %vm317, %v652, 0
        %v749 = vsel %vm317, %v654, 0
        %v751 = vsel %vm317, %v656, 0
        %v753 = vsel %vm317, %v658, 0
        %v755 = vsel %vm317, %v660, 0
        %v757 = vsel %vm317, %v662, 0
        %v759 = vsel %vm317, %v664, 0
        %v761 = vsel %vm317, %v666, 0
        %v763 = vsel %vm317, %v668, 0
        %v765 = vsel %vm317, %v670, 0
        %v767 = vsel %vm317, %v672, 0
        %v769 = vsel %vm317, %v674, 0
        %v771 = vsel %vm317, %v676, 0
        %v773 = vsel %vm317, %v678, 0
        %v775 = vsel %vm317, %v680, 0
        %v777 = vsel %vm317, %v682, 0
        %v779 = vsel %vm317, %v684, 0
        %v781 = vsel %vm317, %v686, 0
        %v783 = vsel %vm317, %v688, 0
        %v785 = vsel %vm317, %v690, 0
        %v787 = vsel %vm317, %v692, 0
        %v789 = vsel %vm317, %v694, 0
        %v791 = vsel %vm317, %v696, 0
        %v793 = vsel %vm317, %v698, 0
        %v795 = vsel %vm317, %v700, 0
        %v797 = vsel %vm317, %v702, 0
        %v799 = vsel %vm317, %v704, 0
        %v801 = vsel %vm317, %v706, 0
        %v803 = vsel %vm317, %v708, 0
        %v805 = vsel %vm317, %v710, 0
        %v807 = vsel %vm317, %v712, 0
        %v809 = vsel %vm317, %v714, 0
        %v811 = vsel %vm317, %v716, 0
        %v813 = vsel %vm317, %v718, 0
        %815 = vmatprep.subr.mxu0 0.0
        %816 = vmatpush1.xpose.msra.mxu0 %v751
        %817 = vmatprep.subr.mxu0 0.0
        %818 = vmatpush1.xpose.msra.mxu0 %v753
        %819 = vmatprep.subr.mxu0 0.0
        %820 = vmatpush1.xpose.msra.mxu0 %v755
        %821 = vmatprep.subr.mxu0 0.0
        %822 = vmatpush1.xpose.msra.mxu0 %v757
        %823 = vmatprep.subr.mxu0 0.0
        %824 = vmatpush1.xpose.msra.mxu0 %v759
        %825 = vmatprep.subr.mxu0 0.0
        %826 = vmatpush1.xpose.msra.mxu0 %v761
        %827 = vmatprep.subr.mxu0 0.0
        %828 = vmatpush1.xpose.msra.mxu0 %v763
        %829 = vmatprep.subr.mxu0 0.0
        %830 = vmatpush1.xpose.msra.mxu0 %v765
        %831 = vmatprep.subr.mxu0 0.0
        %832 = vmatpush1.xpose.msra.mxu0 %v767
        %833 = vmatprep.subr.mxu0 0.0
        %834 = vmatpush1.xpose.msra.mxu0 %v769
        %835 = vmatprep.subr.mxu0 0.0
        %836 = vmatpush1.xpose.msra.mxu0 %v771
        %837 = vmatprep.subr.mxu0 0.0
        %838 = vmatpush1.xpose.msra.mxu0 %v773
        %839 = vmatprep.subr.mxu0 0.0
        %840 = vmatpush1.xpose.msra.mxu0 %v775
        %841 = vmatprep.subr.mxu0 0.0
        %842 = vmatpush1.xpose.msra.mxu0 %v777
        %843 = vmatprep.subr.mxu0 0.0
        %844 = vmatpush1.xpose.msra.mxu0 %v779
        %845 = vmatprep.subr.mxu0 0.0
        %846 = vmatpush1.xpose.msra.mxu0 %v781
        %847 = vmatprep.subr.mxu0 0.0
        %848 = vmatpush1.xpose.msra.mxu0 %v783
        %849 = vmatprep.subr.mxu0 0.0
        %850 = vmatpush1.xpose.msra.mxu0 %v785
        %851 = vmatprep.subr.mxu0 0.0
        %852 = vmatpush1.xpose.msra.mxu0 %v787
        %853 = vmatprep.subr.mxu0 0.0
        %854 = vmatpush1.xpose.msra.mxu0 %v789
        %855 = vmatprep.subr.mxu0 0.0
        %856 = vmatpush1.xpose.msra.mxu0 %v791
        %857 = vmatprep.subr.mxu0 0.0
        %858 = vmatpush1.xpose.msra.mxu0 %v793
        %859 = vmatprep.subr.mxu0 0.0
        %860 = vmatpush1.xpose.msra.mxu0 %v795
        %861 = vmatprep.subr.mxu0 0.0
        %862 = vmatpush1.xpose.msra.mxu0 %v797
        %863 = vmatprep.subr.mxu0 0.0
        %864 = vmatpush1.xpose.msra.mxu0 %v799
        %865 = vmatprep.subr.mxu0 0.0
        %866 = vmatpush1.xpose.msra.mxu0 %v801
        %867 = vmatprep.subr.mxu0 0.0
        %868 = vmatpush1.xpose.msra.mxu0 %v803
        %869 = vmatprep.subr.mxu0 0.0
        %870 = vmatpush1.xpose.msra.mxu0 %v805
        %871 = vmatprep.subr.mxu0 0.0
        %872 = vmatpush1.xpose.msra.mxu0 %v807
        %873 = vmatprep.subr.mxu0 0.0
        %874 = vmatpush1.xpose.msra.mxu0 %v809
        %875 = vmatprep.subr.mxu0 0.0
        %876 = vmatpush1.xpose.msra.mxu0 %v811
        %877 = vmatprep.subr.mxu0 0.0
        %878 = vmatpush1.xpose.msra.mxu0 %v813
        %879 = vmatprep.mubr.f32.mxu0 0.0
        %880 = vmatmul.mubr.f32.gmra.mrb[0].mxu0 %v719
        %v881 = vpop.f32.mrb[0].mxu0
        %v882 = vadd.f32 0.0, %v881
        %v883 = vpop.f32.mrb[0].mxu0
        %v884 = vadd.f32 0.0, %v883
        %885 = vmatprep.mubr.f32.mxu0 0.0
        %886 = vmatmul.mubr.f32.gmra.mrb[0].mxu0 %v721
        %v887 = vpop.f32.mrb[0].mxu0
        %v888 = vadd.f32 0.0, %v887
        %v889 = vpop.f32.mrb[0].mxu0
        %v890 = vadd.f32 0.0, %v889
        %891 = vmatprep.mubr.f32.mxu0 0.0
        %892 = vmatmul.mubr.f32.gmra.mrb[0].mxu0 %v723
        %v893 = vpop.f32.mrb[0].mxu0
        %v894 = vadd.f32 0.0, %v893
        %v895 = vpop.f32.mrb[0].mxu0
        %v896 = vadd.f32 0.0, %v895
        %897 = vmatprep.mubr.f32.mxu0 0.0
        %898 = vmatmul.mubr.f32.gmra.mrb[0].mxu0 %v725
        %v899 = vpop.f32.mrb[0].mxu0
        %v900 = vadd.f32 0.0, %v899
        %v901 = vpop.f32.mrb[0].mxu0
        %v902 = vadd.f32 0.0, %v901
        %903 = vmatprep.mubr.f32.mxu0 0.0
        %904 = vmatmul.mubr.f32.gmra.mrb[0].mxu0 %v727
        %v905 = vpop.f32.mrb[0].mxu0
        %v906 = vadd.f32 0.0, %v905
        %v907 = vpop.f32.mrb[0].mxu0
        %v908 = vadd.f32 0.0, %v907
        %909 = vmatprep.mubr.f32.mxu0 0.0
        %910 = vmatmul.mubr.f32.gmra.mrb[0].mxu0 %v729
        %v911 = vpop.f32.mrb[0].mxu0
        %v912 = vadd.f32 0.0, %v911
        %v913 = vpop.f32.mrb[0].mxu0
        %v914 = vadd.f32 0.0, %v913
        %915 = vmatprep.mubr.f32.mxu0 0.0
        %916 = vmatmul.mubr.f32.gmra.mrb[0].mxu0 %v731
        %v917 = vpop.f32.mrb[0].mxu0
        %v918 = vadd.f32 0.0, %v917
        %v919 = vpop.f32.mrb[0].mxu0
        %v920 = vadd.f32 0.0, %v919
        %921 = vmatprep.mubr.f32.mxu0 0.0
        %922 = vmatmul.mubr.f32.gmra.mrb[0].mxu0 %v733
        %v923 = vpop.f32.mrb[0].mxu0
        %v924 = vadd.f32 0.0, %v923
        %v925 = vpop.f32.mrb[0].mxu0
        %v926 = vadd.f32 0.0, %v925
        %927 = vmatprep.mubr.f32.mxu0 0.0
        %928 = vmatmul.mubr.f32.gmra.mrb[0].mxu0 %v735
        %v929 = vpop.f32.mrb[0].mxu0
        %v930 = vadd.f32 0.0, %v929
        %v931 = vpop.f32.mrb[0].mxu0
        %v932 = vadd.f32 0.0, %v931
        %933 = vmatprep.mubr.f32.mxu0 0.0
        %934 = vmatmul.mubr.f32.gmra.mrb[0].mxu0 %v737
        %v935 = vpop.f32.mrb[0].mxu0
        %v936 = vadd.f32 0.0, %v935
        %v937 = vpop.f32.mrb[0].mxu0
        %v938 = vadd.f32 0.0, %v937
        %939 = vmatprep.mubr.f32.mxu0 0.0
        %940 = vmatmul.mubr.f32.gmra.mrb[0].mxu0 %v739
        %v941 = vpop.f32.mrb[0].mxu0
        %v942 = vadd.f32 0.0, %v941
        %v943 = vpop.f32.mrb[0].mxu0
        %v944 = vadd.f32 0.0, %v943
        %945 = vmatprep.mubr.f32.mxu0 0.0
        %946 = vmatmul.mubr.f32.gmra.mrb[0].mxu0 %v741
        %v947 = vpop.f32.mrb[0].mxu0
        %v948 = vadd.f32 0.0, %v947
        %v949 = vpop.f32.mrb[0].mxu0
        %v950 = vadd.f32 0.0, %v949
        %951 = vmatprep.mubr.f32.mxu0 0.0
        %952 = vmatmul.mubr.f32.gmra.mrb[0].mxu0 %v743
        %v953 = vpop.f32.mrb[0].mxu0
        %v954 = vadd.f32 0.0, %v953
        %v955 = vpop.f32.mrb[0].mxu0
        %v956 = vadd.f32 0.0, %v955
        %957 = vmatprep.mubr.f32.mxu0 0.0
        %958 = vmatmul.mubr.f32.gmra.mrb[0].mxu0 %v745
        %v959 = vpop.f32.mrb[0].mxu0
        %v960 = vadd.f32 0.0, %v959
        %v961 = vpop.f32.mrb[0].mxu0
        %v962 = vadd.f32 0.0, %v961
        %963 = vmatprep.mubr.f32.mxu0 0.0
        %964 = vmatmul.mubr.f32.gmra.mrb[0].mxu0 %v747
        %v965 = vpop.f32.mrb[0].mxu0
        %v966 = vadd.f32 0.0, %v965
        %v967 = vpop.f32.mrb[0].mxu0
        %v968 = vadd.f32 0.0, %v967
        %969 = vmatprep.mubr.f32.mxu0 0.0
        %970 = vmatmul.mubr.f32.gmra.mrb[0].mxu0 %v749
        %v971 = vpop.f32.mrb[0].mxu0
        %v972 = vadd.f32 0.0, %v971
        %v973 = vpop.f32.mrb[0].mxu0
        %v974 = vadd.f32 0.0, %v973
        %975 = vdwg.mxu0
        %976 = vrot.lane.b32.xlu0 %v197, 112
        %v977 = vpop.permute.xlu0 %976
        %978 = vrot.lane.b32.xlu0 %v198, 112
        %v979 = vpop.permute.xlu0 %978
        %980 = vrot.lane.b32.xlu0 %v199, 112
        %v981 = vpop.permute.xlu0 %980
        %982 = vrot.lane.b32.xlu0 %v200, 112
        %v983 = vpop.permute.xlu0 %982
        %984 = vrot.lane.b32.xlu0 %v201, 112
        %v985 = vpop.permute.xlu0 %984
        %986 = vrot.lane.b32.xlu0 %v202, 112
        %v987 = vpop.permute.xlu0 %986
        %988 = vrot.lane.b32.xlu0 %v203, 112
        %v989 = vpop.permute.xlu0 %988
        %990 = vrot.lane.b32.xlu0 %v204, 112
        %v991 = vpop.permute.xlu0 %990
        %992 = vrot.lane.b32.xlu0 %v205, 112
        %v993 = vpop.permute.xlu0 %992
        %994 = vrot.lane.b32.xlu0 %v206, 112
        %v995 = vpop.permute.xlu0 %994
        %996 = vrot.lane.b32.xlu0 %v207, 112
        %v997 = vpop.permute.xlu0 %996
        %998 = vrot.lane.b32.xlu0 %v208, 112
        %v999 = vpop.permute.xlu0 %998
        %1000 = vrot.lane.b32.xlu0 %v209, 112
        %v1001 = vpop.permute.xlu0 %1000
        %1002 = vrot.lane.b32.xlu0 %v210, 112
        %v1003 = vpop.permute.xlu0 %1002
        %1004 = vrot.lane.b32.xlu0 %v211, 112
        %v1005 = vpop.permute.xlu0 %1004
        %1006 = vrot.lane.b32.xlu0 %v212, 112
        %v1007 = vpop.permute.xlu0 %1006
        %1008 = vrot.lane.b32.xlu0 %v213, 112
        %v1009 = vpop.permute.xlu0 %1008
        %1010 = vrot.lane.b32.xlu0 %v214, 112
        %v1011 = vpop.permute.xlu0 %1010
        %1012 = vrot.lane.b32.xlu0 %v215, 112
        %v1013 = vpop.permute.xlu0 %1012
        %1014 = vrot.lane.b32.xlu0 %v216, 112
        %v1015 = vpop.permute.xlu0 %1014
        %1016 = vrot.lane.b32.xlu0 %v217, 112
        %v1017 = vpop.permute.xlu0 %1016
        %1018 = vrot.lane.b32.xlu0 %v218, 112
        %v1019 = vpop.permute.xlu0 %1018
        %1020 = vrot.lane.b32.xlu0 %v219, 112
        %v1021 = vpop.permute.xlu0 %1020
        %1022 = vrot.lane.b32.xlu0 %v220, 112
        %v1023 = vpop.permute.xlu0 %1022
        %1024 = vrot.lane.b32.xlu0 %v221, 112
        %v1025 = vpop.permute.xlu0 %1024
        %1026 = vrot.lane.b32.xlu0 %v222, 112
        %v1027 = vpop.permute.xlu0 %1026
        %1028 = vrot.lane.b32.xlu0 %v223, 112
        %v1029 = vpop.permute.xlu0 %1028
        %1030 = vrot.lane.b32.xlu0 %v224, 112
        %v1031 = vpop.permute.xlu0 %1030
        %1032 = vrot.lane.b32.xlu0 %v225, 112
        %v1033 = vpop.permute.xlu0 %1032
        %1034 = vrot.lane.b32.xlu0 %v226, 112
        %v1035 = vpop.permute.xlu0 %1034
        %1036 = vrot.lane.b32.xlu0 %v227, 112
        %v1037 = vpop.permute.xlu0 %1036
        %1038 = vrot.lane.b32.xlu0 %v228, 112
        %v1039 = vpop.permute.xlu0 %1038
        %1040 = vrot.lane.b32.xlu0 %v229, 112
        %v1041 = vpop.permute.xlu0 %1040
        %1042 = vrot.lane.b32.xlu0 %v230, 112
        %v1043 = vpop.permute.xlu0 %1042
        %1044 = vrot.lane.b32.xlu0 %v231, 112
        %v1045 = vpop.permute.xlu0 %1044
        %1046 = vrot.lane.b32.xlu0 %v232, 112
        %v1047 = vpop.permute.xlu0 %1046
        %1048 = vrot.lane.b32.xlu0 %v233, 112
        %v1049 = vpop.permute.xlu0 %1048
        %1050 = vrot.lane.b32.xlu0 %v234, 112
        %v1051 = vpop.permute.xlu0 %1050
        %1052 = vrot.lane.b32.xlu0 %v235, 112
        %v1053 = vpop.permute.xlu0 %1052
        %1054 = vrot.lane.b32.xlu0 %v236, 112
        %v1055 = vpop.permute.xlu0 %1054
        %1056 = vrot.lane.b32.xlu0 %v237, 112
        %v1057 = vpop.permute.xlu0 %1056
        %1058 = vrot.lane.b32.xlu0 %v238, 112
        %v1059 = vpop.permute.xlu0 %1058
        %1060 = vrot.lane.b32.xlu0 %v239, 112
        %v1061 = vpop.permute.xlu0 %1060
        %1062 = vrot.lane.b32.xlu0 %v240, 112
        %v1063 = vpop.permute.xlu0 %1062
        %1064 = vrot.lane.b32.xlu0 %v241, 112
        %v1065 = vpop.permute.xlu0 %1064
        %1066 = vrot.lane.b32.xlu0 %v242, 112
        %v1067 = vpop.permute.xlu0 %1066
        %1068 = vrot.lane.b32.xlu0 %v243, 112
        %v1069 = vpop.permute.xlu0 %1068
        %1070 = vrot.lane.b32.xlu0 %v244, 112
        %v1071 = vpop.permute.xlu0 %1070
        %vm1072 = vcmask 56320
        %v1073 = vsel %vm1072, %v977, 0
        %v1075 = vsel %vm1072, %v979, 0
        %v1077 = vsel %vm1072, %v981, 0
        %v1079 = vsel %vm1072, %v983, 0
        %v1081 = vsel %vm1072, %v985, 0
        %v1083 = vsel %vm1072, %v987, 0
        %v1085 = vsel %vm1072, %v989, 0
        %v1087 = vsel %vm1072, %v991, 0
        %v1089 = vsel %vm1072, %v993, 0
        %v1091 = vsel %vm1072, %v995, 0
        %v1093 = vsel %vm1072, %v997, 0
        %v1095 = vsel %vm1072, %v999, 0
        %v1097 = vsel %vm1072, %v1001, 0
        %v1099 = vsel %vm1072, %v1003, 0
        %v1101 = vsel %vm1072, %v1005, 0
        %v1103 = vsel %vm1072, %v1007, 0
        %v1105 = vsel %vm1072, %v1009, 0
        %v1107 = vsel %vm1072, %v1011, 0
        %v1109 = vsel %vm1072, %v1013, 0
        %v1111 = vsel %vm1072, %v1015, 0
        %v1113 = vsel %vm1072, %v1017, 0
        %v1115 = vsel %vm1072, %v1019, 0
        %v1117 = vsel %vm1072, %v1021, 0
        %v1119 = vsel %vm1072, %v1023, 0
        %v1121 = vsel %vm1072, %v1025, 0
        %v1123 = vsel %vm1072, %v1027, 0
        %v1125 = vsel %vm1072, %v1029, 0
        %v1127 = vsel %vm1072, %v1031, 0
        %v1129 = vsel %vm1072, %v1033, 0
        %v1131 = vsel %vm1072, %v1035, 0
        %v1133 = vsel %vm1072, %v1037, 0
        %v1135 = vsel %vm1072, %v1039, 0
        %v1137 = vsel %vm1072, %v1041, 0
        %v1139 = vsel %vm1072, %v1043, 0
        %v1141 = vsel %vm1072, %v1045, 0
        %v1143 = vsel %vm1072, %v1047, 0
        %v1145 = vsel %vm1072, %v1049, 0
        %v1147 = vsel %vm1072, %v1051, 0
        %v1149 = vsel %vm1072, %v1053, 0
        %v1151 = vsel %vm1072, %v1055, 0
        %v1153 = vsel %vm1072, %v1057, 0
        %v1155 = vsel %vm1072, %v1059, 0
        %v1157 = vsel %vm1072, %v1061, 0
        %v1159 = vsel %vm1072, %v1063, 0
        %v1161 = vsel %vm1072, %v1065, 0
        %v1163 = vsel %vm1072, %v1067, 0
        %v1165 = vsel %vm1072, %v1069, 0
        %v1167 = vsel %vm1072, %v1071, 0
        %1169 = vmatprep.subr.mxu0 0.0
        %1170 = vmatpush1.xpose.msra.mxu0 %v1105
        %1171 = vmatprep.subr.mxu0 0.0
        %1172 = vmatpush1.xpose.msra.mxu0 %v1107
        %1173 = vmatprep.subr.mxu0 0.0
        %1174 = vmatpush1.xpose.msra.mxu0 %v1109
        %1175 = vmatprep.subr.mxu0 0.0
        %1176 = vmatpush1.xpose.msra.mxu0 %v1111
        %1177 = vmatprep.subr.mxu0 0.0
        %1178 = vmatpush1.xpose.msra.mxu0 %v1113
        %1179 = vmatprep.subr.mxu0 0.0
        %1180 = vmatpush1.xpose.msra.mxu0 %v1115
        %1181 = vmatprep.subr.mxu0 0.0
        %1182 = vmatpush1.xpose.msra.mxu0 %v1117
        %1183 = vmatprep.subr.mxu0 0.0
        %1184 = vmatpush1.xpose.msra.mxu0 %v1119
        %1185 = vmatprep.subr.mxu0 0.0
        %1186 = vmatpush1.xpose.msra.mxu0 %v1121
        %1187 = vmatprep.subr.mxu0 0.0
        %1188 = vmatpush1.xpose.msra.mxu0 %v1123
        %1189 = vmatprep.subr.mxu0 0.0
        %1190 = vmatpush1.xpose.msra.mxu0 %v1125
        %1191 = vmatprep.subr.mxu0 0.0
        %1192 = vmatpush1.xpose.msra.mxu0 %v1127
        %1193 = vmatprep.subr.mxu0 0.0
        %1194 = vmatpush1.xpose.msra.mxu0 %v1129
        %1195 = vmatprep.subr.mxu0 0.0
        %1196 = vmatpush1.xpose.msra.mxu0 %v1131
        %1197 = vmatprep.subr.mxu0 0.0
        %1198 = vmatpush1.xpose.msra.mxu0 %v1133
        %1199 = vmatprep.subr.mxu0 0.0
        %1200 = vmatpush1.xpose.msra.mxu0 %v1135
        %1201 = vmatprep.subr.mxu0 0.0
        %1202 = vmatpush1.xpose.msra.mxu0 %v1137
        %1203 = vmatprep.subr.mxu0 0.0
        %1204 = vmatpush1.xpose.msra.mxu0 %v1139
        %1205 = vmatprep.subr.mxu0 0.0
        %1206 = vmatpush1.xpose.msra.mxu0 %v1141
        %1207 = vmatprep.subr.mxu0 0.0
        %1208 = vmatpush1.xpose.msra.mxu0 %v1143
        %1209 = vmatprep.subr.mxu0 0.0
        %1210 = vmatpush1.xpose.msra.mxu0 %v1145
        %1211 = vmatprep.subr.mxu0 0.0
        %1212 = vmatpush1.xpose.msra.mxu0 %v1147
        %1213 = vmatprep.subr.mxu0 0.0
        %1214 = vmatpush1.xpose.msra.mxu0 %v1149
        %1215 = vmatprep.subr.mxu0 0.0
        %1216 = vmatpush1.xpose.msra.mxu0 %v1151
        %1217 = vmatprep.subr.mxu0 0.0
        %1218 = vmatpush1.xpose.msra.mxu0 %v1153
        %1219 = vmatprep.subr.mxu0 0.0
        %1220 = vmatpush1.xpose.msra.mxu0 %v1155
        %1221 = vmatprep.subr.mxu0 0.0
        %1222 = vmatpush1.xpose.msra.mxu0 %v1157
        %1223 = vmatprep.subr.mxu0 0.0
        %1224 = vmatpush1.xpose.msra.mxu0 %v1159
        %1225 = vmatprep.subr.mxu0 0.0
        %1226 = vmatpush1.xpose.msra.mxu0 %v1161
        %1227 = vmatprep.subr.mxu0 0.0
        %1228 = vmatpush1.xpose.msra.mxu0 %v1163
        %1229 = vmatprep.subr.mxu0 0.0
        %1230 = vmatpush1.xpose.msra.mxu0 %v1165
        %1231 = vmatprep.subr.mxu0 0.0
        %1232 = vmatpush1.xpose.msra.mxu0 %v1167
        %1233 = vmatprep.mubr.f32.mxu0 0.0
        %1234 = vmatmul.mubr.f32.gmra.mrb[0].mxu0 %v1073
        %v1235 = vpop.f32.mrb[0].mxu0
        %v1236 = vadd.f32 0.0, %v1235
        %v1237 = vpop.f32.mrb[0].mxu0
        %v1238 = vadd.f32 0.0, %v1237
        %1239 = vmatprep.mubr.f32.mxu0 0.0
        %1240 = vmatmul.mubr.f32.gmra.mrb[0].mxu0 %v1075
        %v1241 = vpop.f32.mrb[0].mxu0
        %v1242 = vadd.f32 0.0, %v1241
        %v1243 = vpop.f32.mrb[0].mxu0
        %v1244 = vadd.f32 0.0, %v1243
        %1245 = vmatprep.mubr.f32.mxu0 0.0
        %1246 = vmatmul.mubr.f32.gmra.mrb[0].mxu0 %v1077
        %v1247 = vpop.f32.mrb[0].mxu0
        %v1248 = vadd.f32 0.0, %v1247
        %v1249 = vpop.f32.mrb[0].mxu0
        %v1250 = vadd.f32 0.0, %v1249
        %1251 = vmatprep.mubr.f32.mxu0 0.0
        %1252 = vmatmul.mubr.f32.gmra.mrb[0].mxu0 %v1079
        %v1253 = vpop.f32.mrb[0].mxu0
        %v1254 = vadd.f32 0.0, %v1253
        %v1255 = vpop.f32.mrb[0].mxu0
        %v1256 = vadd.f32 0.0, %v1255
        %1257 = vmatprep.mubr.f32.mxu0 0.0
        %1258 = vmatmul.mubr.f32.gmra.mrb[0].mxu0 %v1081
        %v1259 = vpop.f32.mrb[0].mxu0
        %v1260 = vadd.f32 0.0, %v1259
        %v1261 = vpop.f32.mrb[0].mxu0
        %v1262 = vadd.f32 0.0, %v1261
        %1263 = vmatprep.mubr.f32.mxu0 0.0
        %1264 = vmatmul.mubr.f32.gmra.mrb[0].mxu0 %v1083
        %v1265 = vpop.f32.mrb[0].mxu0
        %v1266 = vadd.f32 0.0, %v1265
        %v1267 = vpop.f32.mrb[0].mxu0
        %v1268 = vadd.f32 0.0, %v1267
        %1269 = vmatprep.mubr.f32.mxu0 0.0
        %1270 = vmatmul.mubr.f32.gmra.mrb[0].mxu0 %v1085
        %v1271 = vpop.f32.mrb[0].mxu0
        %v1272 = vadd.f32 0.0, %v1271
        %v1273 = vpop.f32.mrb[0].mxu0
        %v1274 = vadd.f32 0.0, %v1273
        %1275 = vmatprep.mubr.f32.mxu0 0.0
        %1276 = vmatmul.mubr.f32.gmra.mrb[0].mxu0 %v1087
        %v1277 = vpop.f32.mrb[0].mxu0
        %v1278 = vadd.f32 0.0, %v1277
        %v1279 = vpop.f32.mrb[0].mxu0
        %v1280 = vadd.f32 0.0, %v1279
        %1281 = vmatprep.mubr.f32.mxu0 0.0
        %1282 = vmatmul.mubr.f32.gmra.mrb[0].mxu0 %v1089
        %v1283 = vpop.f32.mrb[0].mxu0
        %v1284 = vadd.f32 0.0, %v1283
        %v1285 = vpop.f32.mrb[0].mxu0
        %v1286 = vadd.f32 0.0, %v1285
        %1287 = vmatprep.mubr.f32.mxu0 0.0
        %1288 = vmatmul.mubr.f32.gmra.mrb[0].mxu0 %v1091
        %v1289 = vpop.f32.mrb[0].mxu0
        %v1290 = vadd.f32 0.0, %v1289
        %v1291 = vpop.f32.mrb[0].mxu0
        %v1292 = vadd.f32 0.0, %v1291
        %1293 = vmatprep.mubr.f32.mxu0 0.0
        %1294 = vmatmul.mubr.f32.gmra.mrb[0].mxu0 %v1093
        %v1295 = vpop.f32.mrb[0].mxu0
        %v1296 = vadd.f32 0.0, %v1295
        %v1297 = vpop.f32.mrb[0].mxu0
        %v1298 = vadd.f32 0.0, %v1297
        %1299 = vmatprep.mubr.f32.mxu0 0.0
        %1300 = vmatmul.mubr.f32.gmra.mrb[0].mxu0 %v1095
        %v1301 = vpop.f32.mrb[0].mxu0
        %v1302 = vadd.f32 0.0, %v1301
        %v1303 = vpop.f32.mrb[0].mxu0
        %v1304 = vadd.f32 0.0, %v1303
        %1305 = vmatprep.mubr.f32.mxu0 0.0
        %1306 = vmatmul.mubr.f32.gmra.mrb[0].mxu0 %v1097
        %v1307 = vpop.f32.mrb[0].mxu0
        %v1308 = vadd.f32 0.0, %v1307
        %v1309 = vpop.f32.mrb[0].mxu0
        %v1310 = vadd.f32 0.0, %v1309
        %1311 = vmatprep.mubr.f32.mxu0 0.0
        %1312 = vmatmul.mubr.f32.gmra.mrb[0].mxu0 %v1099
        %v1313 = vpop.f32.mrb[0].mxu0
        %v1314 = vadd.f32 0.0, %v1313
        %v1315 = vpop.f32.mrb[0].mxu0
        %v1316 = vadd.f32 0.0, %v1315
        %1317 = vmatprep.mubr.f32.mxu0 0.0
        %1318 = vmatmul.mubr.f32.gmra.mrb[0].mxu0 %v1101
        %v1319 = vpop.f32.mrb[0].mxu0
        %v1320 = vadd.f32 0.0, %v1319
        %v1321 = vpop.f32.mrb[0].mxu0
        %v1322 = vadd.f32 0.0, %v1321
        %1323 = vmatprep.mubr.f32.mxu0 0.0
        %1324 = vmatmul.mubr.f32.gmra.mrb[0].mxu0 %v1103
        %v1325 = vpop.f32.mrb[0].mxu0
        %v1326 = vadd.f32 0.0, %v1325
        %v1327 = vpop.f32.mrb[0].mxu0
        %v1328 = vadd.f32 0.0, %v1327
        %1329 = vdwg.mxu0
        %1330 = vrot.lane.b32.xlu0 %v197, 105
        %v1331 = vpop.permute.xlu0 %1330
        %1332 = vrot.lane.b32.xlu0 %v198, 105
        %v1333 = vpop.permute.xlu0 %1332
        %1334 = vrot.lane.b32.xlu0 %v199, 105
        %v1335 = vpop.permute.xlu0 %1334
        %1336 = vrot.lane.b32.xlu0 %v200, 105
        %v1337 = vpop.permute.xlu0 %1336
        %1338 = vrot.lane.b32.xlu0 %v201, 105
        %v1339 = vpop.permute.xlu0 %1338
        %1340 = vrot.lane.b32.xlu0 %v202, 105
        %v1341 = vpop.permute.xlu0 %1340
        %1342 = vrot.lane.b32.xlu0 %v203, 105
        %v1343 = vpop.permute.xlu0 %1342
        %1344 = vrot.lane.b32.xlu0 %v204, 105
        %v1345 = vpop.permute.xlu0 %1344
        %1346 = vrot.lane.b32.xlu0 %v205, 105
        %v1347 = vpop.permute.xlu0 %1346
        %1348 = vrot.lane.b32.xlu0 %v206, 105
        %v1349 = vpop.permute.xlu0 %1348
        %1350 = vrot.lane.b32.xlu0 %v207, 105
        %v1351 = vpop.permute.xlu0 %1350
        %1352 = vrot.lane.b32.xlu0 %v208, 105
        %v1353 = vpop.permute.xlu0 %1352
        %1354 = vrot.lane.b32.xlu0 %v209, 105
        %v1355 = vpop.permute.xlu0 %1354
        %1356 = vrot.lane.b32.xlu0 %v210, 105
        %v1357 = vpop.permute.xlu0 %1356
        %1358 = vrot.lane.b32.xlu0 %v211, 105
        %v1359 = vpop.permute.xlu0 %1358
        %1360 = vrot.lane.b32.xlu0 %v212, 105
        %v1361 = vpop.permute.xlu0 %1360
        %1362 = vrot.lane.b32.xlu0 %v213, 105
        %v1363 = vpop.permute.xlu0 %1362
        %1364 = vrot.lane.b32.xlu0 %v214, 105
        %v1365 = vpop.permute.xlu0 %1364
        %1366 = vrot.lane.b32.xlu0 %v215, 105
        %v1367 = vpop.permute.xlu0 %1366
        %1368 = vrot.lane.b32.xlu0 %v216, 105
        %v1369 = vpop.permute.xlu0 %1368
        %1370 = vrot.lane.b32.xlu0 %v217, 105
        %v1371 = vpop.permute.xlu0 %1370
        %1372 = vrot.lane.b32.xlu0 %v218, 105
        %v1373 = vpop.permute.xlu0 %1372
        %1374 = vrot.lane.b32.xlu0 %v219, 105
        %v1375 = vpop.permute.xlu0 %1374
        %1376 = vrot.lane.b32.xlu0 %v220, 105
        %v1377 = vpop.permute.xlu0 %1376
        %1378 = vrot.lane.b32.xlu0 %v221, 105
        %v1379 = vpop.permute.xlu0 %1378
        %1380 = vrot.lane.b32.xlu0 %v222, 105
        %v1381 = vpop.permute.xlu0 %1380
        %1382 = vrot.lane.b32.xlu0 %v223, 105
        %v1383 = vpop.permute.xlu0 %1382
        %1384 = vrot.lane.b32.xlu0 %v224, 105
        %v1385 = vpop.permute.xlu0 %1384
        %1386 = vrot.lane.b32.xlu0 %v225, 105
        %v1387 = vpop.permute.xlu0 %1386
        %1388 = vrot.lane.b32.xlu0 %v226, 105
        %v1389 = vpop.permute.xlu0 %1388
        %1390 = vrot.lane.b32.xlu0 %v227, 105
        %v1391 = vpop.permute.xlu0 %1390
        %1392 = vrot.lane.b32.xlu0 %v228, 105
        %v1393 = vpop.permute.xlu0 %1392
        %1394 = vrot.lane.b32.xlu0 %v229, 105
        %v1395 = vpop.permute.xlu0 %1394
        %1396 = vrot.lane.b32.xlu0 %v230, 105
        %v1397 = vpop.permute.xlu0 %1396
        %1398 = vrot.lane.b32.xlu0 %v231, 105
        %v1399 = vpop.permute.xlu0 %1398
        %1400 = vrot.lane.b32.xlu0 %v232, 105
        %v1401 = vpop.permute.xlu0 %1400
        %1402 = vrot.lane.b32.xlu0 %v233, 105
        %v1403 = vpop.permute.xlu0 %1402
        %1404 = vrot.lane.b32.xlu0 %v234, 105
        %v1405 = vpop.permute.xlu0 %1404
        %1406 = vrot.lane.b32.xlu0 %v235, 105
        %v1407 = vpop.permute.xlu0 %1406
        %1408 = vrot.lane.b32.xlu0 %v236, 105
        %v1409 = vpop.permute.xlu0 %1408
        %1410 = vrot.lane.b32.xlu0 %v237, 105
        %v1411 = vpop.permute.xlu0 %1410
        %1412 = vrot.lane.b32.xlu0 %v238, 105
        %v1413 = vpop.permute.xlu0 %1412
        %1414 = vrot.lane.b32.xlu0 %v239, 105
        %v1415 = vpop.permute.xlu0 %1414
        %1416 = vrot.lane.b32.xlu0 %v240, 105
        %v1417 = vpop.permute.xlu0 %1416
        %1418 = vrot.lane.b32.xlu0 %v241, 105
        %v1419 = vpop.permute.xlu0 %1418
        %1420 = vrot.lane.b32.xlu0 %v242, 105
        %v1421 = vpop.permute.xlu0 %1420
        %1422 = vrot.lane.b32.xlu0 %v243, 105
        %v1423 = vpop.permute.xlu0 %1422
        %1424 = vrot.lane.b32.xlu0 %v244, 105
        %v1425 = vpop.permute.xlu0 %1424
        %v1426 = vsel %vm1072, %v1331, 0
        %v1428 = vsel %vm1072, %v1333, 0
        %v1430 = vsel %vm1072, %v1335, 0
        %v1432 = vsel %vm1072, %v1337, 0
        %v1434 = vsel %vm1072, %v1339, 0
        %v1436 = vsel %vm1072, %v1341, 0
        %v1438 = vsel %vm1072, %v1343, 0
        %v1440 = vsel %vm1072, %v1345, 0
        %v1442 = vsel %vm1072, %v1347, 0
        %v1444 = vsel %vm1072, %v1349, 0
        %v1446 = vsel %vm1072, %v1351, 0
        %v1448 = vsel %vm1072, %v1353, 0
        %v1450 = vsel %vm1072, %v1355, 0
        %v1452 = vsel %vm1072, %v1357, 0
        %v1454 = vsel %vm1072, %v1359, 0
        %v1456 = vsel %vm1072, %v1361, 0
        %v1458 = vsel %vm1072, %v1363, 0
        %v1460 = vsel %vm1072, %v1365, 0
        %v1462 = vsel %vm1072, %v1367, 0
        %v1464 = vsel %vm1072, %v1369, 0
        %v1466 = vsel %vm1072, %v1371, 0
        %v1468 = vsel %vm1072, %v1373, 0
        %v1470 = vsel %vm1072, %v1375, 0
        %v1472 = vsel %vm1072, %v1377, 0
        %v1474 = vsel %vm1072, %v1379, 0
        %v1476 = vsel %vm1072, %v1381, 0
        %v1478 = vsel %vm1072, %v1383, 0
        %v1480 = vsel %vm1072, %v1385, 0
        %v1482 = vsel %vm1072, %v1387, 0
        %v1484 = vsel %vm1072, %v1389, 0
        %v1486 = vsel %vm1072, %v1391, 0
        %v1488 = vsel %vm1072, %v1393, 0
        %v1490 = vsel %vm1072, %v1395, 0
        %v1492 = vsel %vm1072, %v1397, 0
        %v1494 = vsel %vm1072, %v1399, 0
        %v1496 = vsel %vm1072, %v1401, 0
        %v1498 = vsel %vm1072, %v1403, 0
        %v1500 = vsel %vm1072, %v1405, 0
        %v1502 = vsel %vm1072, %v1407, 0
        %v1504 = vsel %vm1072, %v1409, 0
        %v1506 = vsel %vm1072, %v1411, 0
        %v1508 = vsel %vm1072, %v1413, 0
        %v1510 = vsel %vm1072, %v1415, 0
        %v1512 = vsel %vm1072, %v1417, 0
        %v1514 = vsel %vm1072, %v1419, 0
        %v1516 = vsel %vm1072, %v1421, 0
        %v1518 = vsel %vm1072, %v1423, 0
        %v1520 = vsel %vm1072, %v1425, 0
        %1522 = vmatprep.subr.mxu0 0.0
        %1523 = vmatpush1.xpose.msra.mxu0 %v1458
        %1524 = vmatprep.subr.mxu0 0.0
        %1525 = vmatpush1.xpose.msra.mxu0 %v1460
        %1526 = vmatprep.subr.mxu0 0.0
        %1527 = vmatpush1.xpose.msra.mxu0 %v1462
        %1528 = vmatprep.subr.mxu0 0.0
        %1529 = vmatpush1.xpose.msra.mxu0 %v1464
        %1530 = vmatprep.subr.mxu0 0.0
        %1531 = vmatpush1.xpose.msra.mxu0 %v1466
        %1532 = vmatprep.subr.mxu0 0.0
        %1533 = vmatpush1.xpose.msra.mxu0 %v1468
        %1534 = vmatprep.subr.mxu0 0.0
        %1535 = vmatpush1.xpose.msra.mxu0 %v1470
        %1536 = vmatprep.subr.mxu0 0.0
        %1537 = vmatpush1.xpose.msra.mxu0 %v1472
        %1538 = vmatprep.subr.mxu0 0.0
        %1539 = vmatpush1.xpose.msra.mxu0 %v1474
        %1540 = vmatprep.subr.mxu0 0.0
        %1541 = vmatpush1.xpose.msra.mxu0 %v1476
        %1542 = vmatprep.subr.mxu0 0.0
        %1543 = vmatpush1.xpose.msra.mxu0 %v1478
        %1544 = vmatprep.subr.mxu0 0.0
        %1545 = vmatpush1.xpose.msra.mxu0 %v1480
        %1546 = vmatprep.subr.mxu0 0.0
        %1547 = vmatpush1.xpose.msra.mxu0 %v1482
        %1548 = vmatprep.subr.mxu0 0.0
        %1549 = vmatpush1.xpose.msra.mxu0 %v1484
        %1550 = vmatprep.subr.mxu0 0.0
        %1551 = vmatpush1.xpose.msra.mxu0 %v1486
        %1552 = vmatprep.subr.mxu0 0.0
        %1553 = vmatpush1.xpose.msra.mxu0 %v1488
        %1554 = vmatprep.subr.mxu0 0.0
        %1555 = vmatpush1.xpose.msra.mxu0 %v1490
        %1556 = vmatprep.subr.mxu0 0.0
        %1557 = vmatpush1.xpose.msra.mxu0 %v1492
        %1558 = vmatprep.subr.mxu0 0.0
        %1559 = vmatpush1.xpose.msra.mxu0 %v1494
        %1560 = vmatprep.subr.mxu0 0.0
        %1561 = vmatpush1.xpose.msra.mxu0 %v1496
        %1562 = vmatprep.subr.mxu0 0.0
        %1563 = vmatpush1.xpose.msra.mxu0 %v1498
        %1564 = vmatprep.subr.mxu0 0.0
        %1565 = vmatpush1.xpose.msra.mxu0 %v1500
        %1566 = vmatprep.subr.mxu0 0.0
        %1567 = vmatpush1.xpose.msra.mxu0 %v1502
        %1568 = vmatprep.subr.mxu0 0.0
        %1569 = vmatpush1.xpose.msra.mxu0 %v1504
        %1570 = vmatprep.subr.mxu0 0.0
        %1571 = vmatpush1.xpose.msra.mxu0 %v1506
        %1572 = vmatprep.subr.mxu0 0.0
        %1573 = vmatpush1.xpose.msra.mxu0 %v1508
        %1574 = vmatprep.subr.mxu0 0.0
        %1575 = vmatpush1.xpose.msra.mxu0 %v1510
        %1576 = vmatprep.subr.mxu0 0.0
        %1577 = vmatpush1.xpose.msra.mxu0 %v1512
        %1578 = vmatprep.subr.mxu0 0.0
        %1579 = vmatpush1.xpose.msra.mxu0 %v1514
        %1580 = vmatprep.subr.mxu0 0.0
        %1581 = vmatpush1.xpose.msra.mxu0 %v1516
        %1582 = vmatprep.subr.mxu0 0.0
        %1583 = vmatpush1.xpose.msra.mxu0 %v1518
        %1584 = vmatprep.subr.mxu0 0.0
        %1585 = vmatpush1.xpose.msra.mxu0 %v1520
        %1586 = vmatprep.mubr.f32.mxu0 0.0
        %1587 = vmatmul.mubr.f32.gmra.mrb[0].mxu0 %v1426
        %v1588 = vpop.f32.mrb[0].mxu0
        %v1589 = vadd.f32 0.0, %v1588
        %v1590 = vpop.f32.mrb[0].mxu0
        %v1591 = vadd.f32 0.0, %v1590
        %1592 = vmatprep.mubr.f32.mxu0 0.0
        %1593 = vmatmul.mubr.f32.gmra.mrb[0].mxu0 %v1428
        %v1594 = vpop.f32.mrb[0].mxu0
        %v1595 = vadd.f32 0.0, %v1594
        %v1596 = vpop.f32.mrb[0].mxu0
        %v1597 = vadd.f32 0.0, %v1596
        %1598 = vmatprep.mubr.f32.mxu0 0.0
        %1599 = vmatmul.mubr.f32.gmra.mrb[0].mxu0 %v1430
        %v1600 = vpop.f32.mrb[0].mxu0
        %v1601 = vadd.f32 0.0, %v1600
        %v1602 = vpop.f32.mrb[0].mxu0
        %v1603 = vadd.f32 0.0, %v1602
        %1604 = vmatprep.mubr.f32.mxu0 0.0
        %1605 = vmatmul.mubr.f32.gmra.mrb[0].mxu0 %v1432
        %v1606 = vpop.f32.mrb[0].mxu0
        %v1607 = vadd.f32 0.0, %v1606
        %v1608 = vpop.f32.mrb[0].mxu0
        %v1609 = vadd.f32 0.0, %v1608
        %1610 = vmatprep.mubr.f32.mxu0 0.0
        %1611 = vmatmul.mubr.f32.gmra.mrb[0].mxu0 %v1434
        %v1612 = vpop.f32.mrb[0].mxu0
        %v1613 = vadd.f32 0.0, %v1612
        %v1614 = vpop.f32.mrb[0].mxu0
        %v1615 = vadd.f32 0.0, %v1614
        %1616 = vmatprep.mubr.f32.mxu0 0.0
        %1617 = vmatmul.mubr.f32.gmra.mrb[0].mxu0 %v1436
        %v1618 = vpop.f32.mrb[0].mxu0
        %v1619 = vadd.f32 0.0, %v1618
        %v1620 = vpop.f32.mrb[0].mxu0
        %v1621 = vadd.f32 0.0, %v1620
        %1622 = vmatprep.mubr.f32.mxu0 0.0
        %1623 = vmatmul.mubr.f32.gmra.mrb[0].mxu0 %v1438
        %v1624 = vpop.f32.mrb[0].mxu0
        %v1625 = vadd.f32 0.0, %v1624
        %v1626 = vpop.f32.mrb[0].mxu0
        %v1627 = vadd.f32 0.0, %v1626
        %1628 = vmatprep.mubr.f32.mxu0 0.0
        %1629 = vmatmul.mubr.f32.gmra.mrb[0].mxu0 %v1440
        %v1630 = vpop.f32.mrb[0].mxu0
        %v1631 = vadd.f32 0.0, %v1630
        %v1632 = vpop.f32.mrb[0].mxu0
        %v1633 = vadd.f32 0.0, %v1632
        %1634 = vmatprep.mubr.f32.mxu0 0.0
        %1635 = vmatmul.mubr.f32.gmra.mrb[0].mxu0 %v1442
        %v1636 = vpop.f32.mrb[0].mxu0
        %v1637 = vadd.f32 0.0, %v1636
        %v1638 = vpop.f32.mrb[0].mxu0
        %v1639 = vadd.f32 0.0, %v1638
        %1640 = vmatprep.mubr.f32.mxu0 0.0
        %1641 = vmatmul.mubr.f32.gmra.mrb[0].mxu0 %v1444
        %v1642 = vpop.f32.mrb[0].mxu0
        %v1643 = vadd.f32 0.0, %v1642
        %v1644 = vpop.f32.mrb[0].mxu0
        %v1645 = vadd.f32 0.0, %v1644
        %1646 = vmatprep.mubr.f32.mxu0 0.0
        %1647 = vmatmul.mubr.f32.gmra.mrb[0].mxu0 %v1446
        %v1648 = vpop.f32.mrb[0].mxu0
        %v1649 = vadd.f32 0.0, %v1648
        %v1650 = vpop.f32.mrb[0].mxu0
        %v1651 = vadd.f32 0.0, %v1650
        %1652 = vmatprep.mubr.f32.mxu0 0.0
        %1653 = vmatmul.mubr.f32.gmra.mrb[0].mxu0 %v1448
        %v1654 = vpop.f32.mrb[0].mxu0
        %v1655 = vadd.f32 0.0, %v1654
        %v1656 = vpop.f32.mrb[0].mxu0
        %v1657 = vadd.f32 0.0, %v1656
        %1658 = vmatprep.mubr.f32.mxu0 0.0
        %1659 = vmatmul.mubr.f32.gmra.mrb[0].mxu0 %v1450
        %v1660 = vpop.f32.mrb[0].mxu0
        %v1661 = vadd.f32 0.0, %v1660
        %v1662 = vpop.f32.mrb[0].mxu0
        %v1663 = vadd.f32 0.0, %v1662
        %1664 = vmatprep.mubr.f32.mxu0 0.0
        %1665 = vmatmul.mubr.f32.gmra.mrb[0].mxu0 %v1452
        %v1666 = vpop.f32.mrb[0].mxu0
        %v1667 = vadd.f32 0.0, %v1666
        %v1668 = vpop.f32.mrb[0].mxu0
        %v1669 = vadd.f32 0.0, %v1668
        %1670 = vmatprep.mubr.f32.mxu0 0.0
        %1671 = vmatmul.mubr.f32.gmra.mrb[0].mxu0 %v1454
        %v1672 = vpop.f32.mrb[0].mxu0
        %v1673 = vadd.f32 0.0, %v1672
        %v1674 = vpop.f32.mrb[0].mxu0
        %v1675 = vadd.f32 0.0, %v1674
        %1676 = vmatprep.mubr.f32.mxu0 0.0
        %1677 = vmatmul.mubr.f32.gmra.mrb[0].mxu0 %v1456
        %v1678 = vpop.f32.mrb[0].mxu0
        %v1679 = vadd.f32 0.0, %v1678
        %v1680 = vpop.f32.mrb[0].mxu0
        %v1681 = vadd.f32 0.0, %v1680
        %1682 = vdwg.mxu0
        %v1683 = vmax.f32 %v529, %v882
        %v1684 = vmax.f32 %v531, %v884
        %v1685 = vmax.f32 %v535, %v888
        %v1686 = vmax.f32 %v537, %v890
        %v1687 = vmax.f32 %v541, %v894
        %v1688 = vmax.f32 %v543, %v896
        %v1689 = vmax.f32 %v547, %v900
        %v1690 = vmax.f32 %v549, %v902
        %v1691 = vmax.f32 %v553, %v906
        %v1692 = vmax.f32 %v555, %v908
        %v1693 = vmax.f32 %v559, %v912
        %v1694 = vmax.f32 %v561, %v914
        %v1695 = vmax.f32 %v565, %v918
        %v1696 = vmax.f32 %v567, %v920
        %v1697 = vmax.f32 %v571, %v924
        %v1698 = vmax.f32 %v573, %v926
        %v1699 = vmax.f32 %v577, %v930
        %v1700 = vmax.f32 %v579, %v932
        %v1701 = vmax.f32 %v583, %v936
        %v1702 = vmax.f32 %v585, %v938
        %v1703 = vmax.f32 %v589, %v942
        %v1704 = vmax.f32 %v591, %v944
        %v1705 = vmax.f32 %v595, %v948
        %v1706 = vmax.f32 %v597, %v950
        %v1707 = vmax.f32 %v601, %v954
        %v1708 = vmax.f32 %v603, %v956
        %v1709 = vmax.f32 %v607, %v960
        %v1710 = vmax.f32 %v609, %v962
        %v1711 = vmax.f32 %v613, %v966
        %v1712 = vmax.f32 %v615, %v968
        %v1713 = vmax.f32 %v619, %v972
        %v1714 = vmax.f32 %v621, %v974
        %v1715 = vmax.f32 %v1683, %v1236
        %v1716 = vmax.f32 %v1684, %v1238
        %v1717 = vmax.f32 %v1685, %v1242
        %v1718 = vmax.f32 %v1686, %v1244
        %v1719 = vmax.f32 %v1687, %v1248
        %v1720 = vmax.f32 %v1688, %v1250
        %v1721 = vmax.f32 %v1689, %v1254
        %v1722 = vmax.f32 %v1690, %v1256
        %v1723 = vmax.f32 %v1691, %v1260
        %v1724 = vmax.f32 %v1692, %v1262
        %v1725 = vmax.f32 %v1693, %v1266
        %v1726 = vmax.f32 %v1694, %v1268
        %v1727 = vmax.f32 %v1695, %v1272
        %v1728 = vmax.f32 %v1696, %v1274
        %v1729 = vmax.f32 %v1697, %v1278
        %v1730 = vmax.f32 %v1698, %v1280
        %v1731 = vmax.f32 %v1699, %v1284
        %v1732 = vmax.f32 %v1700, %v1286
        %v1733 = vmax.f32 %v1701, %v1290
        %v1734 = vmax.f32 %v1702, %v1292
        %v1735 = vmax.f32 %v1703, %v1296
        %v1736 = vmax.f32 %v1704, %v1298
        %v1737 = vmax.f32 %v1705, %v1302
        %v1738 = vmax.f32 %v1706, %v1304
        %v1739 = vmax.f32 %v1707, %v1308
        %v1740 = vmax.f32 %v1708, %v1310
        %v1741 = vmax.f32 %v1709, %v1314
        %v1742 = vmax.f32 %v1710, %v1316
        %v1743 = vmax.f32 %v1711, %v1320
        %v1744 = vmax.f32 %v1712, %v1322
        %v1745 = vmax.f32 %v1713, %v1326
        %v1746 = vmax.f32 %v1714, %v1328
        %v1747 = vmax.f32 %v1715, %v1589
        %v1748 = vmax.f32 %v1716, %v1591
        %v1749 = vmax.f32 %v1717, %v1595
        %v1750 = vmax.f32 %v1718, %v1597
        %v1751 = vmax.f32 %v1719, %v1601
        %v1752 = vmax.f32 %v1720, %v1603
        %v1753 = vmax.f32 %v1721, %v1607
        %v1754 = vmax.f32 %v1722, %v1609
        %v1755 = vmax.f32 %v1723, %v1613
        %v1756 = vmax.f32 %v1724, %v1615
        %v1757 = vmax.f32 %v1725, %v1619
        %v1758 = vmax.f32 %v1726, %v1621
        %v1759 = vmax.f32 %v1727, %v1625
        %v1760 = vmax.f32 %v1728, %v1627
        %v1761 = vmax.f32 %v1729, %v1631
        %v1762 = vmax.f32 %v1730, %v1633
        %v1763 = vmax.f32 %v1731, %v1637
        %v1764 = vmax.f32 %v1732, %v1639
        %v1765 = vmax.f32 %v1733, %v1643
        %v1766 = vmax.f32 %v1734, %v1645
        %v1767 = vmax.f32 %v1735, %v1649
        %v1768 = vmax.f32 %v1736, %v1651
        %v1769 = vmax.f32 %v1737, %v1655
        %v1770 = vmax.f32 %v1738, %v1657
        %v1771 = vmax.f32 %v1739, %v1661
        %v1772 = vmax.f32 %v1740, %v1663
        %v1773 = vmax.f32 %v1741, %v1667
        %v1774 = vmax.f32 %v1742, %v1669
        %v1775 = vmax.f32 %v1743, %v1673
        %v1776 = vmax.f32 %v1744, %v1675
        %v1777 = vmax.f32 %v1745, %v1679
        %v1778 = vmax.f32 %v1746, %v1681
        %v1779 = vsub.f32 %v529, %v1747
        %v1780 = vsub.f32 %v531, %v1748
        %v1781 = vsub.f32 %v535, %v1749
        %v1782 = vsub.f32 %v537, %v1750
        %v1783 = vsub.f32 %v541, %v1751
        %v1784 = vsub.f32 %v543, %v1752
        %v1785 = vsub.f32 %v547, %v1753
        %v1786 = vsub.f32 %v549, %v1754
        %v1787 = vsub.f32 %v553, %v1755
        %v1788 = vsub.f32 %v555, %v1756
        %v1789 = vsub.f32 %v559, %v1757
        %v1790 = vsub.f32 %v561, %v1758
        %v1791 = vsub.f32 %v565, %v1759
        %v1792 = vsub.f32 %v567, %v1760
        %v1793 = vsub.f32 %v571, %v1761
        %v1794 = vsub.f32 %v573, %v1762
        %v1795 = vsub.f32 %v577, %v1763
        %v1796 = vsub.f32 %v579, %v1764
        %v1797 = vsub.f32 %v583, %v1765
        %v1798 = vsub.f32 %v585, %v1766
        %v1799 = vsub.f32 %v589, %v1767
        %v1800 = vsub.f32 %v591, %v1768
        %v1801 = vsub.f32 %v595, %v1769
        %v1802 = vsub.f32 %v597, %v1770
        %v1803 = vsub.f32 %v601, %v1771
        %v1804 = vsub.f32 %v603, %v1772
        %v1805 = vsub.f32 %v607, %v1773
        %v1806 = vsub.f32 %v609, %v1774
        %v1807 = vsub.f32 %v613, %v1775
        %v1808 = vsub.f32 %v615, %v1776
        %v1809 = vsub.f32 %v619, %v1777
        %v1810 = vsub.f32 %v621, %v1778
        %v1811 = vmul.f32 %v1779, 1.442695
        %v1812 = vpow.pop %v1811
        %v1813 = vmul.f32 %v1780, 1.442695
        %v1814 = vpow.pop %v1813
        %v1815 = vmul.f32 %v1781, 1.442695
        %v1816 = vpow.pop %v1815
        %v1817 = vmul.f32 %v1782, 1.442695
        %v1818 = vpow.pop %v1817
        %v1819 = vmul.f32 %v1783, 1.442695
        %v1820 = vpow.pop %v1819
        %v1821 = vmul.f32 %v1784, 1.442695
        %v1822 = vpow.pop %v1821
        %v1823 = vmul.f32 %v1785, 1.442695
        %v1824 = vpow.pop %v1823
        %v1825 = vmul.f32 %v1786, 1.442695
        %v1826 = vpow.pop %v1825
        %v1827 = vmul.f32 %v1787, 1.442695
        %v1828 = vpow.pop %v1827
        %v1829 = vmul.f32 %v1788, 1.442695
        %v1830 = vpow.pop %v1829
        %v1831 = vmul.f32 %v1789, 1.442695
        %v1832 = vpow.pop %v1831
        %v1833 = vmul.f32 %v1790, 1.442695
        %v1834 = vpow.pop %v1833
        %v1835 = vmul.f32 %v1791, 1.442695
        %v1836 = vpow.pop %v1835
        %v1837 = vmul.f32 %v1792, 1.442695
        %v1838 = vpow.pop %v1837
        %v1839 = vmul.f32 %v1793, 1.442695
        %v1840 = vpow.pop %v1839
        %v1841 = vmul.f32 %v1794, 1.442695
        %v1842 = vpow.pop %v1841
        %v1843 = vmul.f32 %v1795, 1.442695
        %v1844 = vpow.pop %v1843
        %v1845 = vmul.f32 %v1796, 1.442695
        %v1846 = vpow.pop %v1845
        %v1847 = vmul.f32 %v1797, 1.442695
        %v1848 = vpow.pop %v1847
        %v1849 = vmul.f32 %v1798, 1.442695
        %v1850 = vpow.pop %v1849
        %v1851 = vmul.f32 %v1799, 1.442695
        %v1852 = vpow.pop %v1851
        %v1853 = vmul.f32 %v1800, 1.442695
        %v1854 = vpow.pop %v1853
        %v1855 = vmul.f32 %v1801, 1.442695
        %v1856 = vpow.pop %v1855
        %v1857 = vmul.f32 %v1802, 1.442695
        %v1858 = vpow.pop %v1857
        %v1859 = vmul.f32 %v1803, 1.442695
        %v1860 = vpow.pop %v1859
        %v1861 = vmul.f32 %v1804, 1.442695
        %v1862 = vpow.pop %v1861
        %v1863 = vmul.f32 %v1805, 1.442695
        %v1864 = vpow.pop %v1863
        %v1865 = vmul.f32 %v1806, 1.442695
        %v1866 = vpow.pop %v1865
        %v1867 = vmul.f32 %v1807, 1.442695
        %v1868 = vpow.pop %v1867
        %v1869 = vmul.f32 %v1808, 1.442695
        %v1870 = vpow.pop %v1869
        %v1871 = vmul.f32 %v1809, 1.442695
        %v1872 = vpow.pop %v1871
        %v1873 = vmul.f32 %v1810, 1.442695
        %v1874 = vpow.pop %v1873
        %v1875 = vsub.f32 %v882, %v1747
        %v1876 = vsub.f32 %v884, %v1748
        %v1877 = vsub.f32 %v888, %v1749
        %v1878 = vsub.f32 %v890, %v1750
        %v1879 = vsub.f32 %v894, %v1751
        %v1880 = vsub.f32 %v896, %v1752
        %v1881 = vsub.f32 %v900, %v1753
        %v1882 = vsub.f32 %v902, %v1754
        %v1883 = vsub.f32 %v906, %v1755
        %v1884 = vsub.f32 %v908, %v1756
        %v1885 = vsub.f32 %v912, %v1757
        %v1886 = vsub.f32 %v914, %v1758
        %v1887 = vsub.f32 %v918, %v1759
        %v1888 = vsub.f32 %v920, %v1760
        %v1889 = vsub.f32 %v924, %v1761
        %v1890 = vsub.f32 %v926, %v1762
        %v1891 = vsub.f32 %v930, %v1763
        %v1892 = vsub.f32 %v932, %v1764
        %v1893 = vsub.f32 %v936, %v1765
        %v1894 = vsub.f32 %v938, %v1766
        %v1895 = vsub.f32 %v942, %v1767
        %v1896 = vsub.f32 %v944, %v1768
        %v1897 = vsub.f32 %v948, %v1769
        %v1898 = vsub.f32 %v950, %v1770
        %v1899 = vsub.f32 %v954, %v1771
        %v1900 = vsub.f32 %v956, %v1772
        %v1901 = vsub.f32 %v960, %v1773
        %v1902 = vsub.f32 %v962, %v1774
        %v1903 = vsub.f32 %v966, %v1775
        %v1904 = vsub.f32 %v968, %v1776
        %v1905 = vsub.f32 %v972, %v1777
        %v1906 = vsub.f32 %v974, %v1778
        %v1907 = vmul.f32 %v1875, 1.442695
        %v1908 = vpow.pop %v1907
        %v1909 = vmul.f32 %v1876, 1.442695
        %v1910 = vpow.pop %v1909
        %v1911 = vmul.f32 %v1877, 1.442695
        %v1912 = vpow.pop %v1911
        %v1913 = vmul.f32 %v1878, 1.442695
        %v1914 = vpow.pop %v1913
        %v1915 = vmul.f32 %v1879, 1.442695
        %v1916 = vpow.pop %v1915
        %v1917 = vmul.f32 %v1880, 1.442695
        %v1918 = vpow.pop %v1917
        %v1919 = vmul.f32 %v1881, 1.442695
        %v1920 = vpow.pop %v1919
        %v1921 = vmul.f32 %v1882, 1.442695
        %v1922 = vpow.pop %v1921
        %v1923 = vmul.f32 %v1883, 1.442695
        %v1924 = vpow.pop %v1923
        %v1925 = vmul.f32 %v1884, 1.442695
        %v1926 = vpow.pop %v1925
        %v1927 = vmul.f32 %v1885, 1.442695
        %v1928 = vpow.pop %v1927
        %v1929 = vmul.f32 %v1886, 1.442695
        %v1930 = vpow.pop %v1929
        %v1931 = vmul.f32 %v1887, 1.442695
        %v1932 = vpow.pop %v1931
        %v1933 = vmul.f32 %v1888, 1.442695
        %v1934 = vpow.pop %v1933
        %v1935 = vmul.f32 %v1889, 1.442695
        %v1936 = vpow.pop %v1935
        %v1937 = vmul.f32 %v1890, 1.442695
        %v1938 = vpow.pop %v1937
        %v1939 = vmul.f32 %v1891, 1.442695
        %v1940 = vpow.pop %v1939
        %v1941 = vmul.f32 %v1892, 1.442695
        %v1942 = vpow.pop %v1941
        %v1943 = vmul.f32 %v1893, 1.442695
        %v1944 = vpow.pop %v1943
        %v1945 = vmul.f32 %v1894, 1.442695
        %v1946 = vpow.pop %v1945
        %v1947 = vmul.f32 %v1895, 1.442695
        %v1948 = vpow.pop %v1947
        %v1949 = vmul.f32 %v1896, 1.442695
        %v1950 = vpow.pop %v1949
        %v1951 = vmul.f32 %v1897, 1.442695
        %v1952 = vpow.pop %v1951
        %v1953 = vmul.f32 %v1898, 1.442695
        %v1954 = vpow.pop %v1953
        %v1955 = vmul.f32 %v1899, 1.442695
        %v1956 = vpow.pop %v1955
        %v1957 = vmul.f32 %v1900, 1.442695
        %v1958 = vpow.pop %v1957
        %v1959 = vmul.f32 %v1901, 1.442695
        %v1960 = vpow.pop %v1959
        %v1961 = vmul.f32 %v1902, 1.442695
        %v1962 = vpow.pop %v1961
        %v1963 = vmul.f32 %v1903, 1.442695
        %v1964 = vpow.pop %v1963
        %v1965 = vmul.f32 %v1904, 1.442695
        %v1966 = vpow.pop %v1965
        %v1967 = vmul.f32 %v1905, 1.442695
        %v1968 = vpow.pop %v1967
        %v1969 = vmul.f32 %v1906, 1.442695
        %v1970 = vpow.pop %v1969
        %v1971 = vsub.f32 %v1236, %v1747
        %v1972 = vsub.f32 %v1238, %v1748
        %v1973 = vsub.f32 %v1242, %v1749
        %v1974 = vsub.f32 %v1244, %v1750
        %v1975 = vsub.f32 %v1248, %v1751
        %v1976 = vsub.f32 %v1250, %v1752
        %v1977 = vsub.f32 %v1254, %v1753
        %v1978 = vsub.f32 %v1256, %v1754
        %v1979 = vsub.f32 %v1260, %v1755
        %v1980 = vsub.f32 %v1262, %v1756
        %v1981 = vsub.f32 %v1266, %v1757
        %v1982 = vsub.f32 %v1268, %v1758
        %v1983 = vsub.f32 %v1272, %v1759
        %v1984 = vsub.f32 %v1274, %v1760
        %v1985 = vsub.f32 %v1278, %v1761
        %v1986 = vsub.f32 %v1280, %v1762
        %v1987 = vsub.f32 %v1284, %v1763
        %v1988 = vsub.f32 %v1286, %v1764
        %v1989 = vsub.f32 %v1290, %v1765
        %v1990 = vsub.f32 %v1292, %v1766
        %v1991 = vsub.f32 %v1296, %v1767
        %v1992 = vsub.f32 %v1298, %v1768
        %v1993 = vsub.f32 %v1302, %v1769
        %v1994 = vsub.f32 %v1304, %v1770
        %v1995 = vsub.f32 %v1308, %v1771
        %v1996 = vsub.f32 %v1310, %v1772
        %v1997 = vsub.f32 %v1314, %v1773
        %v1998 = vsub.f32 %v1316, %v1774
        %v1999 = vsub.f32 %v1320, %v1775
        %v2000 = vsub.f32 %v1322, %v1776
        %v2001 = vsub.f32 %v1326, %v1777
        %v2002 = vsub.f32 %v1328, %v1778
        %v2003 = vmul.f32 %v1971, 1.442695
        %v2004 = vpow.pop %v2003
        %v2005 = vmul.f32 %v1972, 1.442695
        %v2006 = vpow.pop %v2005
        %v2007 = vmul.f32 %v1973, 1.442695
        %v2008 = vpow.pop %v2007
        %v2009 = vmul.f32 %v1974, 1.442695
        %v2010 = vpow.pop %v2009
        %v2011 = vmul.f32 %v1975, 1.442695
        %v2012 = vpow.pop %v2011
        %v2013 = vmul.f32 %v1976, 1.442695
        %v2014 = vpow.pop %v2013
        %v2015 = vmul.f32 %v1977, 1.442695
        %v2016 = vpow.pop %v2015
        %v2017 = vmul.f32 %v1978, 1.442695
        %v2018 = vpow.pop %v2017
        %v2019 = vmul.f32 %v1979, 1.442695
        %v2020 = vpow.pop %v2019
        %v2021 = vmul.f32 %v1980, 1.442695
        %v2022 = vpow.pop %v2021
        %v2023 = vmul.f32 %v1981, 1.442695
        %v2024 = vpow.pop %v2023
        %v2025 = vmul.f32 %v1982, 1.442695
        %v2026 = vpow.pop %v2025
        %v2027 = vmul.f32 %v1983, 1.442695
        %v2028 = vpow.pop %v2027
        %v2029 = vmul.f32 %v1984, 1.442695
        %v2030 = vpow.pop %v2029
        %v2031 = vmul.f32 %v1985, 1.442695
        %v2032 = vpow.pop %v2031
        %v2033 = vmul.f32 %v1986, 1.442695
        %v2034 = vpow.pop %v2033
        %v2035 = vmul.f32 %v1987, 1.442695
        %v2036 = vpow.pop %v2035
        %v2037 = vmul.f32 %v1988, 1.442695
        %v2038 = vpow.pop %v2037
        %v2039 = vmul.f32 %v1989, 1.442695
        %v2040 = vpow.pop %v2039
        %v2041 = vmul.f32 %v1990, 1.442695
        %v2042 = vpow.pop %v2041
        %v2043 = vmul.f32 %v1991, 1.442695
        %v2044 = vpow.pop %v2043
        %v2045 = vmul.f32 %v1992, 1.442695
        %v2046 = vpow.pop %v2045
        %v2047 = vmul.f32 %v1993, 1.442695
        %v2048 = vpow.pop %v2047
        %v2049 = vmul.f32 %v1994, 1.442695
        %v2050 = vpow.pop %v2049
        %v2051 = vmul.f32 %v1995, 1.442695
        %v2052 = vpow.pop %v2051
        %v2053 = vmul.f32 %v1996, 1.442695
        %v2054 = vpow.pop %v2053
        %v2055 = vmul.f32 %v1997, 1.442695
        %v2056 = vpow.pop %v2055
        %v2057 = vmul.f32 %v1998, 1.442695
        %v2058 = vpow.pop %v2057
        %v2059 = vmul.f32 %v1999, 1.442695
        %v2060 = vpow.pop %v2059
        %v2061 = vmul.f32 %v2000, 1.442695
        %v2062 = vpow.pop %v2061
        %v2063 = vmul.f32 %v2001, 1.442695
        %v2064 = vpow.pop %v2063
        %v2065 = vmul.f32 %v2002, 1.442695
        %v2066 = vpow.pop %v2065
        %v2067 = vsub.f32 %v1589, %v1747
        %v2068 = vsub.f32 %v1591, %v1748
        %v2069 = vsub.f32 %v1595, %v1749
        %v2070 = vsub.f32 %v1597, %v1750
        %v2071 = vsub.f32 %v1601, %v1751
        %v2072 = vsub.f32 %v1603, %v1752
        %v2073 = vsub.f32 %v1607, %v1753
        %v2074 = vsub.f32 %v1609, %v1754
        %v2075 = vsub.f32 %v1613, %v1755
        %v2076 = vsub.f32 %v1615, %v1756
        %v2077 = vsub.f32 %v1619, %v1757
        %v2078 = vsub.f32 %v1621, %v1758
        %v2079 = vsub.f32 %v1625, %v1759
        %v2080 = vsub.f32 %v1627, %v1760
        %v2081 = vsub.f32 %v1631, %v1761
        %v2082 = vsub.f32 %v1633, %v1762
        %v2083 = vsub.f32 %v1637, %v1763
        %v2084 = vsub.f32 %v1639, %v1764
        %v2085 = vsub.f32 %v1643, %v1765
        %v2086 = vsub.f32 %v1645, %v1766
        %v2087 = vsub.f32 %v1649, %v1767
        %v2088 = vsub.f32 %v1651, %v1768
        %v2089 = vsub.f32 %v1655, %v1769
        %v2090 = vsub.f32 %v1657, %v1770
        %v2091 = vsub.f32 %v1661, %v1771
        %v2092 = vsub.f32 %v1663, %v1772
        %v2093 = vsub.f32 %v1667, %v1773
        %v2094 = vsub.f32 %v1669, %v1774
        %v2095 = vsub.f32 %v1673, %v1775
        %v2096 = vsub.f32 %v1675, %v1776
        %v2097 = vsub.f32 %v1679, %v1777
        %v2098 = vsub.f32 %v1681, %v1778
        %v2099 = vmul.f32 %v2067, 1.442695
        %v2100 = vpow.pop %v2099
        %v2101 = vmul.f32 %v2068, 1.442695
        %v2102 = vpow.pop %v2101
        %v2103 = vmul.f32 %v2069, 1.442695
        %v2104 = vpow.pop %v2103
        %v2105 = vmul.f32 %v2070, 1.442695
        %v2106 = vpow.pop %v2105
        %v2107 = vmul.f32 %v2071, 1.442695
        %v2108 = vpow.pop %v2107
        %v2109 = vmul.f32 %v2072, 1.442695
        %v2110 = vpow.pop %v2109
        %v2111 = vmul.f32 %v2073, 1.442695
        %v2112 = vpow.pop %v2111
        %v2113 = vmul.f32 %v2074, 1.442695
        %v2114 = vpow.pop %v2113
        %v2115 = vmul.f32 %v2075, 1.442695
        %v2116 = vpow.pop %v2115
        %v2117 = vmul.f32 %v2076, 1.442695
        %v2118 = vpow.pop %v2117
        %v2119 = vmul.f32 %v2077, 1.442695
        %v2120 = vpow.pop %v2119
        %v2121 = vmul.f32 %v2078, 1.442695
        %v2122 = vpow.pop %v2121
        %v2123 = vmul.f32 %v2079, 1.442695
        %v2124 = vpow.pop %v2123
        %v2125 = vmul.f32 %v2080, 1.442695
        %v2126 = vpow.pop %v2125
        %v2127 = vmul.f32 %v2081, 1.442695
        %v2128 = vpow.pop %v2127
        %v2129 = vmul.f32 %v2082, 1.442695
        %v2130 = vpow.pop %v2129
        %v2131 = vmul.f32 %v2083, 1.442695
        %v2132 = vpow.pop %v2131
        %v2133 = vmul.f32 %v2084, 1.442695
        %v2134 = vpow.pop %v2133
        %v2135 = vmul.f32 %v2085, 1.442695
        %v2136 = vpow.pop %v2135
        %v2137 = vmul.f32 %v2086, 1.442695
        %v2138 = vpow.pop %v2137
        %v2139 = vmul.f32 %v2087, 1.442695
        %v2140 = vpow.pop %v2139
        %v2141 = vmul.f32 %v2088, 1.442695
        %v2142 = vpow.pop %v2141
        %v2143 = vmul.f32 %v2089, 1.442695
        %v2144 = vpow.pop %v2143
        %v2145 = vmul.f32 %v2090, 1.442695
        %v2146 = vpow.pop %v2145
        %v2147 = vmul.f32 %v2091, 1.442695
        %v2148 = vpow.pop %v2147
        %v2149 = vmul.f32 %v2092, 1.442695
        %v2150 = vpow.pop %v2149
        %v2151 = vmul.f32 %v2093, 1.442695
        %v2152 = vpow.pop %v2151
        %v2153 = vmul.f32 %v2094, 1.442695
        %v2154 = vpow.pop %v2153
        %v2155 = vmul.f32 %v2095, 1.442695
        %v2156 = vpow.pop %v2155
        %v2157 = vmul.f32 %v2096, 1.442695
        %v2158 = vpow.pop %v2157
        %v2159 = vmul.f32 %v2097, 1.442695
        %v2160 = vpow.pop %v2159
        %v2161 = vmul.f32 %v2098, 1.442695
        %v2162 = vpow.pop %v2161
        %v2163 = vadd.f32 %v1812, %v1908
        %v2164 = vadd.f32 %v1814, %v1910
        %v2165 = vadd.f32 %v1816, %v1912
        %v2166 = vadd.f32 %v1818, %v1914
        %v2167 = vadd.f32 %v1820, %v1916
        %v2168 = vadd.f32 %v1822, %v1918
        %v2169 = vadd.f32 %v1824, %v1920
        %v2170 = vadd.f32 %v1826, %v1922
        %v2171 = vadd.f32 %v1828, %v1924
        %v2172 = vadd.f32 %v1830, %v1926
        %v2173 = vadd.f32 %v1832, %v1928
        %v2174 = vadd.f32 %v1834, %v1930
        %v2175 = vadd.f32 %v1836, %v1932
        %v2176 = vadd.f32 %v1838, %v1934
        %v2177 = vadd.f32 %v1840, %v1936
        %v2178 = vadd.f32 %v1842, %v1938
        %v2179 = vadd.f32 %v1844, %v1940
        %v2180 = vadd.f32 %v1846, %v1942
        %v2181 = vadd.f32 %v1848, %v1944
        %v2182 = vadd.f32 %v1850, %v1946
        %v2183 = vadd.f32 %v1852, %v1948
        %v2184 = vadd.f32 %v1854, %v1950
        %v2185 = vadd.f32 %v1856, %v1952
        %v2186 = vadd.f32 %v1858, %v1954
        %v2187 = vadd.f32 %v1860, %v1956
        %v2188 = vadd.f32 %v1862, %v1958
        %v2189 = vadd.f32 %v1864, %v1960
        %v2190 = vadd.f32 %v1866, %v1962
        %v2191 = vadd.f32 %v1868, %v1964
        %v2192 = vadd.f32 %v1870, %v1966
        %v2193 = vadd.f32 %v1872, %v1968
        %v2194 = vadd.f32 %v1874, %v1970
        %v2195 = vadd.f32 %v2163, %v2004
        %v2196 = vadd.f32 %v2164, %v2006
        %v2197 = vadd.f32 %v2165, %v2008
        %v2198 = vadd.f32 %v2166, %v2010
        %v2199 = vadd.f32 %v2167, %v2012
        %v2200 = vadd.f32 %v2168, %v2014
        %v2201 = vadd.f32 %v2169, %v2016
        %v2202 = vadd.f32 %v2170, %v2018
        %v2203 = vadd.f32 %v2171, %v2020
        %v2204 = vadd.f32 %v2172, %v2022
        %v2205 = vadd.f32 %v2173, %v2024
        %v2206 = vadd.f32 %v2174, %v2026
        %v2207 = vadd.f32 %v2175, %v2028
        %v2208 = vadd.f32 %v2176, %v2030
        %v2209 = vadd.f32 %v2177, %v2032
        %v2210 = vadd.f32 %v2178, %v2034
        %v2211 = vadd.f32 %v2179, %v2036
        %v2212 = vadd.f32 %v2180, %v2038
        %v2213 = vadd.f32 %v2181, %v2040
        %v2214 = vadd.f32 %v2182, %v2042
        %v2215 = vadd.f32 %v2183, %v2044
        %v2216 = vadd.f32 %v2184, %v2046
        %v2217 = vadd.f32 %v2185, %v2048
        %v2218 = vadd.f32 %v2186, %v2050
        %v2219 = vadd.f32 %v2187, %v2052
        %v2220 = vadd.f32 %v2188, %v2054
        %v2221 = vadd.f32 %v2189, %v2056
        %v2222 = vadd.f32 %v2190, %v2058
        %v2223 = vadd.f32 %v2191, %v2060
        %v2224 = vadd.f32 %v2192, %v2062
        %v2225 = vadd.f32 %v2193, %v2064
        %v2226 = vadd.f32 %v2194, %v2066
        %v2227 = vadd.f32 %v2195, %v2100
        %v2228 = vadd.f32 %v2196, %v2102
        %v2229 = vadd.f32 %v2197, %v2104
        %v2230 = vadd.f32 %v2198, %v2106
        %v2231 = vadd.f32 %v2199, %v2108
        %v2232 = vadd.f32 %v2200, %v2110
        %v2233 = vadd.f32 %v2201, %v2112
        %v2234 = vadd.f32 %v2202, %v2114
        %v2235 = vadd.f32 %v2203, %v2116
        %v2236 = vadd.f32 %v2204, %v2118
        %v2237 = vadd.f32 %v2205, %v2120
        %v2238 = vadd.f32 %v2206, %v2122
        %v2239 = vadd.f32 %v2207, %v2124
        %v2240 = vadd.f32 %v2208, %v2126
        %v2241 = vadd.f32 %v2209, %v2128
        %v2242 = vadd.f32 %v2210, %v2130
        %v2243 = vadd.f32 %v2211, %v2132
        %v2244 = vadd.f32 %v2212, %v2134
        %v2245 = vadd.f32 %v2213, %v2136
        %v2246 = vadd.f32 %v2214, %v2138
        %v2247 = vadd.f32 %v2215, %v2140
        %v2248 = vadd.f32 %v2216, %v2142
        %v2249 = vadd.f32 %v2217, %v2144
        %v2250 = vadd.f32 %v2218, %v2146
        %v2251 = vadd.f32 %v2219, %v2148
        %v2252 = vadd.f32 %v2220, %v2150
        %v2253 = vadd.f32 %v2221, %v2152
        %v2254 = vadd.f32 %v2222, %v2154
        %v2255 = vadd.f32 %v2223, %v2156
        %v2256 = vadd.f32 %v2224, %v2158
        %v2257 = vadd.f32 %v2225, %v2160
        %v2258 = vadd.f32 %v2226, %v2162
        %v2259 = vrcp.pop %v2227
        %v2260 = vrcp.pop %v2228
        %v2261 = vrcp.pop %v2229
        %v2262 = vrcp.pop %v2230
        %v2263 = vrcp.pop %v2231
        %v2264 = vrcp.pop %v2232
        %v2265 = vrcp.pop %v2233
        %v2266 = vrcp.pop %v2234
        %v2267 = vrcp.pop %v2235
        %v2268 = vrcp.pop %v2236
        %v2269 = vrcp.pop %v2237
        %v2270 = vrcp.pop %v2238
        %v2271 = vrcp.pop %v2239
        %v2272 = vrcp.pop %v2240
        %v2273 = vrcp.pop %v2241
        %v2274 = vrcp.pop %v2242
        %v2275 = vrcp.pop %v2243
        %v2276 = vrcp.pop %v2244
        %v2277 = vrcp.pop %v2245
        %v2278 = vrcp.pop %v2246
        %v2279 = vrcp.pop %v2247
        %v2280 = vrcp.pop %v2248
        %v2281 = vrcp.pop %v2249
        %v2282 = vrcp.pop %v2250
        %v2283 = vrcp.pop %v2251
        %v2284 = vrcp.pop %v2252
        %v2285 = vrcp.pop %v2253
        %v2286 = vrcp.pop %v2254
        %v2287 = vrcp.pop %v2255
        %v2288 = vrcp.pop %v2256
        %v2289 = vrcp.pop %v2257
        %v2290 = vrcp.pop %v2258
        %v2291 = vmul.f32 %v1812, %v2259
        %v2292 = vmul.f32 %v1814, %v2260
        %v2293 = vmul.f32 %v1816, %v2261
        %v2294 = vmul.f32 %v1818, %v2262
        %v2295 = vmul.f32 %v1820, %v2263
        %v2296 = vmul.f32 %v1822, %v2264
        %v2297 = vmul.f32 %v1824, %v2265
        %v2298 = vmul.f32 %v1826, %v2266
        %v2299 = vmul.f32 %v1828, %v2267
        %v2300 = vmul.f32 %v1830, %v2268
        %v2301 = vmul.f32 %v1832, %v2269
        %v2302 = vmul.f32 %v1834, %v2270
        %v2303 = vmul.f32 %v1836, %v2271
        %v2304 = vmul.f32 %v1838, %v2272
        %v2305 = vmul.f32 %v1840, %v2273
        %v2306 = vmul.f32 %v1842, %v2274
        %v2307 = vmul.f32 %v1844, %v2275
        %v2308 = vmul.f32 %v1846, %v2276
        %v2309 = vmul.f32 %v1848, %v2277
        %v2310 = vmul.f32 %v1850, %v2278
        %v2311 = vmul.f32 %v1852, %v2279
        %v2312 = vmul.f32 %v1854, %v2280
        %v2313 = vmul.f32 %v1856, %v2281
        %v2314 = vmul.f32 %v1858, %v2282
        %v2315 = vmul.f32 %v1860, %v2283
        %v2316 = vmul.f32 %v1862, %v2284
        %v2317 = vmul.f32 %v1864, %v2285
        %v2318 = vmul.f32 %v1866, %v2286
        %v2319 = vmul.f32 %v1868, %v2287
        %v2320 = vmul.f32 %v1870, %v2288
        %v2321 = vmul.f32 %v1872, %v2289
        %v2322 = vmul.f32 %v1874, %v2290
        %v2323 = vmul.f32 %v2291, 2.0
        %v2324 = vmul.f32 %v2292, 2.0
        %v2325 = vmul.f32 %v2293, 2.0
        %v2326 = vmul.f32 %v2294, 2.0
        %v2327 = vmul.f32 %v2295, 2.0
        %v2328 = vmul.f32 %v2296, 2.0
        %v2329 = vmul.f32 %v2297, 2.0
        %v2330 = vmul.f32 %v2298, 2.0
        %v2331 = vmul.f32 %v2299, 2.0
        %v2332 = vmul.f32 %v2300, 2.0
        %v2333 = vmul.f32 %v2301, 2.0
        %v2334 = vmul.f32 %v2302, 2.0
        %v2335 = vmul.f32 %v2303, 2.0
        %v2336 = vmul.f32 %v2304, 2.0
        %v2337 = vmul.f32 %v2305, 2.0
        %v2338 = vmul.f32 %v2306, 2.0
        %v2339 = vmul.f32 %v2307, 2.0
        %v2340 = vmul.f32 %v2308, 2.0
        %v2341 = vmul.f32 %v2309, 2.0
        %v2342 = vmul.f32 %v2310, 2.0
        %v2343 = vmul.f32 %v2311, 2.0
        %v2344 = vmul.f32 %v2312, 2.0
        %v2345 = vmul.f32 %v2313, 2.0
        %v2346 = vmul.f32 %v2314, 2.0
        %v2347 = vmul.f32 %v2315, 2.0
        %v2348 = vmul.f32 %v2316, 2.0
        %v2349 = vmul.f32 %v2317, 2.0
        %v2350 = vmul.f32 %v2318, 2.0
        %v2351 = vmul.f32 %v2319, 2.0
        %v2352 = vmul.f32 %v2320, 2.0
        %v2353 = vmul.f32 %v2321, 2.0
        %v2354 = vmul.f32 %v2322, 2.0
        %v2355 = vmul.f32 %v2323, 1.442695
        %v2356 = vpow.pop %v2355
        %v2357 = vmul.f32 %v2324, 1.442695
        %v2358 = vpow.pop %v2357
        %v2359 = vmul.f32 %v2325, 1.442695
        %v2360 = vpow.pop %v2359
        %v2361 = vmul.f32 %v2326, 1.442695
        %v2362 = vpow.pop %v2361
        %v2363 = vmul.f32 %v2327, 1.442695
        %v2364 = vpow.pop %v2363
        %v2365 = vmul.f32 %v2328, 1.442695
        %v2366 = vpow.pop %v2365
        %v2367 = vmul.f32 %v2329, 1.442695
        %v2368 = vpow.pop %v2367
        %v2369 = vmul.f32 %v2330, 1.442695
        %v2370 = vpow.pop %v2369
        %v2371 = vmul.f32 %v2331, 1.442695
        %v2372 = vpow.pop %v2371
        %v2373 = vmul.f32 %v2332, 1.442695
        %v2374 = vpow.pop %v2373
        %v2375 = vmul.f32 %v2333, 1.442695
        %v2376 = vpow.pop %v2375
        %v2377 = vmul.f32 %v2334, 1.442695
        %v2378 = vpow.pop %v2377
        %v2379 = vmul.f32 %v2335, 1.442695
        %v2380 = vpow.pop %v2379
        %v2381 = vmul.f32 %v2336, 1.442695
        %v2382 = vpow.pop %v2381
        %v2383 = vmul.f32 %v2337, 1.442695
        %v2384 = vpow.pop %v2383
        %v2385 = vmul.f32 %v2338, 1.442695
        %v2386 = vpow.pop %v2385
        %v2387 = vmul.f32 %v2339, 1.442695
        %v2388 = vpow.pop %v2387
        %v2389 = vmul.f32 %v2340, 1.442695
        %v2390 = vpow.pop %v2389
        %v2391 = vmul.f32 %v2341, 1.442695
        %v2392 = vpow.pop %v2391
        %v2393 = vmul.f32 %v2342, 1.442695
        %v2394 = vpow.pop %v2393
        %v2395 = vmul.f32 %v2343, 1.442695
        %v2396 = vpow.pop %v2395
        %v2397 = vmul.f32 %v2344, 1.442695
        %v2398 = vpow.pop %v2397
        %v2399 = vmul.f32 %v2345, 1.442695
        %v2400 = vpow.pop %v2399
        %v2401 = vmul.f32 %v2346, 1.442695
        %v2402 = vpow.pop %v2401
        %v2403 = vmul.f32 %v2347, 1.442695
        %v2404 = vpow.pop %v2403
        %v2405 = vmul.f32 %v2348, 1.442695
        %v2406 = vpow.pop %v2405
        %v2407 = vmul.f32 %v2349, 1.442695
        %v2408 = vpow.pop %v2407
        %v2409 = vmul.f32 %v2350, 1.442695
        %v2410 = vpow.pop %v2409
        %v2411 = vmul.f32 %v2351, 1.442695
        %v2412 = vpow.pop %v2411
        %v2413 = vmul.f32 %v2352, 1.442695
        %v2414 = vpow.pop %v2413
        %v2415 = vmul.f32 %v2353, 1.442695
        %v2416 = vpow.pop %v2415
        %v2417 = vmul.f32 %v2354, 1.442695
        %v2418 = vpow.pop %v2417
        %v2419 = vmul.f32 %v2356, %v285
        %v2420 = vmul.f32 %v2358, %v286
        %v2421 = vmul.f32 %v2360, %v287
        %v2422 = vmul.f32 %v2362, %v288
        %v2423 = vmul.f32 %v2364, %v289
        %v2424 = vmul.f32 %v2366, %v290
        %v2425 = vmul.f32 %v2368, %v291
        %v2426 = vmul.f32 %v2370, %v292
        %v2427 = vmul.f32 %v2372, %v293
        %v2428 = vmul.f32 %v2374, %v294
        %v2429 = vmul.f32 %v2376, %v295
        %v2430 = vmul.f32 %v2378, %v296
        %v2431 = vmul.f32 %v2380, %v297
        %v2432 = vmul.f32 %v2382, %v298
        %v2433 = vmul.f32 %v2384, %v299
        %v2434 = vmul.f32 %v2386, %v300
        %v2435 = vmul.f32 %v2388, %v301
        %v2436 = vmul.f32 %v2390, %v302
        %v2437 = vmul.f32 %v2392, %v303
        %v2438 = vmul.f32 %v2394, %v304
        %v2439 = vmul.f32 %v2396, %v305
        %v2440 = vmul.f32 %v2398, %v306
        %v2441 = vmul.f32 %v2400, %v307
        %v2442 = vmul.f32 %v2402, %v308
        %v2443 = vmul.f32 %v2404, %v309
        %v2444 = vmul.f32 %v2406, %v310
        %v2445 = vmul.f32 %v2408, %v311
        %v2446 = vmul.f32 %v2410, %v312
        %v2447 = vmul.f32 %v2412, %v313
        %v2448 = vmul.f32 %v2414, %v314
        %v2449 = vmul.f32 %v2416, %v315
        %v2450 = vmul.f32 %v2418, %v316
        %v2451 = vadd.f32 %v2419, %v2420
        %2452 = vadd.xlane.f32.xlu0 %v2451
        %v2453 = vpop.xlane.xlu0 %2452
        %v2454 = vadd.f32 %v2421, %v2422
        %2455 = vadd.xlane.f32.xlu0 %v2454
        %v2456 = vpop.xlane.xlu0 %2455
        %v2457 = vadd.f32 %v2423, %v2424
        %2458 = vadd.xlane.f32.xlu0 %v2457
        %v2459 = vpop.xlane.xlu0 %2458
        %v2460 = vadd.f32 %v2425, %v2426
        %2461 = vadd.xlane.f32.xlu0 %v2460
        %v2462 = vpop.xlane.xlu0 %2461
        %v2463 = vadd.f32 %v2427, %v2428
        %2464 = vadd.xlane.f32.xlu0 %v2463
        %v2465 = vpop.xlane.xlu0 %2464
        %v2466 = vadd.f32 %v2429, %v2430
        %2467 = vadd.xlane.f32.xlu0 %v2466
        %v2468 = vpop.xlane.xlu0 %2467
        %v2469 = vadd.f32 %v2431, %v2432
        %2470 = vadd.xlane.f32.xlu0 %v2469
        %v2471 = vpop.xlane.xlu0 %2470
        %v2472 = vadd.f32 %v2433, %v2434
        %2473 = vadd.xlane.f32.xlu0 %v2472
        %v2474 = vpop.xlane.xlu0 %2473
        %v2475 = vadd.f32 %v2435, %v2436
        %2476 = vadd.xlane.f32.xlu0 %v2475
        %v2477 = vpop.xlane.xlu0 %2476
        %v2478 = vadd.f32 %v2437, %v2438
        %2479 = vadd.xlane.f32.xlu0 %v2478
        %v2480 = vpop.xlane.xlu0 %2479
        %v2481 = vadd.f32 %v2439, %v2440
        %2482 = vadd.xlane.f32.xlu0 %v2481
        %v2483 = vpop.xlane.xlu0 %2482
        %v2484 = vadd.f32 %v2441, %v2442
        %2485 = vadd.xlane.f32.xlu0 %v2484
        %v2486 = vpop.xlane.xlu0 %2485
        %v2487 = vadd.f32 %v2443, %v2444
        %2488 = vadd.xlane.f32.xlu0 %v2487
        %v2489 = vpop.xlane.xlu0 %2488
        %v2490 = vadd.f32 %v2445, %v2446
        %2491 = vadd.xlane.f32.xlu0 %v2490
        %v2492 = vpop.xlane.xlu0 %2491
        %v2493 = vadd.f32 %v2447, %v2448
        %2494 = vadd.xlane.f32.xlu0 %v2493
        %v2495 = vpop.xlane.xlu0 %2494
        %v2496 = vadd.f32 %v2449, %v2450
        %2497 = vadd.xlane.f32.xlu0 %v2496
        %v2498 = vpop.xlane.xlu0 %2497
        %v2499 = vmax.f32 %v2453, 1e-30
        %v2500 = vmax.f32 %v2456, 1e-30
        %v2501 = vmax.f32 %v2459, 1e-30
        %v2502 = vmax.f32 %v2462, 1e-30
        %v2503 = vmax.f32 %v2465, 1e-30
        %v2504 = vmax.f32 %v2468, 1e-30
        %v2505 = vmax.f32 %v2471, 1e-30
        %v2506 = vmax.f32 %v2474, 1e-30
        %v2507 = vmax.f32 %v2477, 1e-30
        %v2508 = vmax.f32 %v2480, 1e-30
        %v2509 = vmax.f32 %v2483, 1e-30
        %v2510 = vmax.f32 %v2486, 1e-30
        %v2511 = vmax.f32 %v2489, 1e-30
        %v2512 = vmax.f32 %v2492, 1e-30
        %v2513 = vmax.f32 %v2495, 1e-30
        %v2514 = vmax.f32 %v2498, 1e-30
        %v2515 = vrcp.pop %v2499
        %v2516 = vrcp.pop %v2500
        %v2517 = vrcp.pop %v2501
        %v2518 = vrcp.pop %v2502
        %v2519 = vrcp.pop %v2503
        %v2520 = vrcp.pop %v2504
        %v2521 = vrcp.pop %v2505
        %v2522 = vrcp.pop %v2506
        %v2523 = vrcp.pop %v2507
        %v2524 = vrcp.pop %v2508
        %v2525 = vrcp.pop %v2509
        %v2526 = vrcp.pop %v2510
        %v2527 = vrcp.pop %v2511
        %v2528 = vrcp.pop %v2512
        %v2529 = vrcp.pop %v2513
        %v2530 = vrcp.pop %v2514
        %v2531 = vmul.f32 %v2419, %v2515
        %v2532 = vmul.f32 %v2420, %v2515
        %v2533 = vmul.f32 %v2421, %v2516
        %v2534 = vmul.f32 %v2422, %v2516
        %v2535 = vmul.f32 %v2423, %v2517
        %v2536 = vmul.f32 %v2424, %v2517
        %v2537 = vmul.f32 %v2425, %v2518
        %v2538 = vmul.f32 %v2426, %v2518
        %v2539 = vmul.f32 %v2427, %v2519
        %v2540 = vmul.f32 %v2428, %v2519
        %v2541 = vmul.f32 %v2429, %v2520
        %v2542 = vmul.f32 %v2430, %v2520
        %v2543 = vmul.f32 %v2431, %v2521
        %v2544 = vmul.f32 %v2432, %v2521
        %v2545 = vmul.f32 %v2433, %v2522
        %v2546 = vmul.f32 %v2434, %v2522
        %v2547 = vmul.f32 %v2435, %v2523
        %v2548 = vmul.f32 %v2436, %v2523
        %v2549 = vmul.f32 %v2437, %v2524
        %v2550 = vmul.f32 %v2438, %v2524
        %v2551 = vmul.f32 %v2439, %v2525
        %v2552 = vmul.f32 %v2440, %v2525
        %v2553 = vmul.f32 %v2441, %v2526
        %v2554 = vmul.f32 %v2442, %v2526
        %v2555 = vmul.f32 %v2443, %v2527
        %v2556 = vmul.f32 %v2444, %v2527
        %v2557 = vmul.f32 %v2445, %v2528
        %v2558 = vmul.f32 %v2446, %v2528
        %v2559 = vmul.f32 %v2447, %v2529
        %v2560 = vmul.f32 %v2448, %v2529
        %v2561 = vmul.f32 %v2449, %v2530
        %v2562 = vmul.f32 %v2450, %v2530
        %2563 = vst [vmem:[%s182] sm:$0xff] %v2531
        %2564 = vst [vmem:[%s182 + $0x8] sm:$0xff] %v2532
        %2565 = vst [vmem:[%s182 + $0x10] sm:$0xff] %v2533
        %2566 = vst [vmem:[%s182 + $0x18] sm:$0xff] %v2534
        %2567 = vst [vmem:[%s182 + $0x20] sm:$0xff] %v2535
        %2568 = vst [vmem:[%s182 + $0x28] sm:$0xff] %v2536
        %2569 = vst [vmem:[%s182 + $0x30] sm:$0xff] %v2537
        %2570 = vst [vmem:[%s182 + $0x38] sm:$0xff] %v2538
        %2571 = vst [vmem:[%s182 + $0x40] sm:$0xff] %v2539
        %2572 = vst [vmem:[%s182 + $0x48] sm:$0xff] %v2540
        %2573 = vst [vmem:[%s182 + $0x50] sm:$0xff] %v2541
        %2574 = vst [vmem:[%s182 + $0x58] sm:$0xff] %v2542
        %2575 = vst [vmem:[%s182 + $0x60] sm:$0xff] %v2543
        %2576 = vst [vmem:[%s182 + $0x68] sm:$0xff] %v2544
        %2577 = vst [vmem:[%s182 + $0x70] sm:$0xff] %v2545
        %2578 = vst [vmem:[%s182 + $0x78] sm:$0xff] %v2546
        %2579 = vst [vmem:[%s182 + $0x80] sm:$0xff] %v2547
        %2580 = vst [vmem:[%s182 + $0x88] sm:$0xff] %v2548
        %2581 = vst [vmem:[%s182 + $0x90] sm:$0xff] %v2549
        %2582 = vst [vmem:[%s182 + $0x98] sm:$0xff] %v2550
        %2583 = vst [vmem:[%s182 + $0xa0] sm:$0xff] %v2551
        %2584 = vst [vmem:[%s182 + $0xa8] sm:$0xff] %v2552
        %2585 = vst [vmem:[%s182 + $0xb0] sm:$0xff] %v2553
        %2586 = vst [vmem:[%s182 + $0xb8] sm:$0xff] %v2554
        %2587 = vst [vmem:[%s182 + $0xc0] sm:$0xff] %v2555
        %2588 = vst [vmem:[%s182 + $0xc8] sm:$0xff] %v2556
        %2589 = vst [vmem:[%s182 + $0xd0] sm:$0xff] %v2557
        %2590 = vst [vmem:[%s182 + $0xd8] sm:$0xff] %v2558
        %2591 = vst [vmem:[%s182 + $0xe0] sm:$0xff] %v2559
        %2592 = vst [vmem:[%s182 + $0xe8] sm:$0xff] %v2560
        %2593 = vst [vmem:[%s182 + $0xf0] sm:$0xff] %v2561
        %2594 = vst [vmem:[%s182 + $0xf8] sm:$0xff] %v2562
        %v2595 = vmul.f32 %v1908, %v2259
        %v2596 = vmul.f32 %v1910, %v2260
        %v2597 = vmul.f32 %v1912, %v2261
        %v2598 = vmul.f32 %v1914, %v2262
        %v2599 = vmul.f32 %v1916, %v2263
        %v2600 = vmul.f32 %v1918, %v2264
        %v2601 = vmul.f32 %v1920, %v2265
        %v2602 = vmul.f32 %v1922, %v2266
        %v2603 = vmul.f32 %v1924, %v2267
        %v2604 = vmul.f32 %v1926, %v2268
        %v2605 = vmul.f32 %v1928, %v2269
        %v2606 = vmul.f32 %v1930, %v2270
        %v2607 = vmul.f32 %v1932, %v2271
        %v2608 = vmul.f32 %v1934, %v2272
        %v2609 = vmul.f32 %v1936, %v2273
        %v2610 = vmul.f32 %v1938, %v2274
        %v2611 = vmul.f32 %v1940, %v2275
        %v2612 = vmul.f32 %v1942, %v2276
        %v2613 = vmul.f32 %v1944, %v2277
        %v2614 = vmul.f32 %v1946, %v2278
        %v2615 = vmul.f32 %v1948, %v2279
        %v2616 = vmul.f32 %v1950, %v2280
        %v2617 = vmul.f32 %v1952, %v2281
        %v2618 = vmul.f32 %v1954, %v2282
        %v2619 = vmul.f32 %v1956, %v2283
        %v2620 = vmul.f32 %v1958, %v2284
        %v2621 = vmul.f32 %v1960, %v2285
        %v2622 = vmul.f32 %v1962, %v2286
        %v2623 = vmul.f32 %v1964, %v2287
        %v2624 = vmul.f32 %v1966, %v2288
        %v2625 = vmul.f32 %v1968, %v2289
        %v2626 = vmul.f32 %v1970, %v2290
        %v2627 = vmul.f32 %v2595, 2.0
        %v2628 = vmul.f32 %v2596, 2.0
        %v2629 = vmul.f32 %v2597, 2.0
        %v2630 = vmul.f32 %v2598, 2.0
        %v2631 = vmul.f32 %v2599, 2.0
        %v2632 = vmul.f32 %v2600, 2.0
        %v2633 = vmul.f32 %v2601, 2.0
        %v2634 = vmul.f32 %v2602, 2.0
        %v2635 = vmul.f32 %v2603, 2.0
        %v2636 = vmul.f32 %v2604, 2.0
        %v2637 = vmul.f32 %v2605, 2.0
        %v2638 = vmul.f32 %v2606, 2.0
        %v2639 = vmul.f32 %v2607, 2.0
        %v2640 = vmul.f32 %v2608, 2.0
        %v2641 = vmul.f32 %v2609, 2.0
        %v2642 = vmul.f32 %v2610, 2.0
        %v2643 = vmul.f32 %v2611, 2.0
        %v2644 = vmul.f32 %v2612, 2.0
        %v2645 = vmul.f32 %v2613, 2.0
        %v2646 = vmul.f32 %v2614, 2.0
        %v2647 = vmul.f32 %v2615, 2.0
        %v2648 = vmul.f32 %v2616, 2.0
        %v2649 = vmul.f32 %v2617, 2.0
        %v2650 = vmul.f32 %v2618, 2.0
        %v2651 = vmul.f32 %v2619, 2.0
        %v2652 = vmul.f32 %v2620, 2.0
        %v2653 = vmul.f32 %v2621, 2.0
        %v2654 = vmul.f32 %v2622, 2.0
        %v2655 = vmul.f32 %v2623, 2.0
        %v2656 = vmul.f32 %v2624, 2.0
        %v2657 = vmul.f32 %v2625, 2.0
        %v2658 = vmul.f32 %v2626, 2.0
        %v2659 = vmul.f32 %v2627, 1.442695
        %v2660 = vpow.pop %v2659
        %v2661 = vmul.f32 %v2628, 1.442695
        %v2662 = vpow.pop %v2661
        %v2663 = vmul.f32 %v2629, 1.442695
        %v2664 = vpow.pop %v2663
        %v2665 = vmul.f32 %v2630, 1.442695
        %v2666 = vpow.pop %v2665
        %v2667 = vmul.f32 %v2631, 1.442695
        %v2668 = vpow.pop %v2667
        %v2669 = vmul.f32 %v2632, 1.442695
        %v2670 = vpow.pop %v2669
        %v2671 = vmul.f32 %v2633, 1.442695
        %v2672 = vpow.pop %v2671
        %v2673 = vmul.f32 %v2634, 1.442695
        %v2674 = vpow.pop %v2673
        %v2675 = vmul.f32 %v2635, 1.442695
        %v2676 = vpow.pop %v2675
        %v2677 = vmul.f32 %v2636, 1.442695
        %v2678 = vpow.pop %v2677
        %v2679 = vmul.f32 %v2637, 1.442695
        %v2680 = vpow.pop %v2679
        %v2681 = vmul.f32 %v2638, 1.442695
        %v2682 = vpow.pop %v2681
        %v2683 = vmul.f32 %v2639, 1.442695
        %v2684 = vpow.pop %v2683
        %v2685 = vmul.f32 %v2640, 1.442695
        %v2686 = vpow.pop %v2685
        %v2687 = vmul.f32 %v2641, 1.442695
        %v2688 = vpow.pop %v2687
        %v2689 = vmul.f32 %v2642, 1.442695
        %v2690 = vpow.pop %v2689
        %v2691 = vmul.f32 %v2643, 1.442695
        %v2692 = vpow.pop %v2691
        %v2693 = vmul.f32 %v2644, 1.442695
        %v2694 = vpow.pop %v2693
        %v2695 = vmul.f32 %v2645, 1.442695
        %v2696 = vpow.pop %v2695
        %v2697 = vmul.f32 %v2646, 1.442695
        %v2698 = vpow.pop %v2697
        %v2699 = vmul.f32 %v2647, 1.442695
        %v2700 = vpow.pop %v2699
        %v2701 = vmul.f32 %v2648, 1.442695
        %v2702 = vpow.pop %v2701
        %v2703 = vmul.f32 %v2649, 1.442695
        %v2704 = vpow.pop %v2703
        %v2705 = vmul.f32 %v2650, 1.442695
        %v2706 = vpow.pop %v2705
        %v2707 = vmul.f32 %v2651, 1.442695
        %v2708 = vpow.pop %v2707
        %v2709 = vmul.f32 %v2652, 1.442695
        %v2710 = vpow.pop %v2709
        %v2711 = vmul.f32 %v2653, 1.442695
        %v2712 = vpow.pop %v2711
        %v2713 = vmul.f32 %v2654, 1.442695
        %v2714 = vpow.pop %v2713
        %v2715 = vmul.f32 %v2655, 1.442695
        %v2716 = vpow.pop %v2715
        %v2717 = vmul.f32 %v2656, 1.442695
        %v2718 = vpow.pop %v2717
        %v2719 = vmul.f32 %v2657, 1.442695
        %v2720 = vpow.pop %v2719
        %v2721 = vmul.f32 %v2658, 1.442695
        %v2722 = vpow.pop %v2721
        %v2723 = vmul.f32 %v2660, %v285
        %v2724 = vmul.f32 %v2662, %v286
        %v2725 = vmul.f32 %v2664, %v287
        %v2726 = vmul.f32 %v2666, %v288
        %v2727 = vmul.f32 %v2668, %v289
        %v2728 = vmul.f32 %v2670, %v290
        %v2729 = vmul.f32 %v2672, %v291
        %v2730 = vmul.f32 %v2674, %v292
        %v2731 = vmul.f32 %v2676, %v293
        %v2732 = vmul.f32 %v2678, %v294
        %v2733 = vmul.f32 %v2680, %v295
        %v2734 = vmul.f32 %v2682, %v296
        %v2735 = vmul.f32 %v2684, %v297
        %v2736 = vmul.f32 %v2686, %v298
        %v2737 = vmul.f32 %v2688, %v299
        %v2738 = vmul.f32 %v2690, %v300
        %v2739 = vmul.f32 %v2692, %v301
        %v2740 = vmul.f32 %v2694, %v302
        %v2741 = vmul.f32 %v2696, %v303
        %v2742 = vmul.f32 %v2698, %v304
        %v2743 = vmul.f32 %v2700, %v305
        %v2744 = vmul.f32 %v2702, %v306
        %v2745 = vmul.f32 %v2704, %v307
        %v2746 = vmul.f32 %v2706, %v308
        %v2747 = vmul.f32 %v2708, %v309
        %v2748 = vmul.f32 %v2710, %v310
        %v2749 = vmul.f32 %v2712, %v311
        %v2750 = vmul.f32 %v2714, %v312
        %v2751 = vmul.f32 %v2716, %v313
        %v2752 = vmul.f32 %v2718, %v314
        %v2753 = vmul.f32 %v2720, %v315
        %v2754 = vmul.f32 %v2722, %v316
        %v2755 = vadd.f32 %v2723, %v2724
        %2756 = vadd.xlane.f32.xlu0 %v2755
        %v2757 = vpop.xlane.xlu0 %2756
        %v2758 = vadd.f32 %v2725, %v2726
        %2759 = vadd.xlane.f32.xlu0 %v2758
        %v2760 = vpop.xlane.xlu0 %2759
        %v2761 = vadd.f32 %v2727, %v2728
        %2762 = vadd.xlane.f32.xlu0 %v2761
        %v2763 = vpop.xlane.xlu0 %2762
        %v2764 = vadd.f32 %v2729, %v2730
        %2765 = vadd.xlane.f32.xlu0 %v2764
        %v2766 = vpop.xlane.xlu0 %2765
        %v2767 = vadd.f32 %v2731, %v2732
        %2768 = vadd.xlane.f32.xlu0 %v2767
        %v2769 = vpop.xlane.xlu0 %2768
        %v2770 = vadd.f32 %v2733, %v2734
        %2771 = vadd.xlane.f32.xlu0 %v2770
        %v2772 = vpop.xlane.xlu0 %2771
        %v2773 = vadd.f32 %v2735, %v2736
        %2774 = vadd.xlane.f32.xlu0 %v2773
        %v2775 = vpop.xlane.xlu0 %2774
        %v2776 = vadd.f32 %v2737, %v2738
        %2777 = vadd.xlane.f32.xlu0 %v2776
        %v2778 = vpop.xlane.xlu0 %2777
        %v2779 = vadd.f32 %v2739, %v2740
        %2780 = vadd.xlane.f32.xlu0 %v2779
        %v2781 = vpop.xlane.xlu0 %2780
        %v2782 = vadd.f32 %v2741, %v2742
        %2783 = vadd.xlane.f32.xlu0 %v2782
        %v2784 = vpop.xlane.xlu0 %2783
        %v2785 = vadd.f32 %v2743, %v2744
        %2786 = vadd.xlane.f32.xlu0 %v2785
        %v2787 = vpop.xlane.xlu0 %2786
        %v2788 = vadd.f32 %v2745, %v2746
        %2789 = vadd.xlane.f32.xlu0 %v2788
        %v2790 = vpop.xlane.xlu0 %2789
        %v2791 = vadd.f32 %v2747, %v2748
        %2792 = vadd.xlane.f32.xlu0 %v2791
        %v2793 = vpop.xlane.xlu0 %2792
        %v2794 = vadd.f32 %v2749, %v2750
        %2795 = vadd.xlane.f32.xlu0 %v2794
        %v2796 = vpop.xlane.xlu0 %2795
        %v2797 = vadd.f32 %v2751, %v2752
        %2798 = vadd.xlane.f32.xlu0 %v2797
        %v2799 = vpop.xlane.xlu0 %2798
        %v2800 = vadd.f32 %v2753, %v2754
        %2801 = vadd.xlane.f32.xlu0 %v2800
        %v2802 = vpop.xlane.xlu0 %2801
        %v2803 = vmax.f32 %v2757, 1e-30
        %v2804 = vmax.f32 %v2760, 1e-30
        %v2805 = vmax.f32 %v2763, 1e-30
        %v2806 = vmax.f32 %v2766, 1e-30
        %v2807 = vmax.f32 %v2769, 1e-30
        %v2808 = vmax.f32 %v2772, 1e-30
        %v2809 = vmax.f32 %v2775, 1e-30
        %v2810 = vmax.f32 %v2778, 1e-30
        %v2811 = vmax.f32 %v2781, 1e-30
        %v2812 = vmax.f32 %v2784, 1e-30
        %v2813 = vmax.f32 %v2787, 1e-30
        %v2814 = vmax.f32 %v2790, 1e-30
        %v2815 = vmax.f32 %v2793, 1e-30
        %v2816 = vmax.f32 %v2796, 1e-30
        %v2817 = vmax.f32 %v2799, 1e-30
        %v2818 = vmax.f32 %v2802, 1e-30
        %v2819 = vrcp.pop %v2803
        %v2820 = vrcp.pop %v2804
        %v2821 = vrcp.pop %v2805
        %v2822 = vrcp.pop %v2806
        %v2823 = vrcp.pop %v2807
        %v2824 = vrcp.pop %v2808
        %v2825 = vrcp.pop %v2809
        %v2826 = vrcp.pop %v2810
        %v2827 = vrcp.pop %v2811
        %v2828 = vrcp.pop %v2812
        %v2829 = vrcp.pop %v2813
        %v2830 = vrcp.pop %v2814
        %v2831 = vrcp.pop %v2815
        %v2832 = vrcp.pop %v2816
        %v2833 = vrcp.pop %v2817
        %v2834 = vrcp.pop %v2818
        %v2835 = vmul.f32 %v2723, %v2819
        %v2836 = vmul.f32 %v2724, %v2819
        %v2837 = vmul.f32 %v2725, %v2820
        %v2838 = vmul.f32 %v2726, %v2820
        %v2839 = vmul.f32 %v2727, %v2821
        %v2840 = vmul.f32 %v2728, %v2821
        %v2841 = vmul.f32 %v2729, %v2822
        %v2842 = vmul.f32 %v2730, %v2822
        %v2843 = vmul.f32 %v2731, %v2823
        %v2844 = vmul.f32 %v2732, %v2823
        %v2845 = vmul.f32 %v2733, %v2824
        %v2846 = vmul.f32 %v2734, %v2824
        %v2847 = vmul.f32 %v2735, %v2825
        %v2848 = vmul.f32 %v2736, %v2825
        %v2849 = vmul.f32 %v2737, %v2826
        %v2850 = vmul.f32 %v2738, %v2826
        %v2851 = vmul.f32 %v2739, %v2827
        %v2852 = vmul.f32 %v2740, %v2827
        %v2853 = vmul.f32 %v2741, %v2828
        %v2854 = vmul.f32 %v2742, %v2828
        %v2855 = vmul.f32 %v2743, %v2829
        %v2856 = vmul.f32 %v2744, %v2829
        %v2857 = vmul.f32 %v2745, %v2830
        %v2858 = vmul.f32 %v2746, %v2830
        %v2859 = vmul.f32 %v2747, %v2831
        %v2860 = vmul.f32 %v2748, %v2831
        %v2861 = vmul.f32 %v2749, %v2832
        %v2862 = vmul.f32 %v2750, %v2832
        %v2863 = vmul.f32 %v2751, %v2833
        %v2864 = vmul.f32 %v2752, %v2833
        %v2865 = vmul.f32 %v2753, %v2834
        %v2866 = vmul.f32 %v2754, %v2834
        %s2867 = scalar_lea.vmem %s182, 256 [#allocation2]
        %2868 = vst [vmem:[%s2867] sm:$0xff] %v2835
        %2869 = vst [vmem:[%s2867 + $0x8] sm:$0xff] %v2836
        %2870 = vst [vmem:[%s2867 + $0x10] sm:$0xff] %v2837
        %2871 = vst [vmem:[%s2867 + $0x18] sm:$0xff] %v2838
        %2872 = vst [vmem:[%s2867 + $0x20] sm:$0xff] %v2839
        %2873 = vst [vmem:[%s2867 + $0x28] sm:$0xff] %v2840
        %2874 = vst [vmem:[%s2867 + $0x30] sm:$0xff] %v2841
        %2875 = vst [vmem:[%s2867 + $0x38] sm:$0xff] %v2842
        %2876 = vst [vmem:[%s2867 + $0x40] sm:$0xff] %v2843
        %2877 = vst [vmem:[%s2867 + $0x48] sm:$0xff] %v2844
        %2878 = vst [vmem:[%s2867 + $0x50] sm:$0xff] %v2845
        %2879 = vst [vmem:[%s2867 + $0x58] sm:$0xff] %v2846
        %2880 = vst [vmem:[%s2867 + $0x60] sm:$0xff] %v2847
        %2881 = vst [vmem:[%s2867 + $0x68] sm:$0xff] %v2848
        %2882 = vst [vmem:[%s2867 + $0x70] sm:$0xff] %v2849
        %2883 = vst [vmem:[%s2867 + $0x78] sm:$0xff] %v2850
        %2884 = vst [vmem:[%s2867 + $0x80] sm:$0xff] %v2851
        %2885 = vst [vmem:[%s2867 + $0x88] sm:$0xff] %v2852
        %2886 = vst [vmem:[%s2867 + $0x90] sm:$0xff] %v2853
        %2887 = vst [vmem:[%s2867 + $0x98] sm:$0xff] %v2854
        %2888 = vst [vmem:[%s2867 + $0xa0] sm:$0xff] %v2855
        %2889 = vst [vmem:[%s2867 + $0xa8] sm:$0xff] %v2856
        %2890 = vst [vmem:[%s2867 + $0xb0] sm:$0xff] %v2857
        %2891 = vst [vmem:[%s2867 + $0xb8] sm:$0xff] %v2858
        %2892 = vst [vmem:[%s2867 + $0xc0] sm:$0xff] %v2859
        %2893 = vst [vmem:[%s2867 + $0xc8] sm:$0xff] %v2860
        %2894 = vst [vmem:[%s2867 + $0xd0] sm:$0xff] %v2861
        %2895 = vst [vmem:[%s2867 + $0xd8] sm:$0xff] %v2862
        %2896 = vst [vmem:[%s2867 + $0xe0] sm:$0xff] %v2863
        %2897 = vst [vmem:[%s2867 + $0xe8] sm:$0xff] %v2864
        %2898 = vst [vmem:[%s2867 + $0xf0] sm:$0xff] %v2865
        %2899 = vst [vmem:[%s2867 + $0xf8] sm:$0xff] %v2866
        %v2900 = vmul.f32 %v2004, %v2259
        %v2901 = vmul.f32 %v2006, %v2260
        %v2902 = vmul.f32 %v2008, %v2261
        %v2903 = vmul.f32 %v2010, %v2262
        %v2904 = vmul.f32 %v2012, %v2263
        %v2905 = vmul.f32 %v2014, %v2264
        %v2906 = vmul.f32 %v2016, %v2265
        %v2907 = vmul.f32 %v2018, %v2266
        %v2908 = vmul.f32 %v2020, %v2267
        %v2909 = vmul.f32 %v2022, %v2268
        %v2910 = vmul.f32 %v2024, %v2269
        %v2911 = vmul.f32 %v2026, %v2270
        %v2912 = vmul.f32 %v2028, %v2271
        %v2913 = vmul.f32 %v2030, %v2272
        %v2914 = vmul.f32 %v2032, %v2273
        %v2915 = vmul.f32 %v2034, %v2274
        %v2916 = vmul.f32 %v2036, %v2275
        %v2917 = vmul.f32 %v2038, %v2276
        %v2918 = vmul.f32 %v2040, %v2277
        %v2919 = vmul.f32 %v2042, %v2278
        %v2920 = vmul.f32 %v2044, %v2279
        %v2921 = vmul.f32 %v2046, %v2280
        %v2922 = vmul.f32 %v2048, %v2281
        %v2923 = vmul.f32 %v2050, %v2282
        %v2924 = vmul.f32 %v2052, %v2283
        %v2925 = vmul.f32 %v2054, %v2284
        %v2926 = vmul.f32 %v2056, %v2285
        %v2927 = vmul.f32 %v2058, %v2286
        %v2928 = vmul.f32 %v2060, %v2287
        %v2929 = vmul.f32 %v2062, %v2288
        %v2930 = vmul.f32 %v2064, %v2289
        %v2931 = vmul.f32 %v2066, %v2290
        %v2932 = vmul.f32 %v2900, 2.0
        %v2933 = vmul.f32 %v2901, 2.0
        %v2934 = vmul.f32 %v2902, 2.0
        %v2935 = vmul.f32 %v2903, 2.0
        %v2936 = vmul.f32 %v2904, 2.0
        %v2937 = vmul.f32 %v2905, 2.0
        %v2938 = vmul.f32 %v2906, 2.0
        %v2939 = vmul.f32 %v2907, 2.0
        %v2940 = vmul.f32 %v2908, 2.0
        %v2941 = vmul.f32 %v2909, 2.0
        %v2942 = vmul.f32 %v2910, 2.0
        %v2943 = vmul.f32 %v2911, 2.0
        %v2944 = vmul.f32 %v2912, 2.0
        %v2945 = vmul.f32 %v2913, 2.0
        %v2946 = vmul.f32 %v2914, 2.0
        %v2947 = vmul.f32 %v2915, 2.0
        %v2948 = vmul.f32 %v2916, 2.0
        %v2949 = vmul.f32 %v2917, 2.0
        %v2950 = vmul.f32 %v2918, 2.0
        %v2951 = vmul.f32 %v2919, 2.0
        %v2952 = vmul.f32 %v2920, 2.0
        %v2953 = vmul.f32 %v2921, 2.0
        %v2954 = vmul.f32 %v2922, 2.0
        %v2955 = vmul.f32 %v2923, 2.0
        %v2956 = vmul.f32 %v2924, 2.0
        %v2957 = vmul.f32 %v2925, 2.0
        %v2958 = vmul.f32 %v2926, 2.0
        %v2959 = vmul.f32 %v2927, 2.0
        %v2960 = vmul.f32 %v2928, 2.0
        %v2961 = vmul.f32 %v2929, 2.0
        %v2962 = vmul.f32 %v2930, 2.0
        %v2963 = vmul.f32 %v2931, 2.0
        %v2964 = vmul.f32 %v2932, 1.442695
        %v2965 = vpow.pop %v2964
        %v2966 = vmul.f32 %v2933, 1.442695
        %v2967 = vpow.pop %v2966
        %v2968 = vmul.f32 %v2934, 1.442695
        %v2969 = vpow.pop %v2968
        %v2970 = vmul.f32 %v2935, 1.442695
        %v2971 = vpow.pop %v2970
        %v2972 = vmul.f32 %v2936, 1.442695
        %v2973 = vpow.pop %v2972
        %v2974 = vmul.f32 %v2937, 1.442695
        %v2975 = vpow.pop %v2974
        %v2976 = vmul.f32 %v2938, 1.442695
        %v2977 = vpow.pop %v2976
        %v2978 = vmul.f32 %v2939, 1.442695
        %v2979 = vpow.pop %v2978
        %v2980 = vmul.f32 %v2940, 1.442695
        %v2981 = vpow.pop %v2980
        %v2982 = vmul.f32 %v2941, 1.442695
        %v2983 = vpow.pop %v2982
        %v2984 = vmul.f32 %v2942, 1.442695
        %v2985 = vpow.pop %v2984
        %v2986 = vmul.f32 %v2943, 1.442695
        %v2987 = vpow.pop %v2986
        %v2988 = vmul.f32 %v2944, 1.442695
        %v2989 = vpow.pop %v2988
        %v2990 = vmul.f32 %v2945, 1.442695
        %v2991 = vpow.pop %v2990
        %v2992 = vmul.f32 %v2946, 1.442695
        %v2993 = vpow.pop %v2992
        %v2994 = vmul.f32 %v2947, 1.442695
        %v2995 = vpow.pop %v2994
        %v2996 = vmul.f32 %v2948, 1.442695
        %v2997 = vpow.pop %v2996
        %v2998 = vmul.f32 %v2949, 1.442695
        %v2999 = vpow.pop %v2998
        %v3000 = vmul.f32 %v2950, 1.442695
        %v3001 = vpow.pop %v3000
        %v3002 = vmul.f32 %v2951, 1.442695
        %v3003 = vpow.pop %v3002
        %v3004 = vmul.f32 %v2952, 1.442695
        %v3005 = vpow.pop %v3004
        %v3006 = vmul.f32 %v2953, 1.442695
        %v3007 = vpow.pop %v3006
        %v3008 = vmul.f32 %v2954, 1.442695
        %v3009 = vpow.pop %v3008
        %v3010 = vmul.f32 %v2955, 1.442695
        %v3011 = vpow.pop %v3010
        %v3012 = vmul.f32 %v2956, 1.442695
        %v3013 = vpow.pop %v3012
        %v3014 = vmul.f32 %v2957, 1.442695
        %v3015 = vpow.pop %v3014
        %v3016 = vmul.f32 %v2958, 1.442695
        %v3017 = vpow.pop %v3016
        %v3018 = vmul.f32 %v2959, 1.442695
        %v3019 = vpow.pop %v3018
        %v3020 = vmul.f32 %v2960, 1.442695
        %v3021 = vpow.pop %v3020
        %v3022 = vmul.f32 %v2961, 1.442695
        %v3023 = vpow.pop %v3022
        %v3024 = vmul.f32 %v2962, 1.442695
        %v3025 = vpow.pop %v3024
        %v3026 = vmul.f32 %v2963, 1.442695
        %v3027 = vpow.pop %v3026
        %v3028 = vmul.f32 %v2965, %v285
        %v3029 = vmul.f32 %v2967, %v286
        %v3030 = vmul.f32 %v2969, %v287
        %v3031 = vmul.f32 %v2971, %v288
        %v3032 = vmul.f32 %v2973, %v289
        %v3033 = vmul.f32 %v2975, %v290
        %v3034 = vmul.f32 %v2977, %v291
        %v3035 = vmul.f32 %v2979, %v292
        %v3036 = vmul.f32 %v2981, %v293
        %v3037 = vmul.f32 %v2983, %v294
        %v3038 = vmul.f32 %v2985, %v295
        %v3039 = vmul.f32 %v2987, %v296
        %v3040 = vmul.f32 %v2989, %v297
        %v3041 = vmul.f32 %v2991, %v298
        %v3042 = vmul.f32 %v2993, %v299
        %v3043 = vmul.f32 %v2995, %v300
        %v3044 = vmul.f32 %v2997, %v301
        %v3045 = vmul.f32 %v2999, %v302
        %v3046 = vmul.f32 %v3001, %v303
        %v3047 = vmul.f32 %v3003, %v304
        %v3048 = vmul.f32 %v3005, %v305
        %v3049 = vmul.f32 %v3007, %v306
        %v3050 = vmul.f32 %v3009, %v307
        %v3051 = vmul.f32 %v3011, %v308
        %v3052 = vmul.f32 %v3013, %v309
        %v3053 = vmul.f32 %v3015, %v310
        %v3054 = vmul.f32 %v3017, %v311
        %v3055 = vmul.f32 %v3019, %v312
        %v3056 = vmul.f32 %v3021, %v313
        %v3057 = vmul.f32 %v3023, %v314
        %v3058 = vmul.f32 %v3025, %v315
        %v3059 = vmul.f32 %v3027, %v316
        %v3060 = vadd.f32 %v3028, %v3029
        %3061 = vadd.xlane.f32.xlu0 %v3060
        %v3062 = vpop.xlane.xlu0 %3061
        %v3063 = vadd.f32 %v3030, %v3031
        %3064 = vadd.xlane.f32.xlu0 %v3063
        %v3065 = vpop.xlane.xlu0 %3064
        %v3066 = vadd.f32 %v3032, %v3033
        %3067 = vadd.xlane.f32.xlu0 %v3066
        %v3068 = vpop.xlane.xlu0 %3067
        %v3069 = vadd.f32 %v3034, %v3035
        %3070 = vadd.xlane.f32.xlu0 %v3069
        %v3071 = vpop.xlane.xlu0 %3070
        %v3072 = vadd.f32 %v3036, %v3037
        %3073 = vadd.xlane.f32.xlu0 %v3072
        %v3074 = vpop.xlane.xlu0 %3073
        %v3075 = vadd.f32 %v3038, %v3039
        %3076 = vadd.xlane.f32.xlu0 %v3075
        %v3077 = vpop.xlane.xlu0 %3076
        %v3078 = vadd.f32 %v3040, %v3041
        %3079 = vadd.xlane.f32.xlu0 %v3078
        %v3080 = vpop.xlane.xlu0 %3079
        %v3081 = vadd.f32 %v3042, %v3043
        %3082 = vadd.xlane.f32.xlu0 %v3081
        %v3083 = vpop.xlane.xlu0 %3082
        %v3084 = vadd.f32 %v3044, %v3045
        %3085 = vadd.xlane.f32.xlu0 %v3084
        %v3086 = vpop.xlane.xlu0 %3085
        %v3087 = vadd.f32 %v3046, %v3047
        %3088 = vadd.xlane.f32.xlu0 %v3087
        %v3089 = vpop.xlane.xlu0 %3088
        %v3090 = vadd.f32 %v3048, %v3049
        %3091 = vadd.xlane.f32.xlu0 %v3090
        %v3092 = vpop.xlane.xlu0 %3091
        %v3093 = vadd.f32 %v3050, %v3051
        %3094 = vadd.xlane.f32.xlu0 %v3093
        %v3095 = vpop.xlane.xlu0 %3094
        %v3096 = vadd.f32 %v3052, %v3053
        %3097 = vadd.xlane.f32.xlu0 %v3096
        %v3098 = vpop.xlane.xlu0 %3097
        %v3099 = vadd.f32 %v3054, %v3055
        %3100 = vadd.xlane.f32.xlu0 %v3099
        %v3101 = vpop.xlane.xlu0 %3100
        %v3102 = vadd.f32 %v3056, %v3057
        %3103 = vadd.xlane.f32.xlu0 %v3102
        %v3104 = vpop.xlane.xlu0 %3103
        %v3105 = vadd.f32 %v3058, %v3059
        %3106 = vadd.xlane.f32.xlu0 %v3105
        %v3107 = vpop.xlane.xlu0 %3106
        %v3108 = vmax.f32 %v3062, 1e-30
        %v3109 = vmax.f32 %v3065, 1e-30
        %v3110 = vmax.f32 %v3068, 1e-30
        %v3111 = vmax.f32 %v3071, 1e-30
        %v3112 = vmax.f32 %v3074, 1e-30
        %v3113 = vmax.f32 %v3077, 1e-30
        %v3114 = vmax.f32 %v3080, 1e-30
        %v3115 = vmax.f32 %v3083, 1e-30
        %v3116 = vmax.f32 %v3086, 1e-30
        %v3117 = vmax.f32 %v3089, 1e-30
        %v3118 = vmax.f32 %v3092, 1e-30
        %v3119 = vmax.f32 %v3095, 1e-30
        %v3120 = vmax.f32 %v3098, 1e-30
        %v3121 = vmax.f32 %v3101, 1e-30
        %v3122 = vmax.f32 %v3104, 1e-30
        %v3123 = vmax.f32 %v3107, 1e-30
        %v3124 = vrcp.pop %v3108
        %v3125 = vrcp.pop %v3109
        %v3126 = vrcp.pop %v3110
        %v3127 = vrcp.pop %v3111
        %v3128 = vrcp.pop %v3112
        %v3129 = vrcp.pop %v3113
        %v3130 = vrcp.pop %v3114
        %v3131 = vrcp.pop %v3115
        %v3132 = vrcp.pop %v3116
        %v3133 = vrcp.pop %v3117
        %v3134 = vrcp.pop %v3118
        %v3135 = vrcp.pop %v3119
        %v3136 = vrcp.pop %v3120
        %v3137 = vrcp.pop %v3121
        %v3138 = vrcp.pop %v3122
        %v3139 = vrcp.pop %v3123
        %v3140 = vmul.f32 %v3028, %v3124
        %v3141 = vmul.f32 %v3029, %v3124
        %v3142 = vmul.f32 %v3030, %v3125
        %v3143 = vmul.f32 %v3031, %v3125
        %v3144 = vmul.f32 %v3032, %v3126
        %v3145 = vmul.f32 %v3033, %v3126
        %v3146 = vmul.f32 %v3034, %v3127
        %v3147 = vmul.f32 %v3035, %v3127
        %v3148 = vmul.f32 %v3036, %v3128
        %v3149 = vmul.f32 %v3037, %v3128
        %v3150 = vmul.f32 %v3038, %v3129
        %v3151 = vmul.f32 %v3039, %v3129
        %v3152 = vmul.f32 %v3040, %v3130
        %v3153 = vmul.f32 %v3041, %v3130
        %v3154 = vmul.f32 %v3042, %v3131
        %v3155 = vmul.f32 %v3043, %v3131
        %v3156 = vmul.f32 %v3044, %v3132
        %v3157 = vmul.f32 %v3045, %v3132
        %v3158 = vmul.f32 %v3046, %v3133
        %v3159 = vmul.f32 %v3047, %v3133
        %v3160 = vmul.f32 %v3048, %v3134
        %v3161 = vmul.f32 %v3049, %v3134
        %v3162 = vmul.f32 %v3050, %v3135
        %v3163 = vmul.f32 %v3051, %v3135
        %v3164 = vmul.f32 %v3052, %v3136
        %v3165 = vmul.f32 %v3053, %v3136
        %v3166 = vmul.f32 %v3054, %v3137
        %v3167 = vmul.f32 %v3055, %v3137
        %v3168 = vmul.f32 %v3056, %v3138
        %v3169 = vmul.f32 %v3057, %v3138
        %v3170 = vmul.f32 %v3058, %v3139
        %v3171 = vmul.f32 %v3059, %v3139
        %s3172 = scalar_lea.vmem %s182, 512 [#allocation2]
        %3173 = vst [vmem:[%s3172] sm:$0xff] %v3140
        %3174 = vst [vmem:[%s3172 + $0x8] sm:$0xff] %v3141
        %3175 = vst [vmem:[%s3172 + $0x10] sm:$0xff] %v3142
        %3176 = vst [vmem:[%s3172 + $0x18] sm:$0xff] %v3143
        %3177 = vst [vmem:[%s3172 + $0x20] sm:$0xff] %v3144
        %3178 = vst [vmem:[%s3172 + $0x28] sm:$0xff] %v3145
        %3179 = vst [vmem:[%s3172 + $0x30] sm:$0xff] %v3146
        %3180 = vst [vmem:[%s3172 + $0x38] sm:$0xff] %v3147
        %3181 = vst [vmem:[%s3172 + $0x40] sm:$0xff] %v3148
        %3182 = vst [vmem:[%s3172 + $0x48] sm:$0xff] %v3149
        %3183 = vst [vmem:[%s3172 + $0x50] sm:$0xff] %v3150
        %3184 = vst [vmem:[%s3172 + $0x58] sm:$0xff] %v3151
        %3185 = vst [vmem:[%s3172 + $0x60] sm:$0xff] %v3152
        %3186 = vst [vmem:[%s3172 + $0x68] sm:$0xff] %v3153
        %3187 = vst [vmem:[%s3172 + $0x70] sm:$0xff] %v3154
        %3188 = vst [vmem:[%s3172 + $0x78] sm:$0xff] %v3155
        %3189 = vst [vmem:[%s3172 + $0x80] sm:$0xff] %v3156
        %3190 = vst [vmem:[%s3172 + $0x88] sm:$0xff] %v3157
        %3191 = vst [vmem:[%s3172 + $0x90] sm:$0xff] %v3158
        %3192 = vst [vmem:[%s3172 + $0x98] sm:$0xff] %v3159
        %3193 = vst [vmem:[%s3172 + $0xa0] sm:$0xff] %v3160
        %3194 = vst [vmem:[%s3172 + $0xa8] sm:$0xff] %v3161
        %3195 = vst [vmem:[%s3172 + $0xb0] sm:$0xff] %v3162
        %3196 = vst [vmem:[%s3172 + $0xb8] sm:$0xff] %v3163
        %3197 = vst [vmem:[%s3172 + $0xc0] sm:$0xff] %v3164
        %3198 = vst [vmem:[%s3172 + $0xc8] sm:$0xff] %v3165
        %3199 = vst [vmem:[%s3172 + $0xd0] sm:$0xff] %v3166
        %3200 = vst [vmem:[%s3172 + $0xd8] sm:$0xff] %v3167
        %3201 = vst [vmem:[%s3172 + $0xe0] sm:$0xff] %v3168
        %3202 = vst [vmem:[%s3172 + $0xe8] sm:$0xff] %v3169
        %3203 = vst [vmem:[%s3172 + $0xf0] sm:$0xff] %v3170
        %3204 = vst [vmem:[%s3172 + $0xf8] sm:$0xff] %v3171
        %v3205 = vmul.f32 %v2100, %v2259
        %v3206 = vmul.f32 %v2102, %v2260
        %v3207 = vmul.f32 %v2104, %v2261
        %v3208 = vmul.f32 %v2106, %v2262
        %v3209 = vmul.f32 %v2108, %v2263
        %v3210 = vmul.f32 %v2110, %v2264
        %v3211 = vmul.f32 %v2112, %v2265
        %v3212 = vmul.f32 %v2114, %v2266
        %v3213 = vmul.f32 %v2116, %v2267
        %v3214 = vmul.f32 %v2118, %v2268
        %v3215 = vmul.f32 %v2120, %v2269
        %v3216 = vmul.f32 %v2122, %v2270
        %v3217 = vmul.f32 %v2124, %v2271
        %v3218 = vmul.f32 %v2126, %v2272
        %v3219 = vmul.f32 %v2128, %v2273
        %v3220 = vmul.f32 %v2130, %v2274
        %v3221 = vmul.f32 %v2132, %v2275
        %v3222 = vmul.f32 %v2134, %v2276
        %v3223 = vmul.f32 %v2136, %v2277
        %v3224 = vmul.f32 %v2138, %v2278
        %v3225 = vmul.f32 %v2140, %v2279
        %v3226 = vmul.f32 %v2142, %v2280
        %v3227 = vmul.f32 %v2144, %v2281
        %v3228 = vmul.f32 %v2146, %v2282
        %v3229 = vmul.f32 %v2148, %v2283
        %v3230 = vmul.f32 %v2150, %v2284
        %v3231 = vmul.f32 %v2152, %v2285
        %v3232 = vmul.f32 %v2154, %v2286
        %v3233 = vmul.f32 %v2156, %v2287
        %v3234 = vmul.f32 %v2158, %v2288
        %v3235 = vmul.f32 %v2160, %v2289
        %v3236 = vmul.f32 %v2162, %v2290
        %v3237 = vmul.f32 %v3205, 2.0
        %v3238 = vmul.f32 %v3206, 2.0
        %v3239 = vmul.f32 %v3207, 2.0
        %v3240 = vmul.f32 %v3208, 2.0
        %v3241 = vmul.f32 %v3209, 2.0
        %v3242 = vmul.f32 %v3210, 2.0
        %v3243 = vmul.f32 %v3211, 2.0
        %v3244 = vmul.f32 %v3212, 2.0
        %v3245 = vmul.f32 %v3213, 2.0
        %v3246 = vmul.f32 %v3214, 2.0
        %v3247 = vmul.f32 %v3215, 2.0
        %v3248 = vmul.f32 %v3216, 2.0
        %v3249 = vmul.f32 %v3217, 2.0
        %v3250 = vmul.f32 %v3218, 2.0
        %v3251 = vmul.f32 %v3219, 2.0
        %v3252 = vmul.f32 %v3220, 2.0
        %v3253 = vmul.f32 %v3221, 2.0
        %v3254 = vmul.f32 %v3222, 2.0
        %v3255 = vmul.f32 %v3223, 2.0
        %v3256 = vmul.f32 %v3224, 2.0
        %v3257 = vmul.f32 %v3225, 2.0
        %v3258 = vmul.f32 %v3226, 2.0
        %v3259 = vmul.f32 %v3227, 2.0
        %v3260 = vmul.f32 %v3228, 2.0
        %v3261 = vmul.f32 %v3229, 2.0
        %v3262 = vmul.f32 %v3230, 2.0
        %v3263 = vmul.f32 %v3231, 2.0
        %v3264 = vmul.f32 %v3232, 2.0
        %v3265 = vmul.f32 %v3233, 2.0
        %v3266 = vmul.f32 %v3234, 2.0
        %v3267 = vmul.f32 %v3235, 2.0
        %v3268 = vmul.f32 %v3236, 2.0
        %v3269 = vmul.f32 %v3237, 1.442695
        %v3270 = vpow.pop %v3269
        %v3271 = vmul.f32 %v3238, 1.442695
        %v3272 = vpow.pop %v3271
        %v3273 = vmul.f32 %v3239, 1.442695
        %v3274 = vpow.pop %v3273
        %v3275 = vmul.f32 %v3240, 1.442695
        %v3276 = vpow.pop %v3275
        %v3277 = vmul.f32 %v3241, 1.442695
        %v3278 = vpow.pop %v3277
        %v3279 = vmul.f32 %v3242, 1.442695
        %v3280 = vpow.pop %v3279
        %v3281 = vmul.f32 %v3243, 1.442695
        %v3282 = vpow.pop %v3281
        %v3283 = vmul.f32 %v3244, 1.442695
        %v3284 = vpow.pop %v3283
        %v3285 = vmul.f32 %v3245, 1.442695
        %v3286 = vpow.pop %v3285
        %v3287 = vmul.f32 %v3246, 1.442695
        %v3288 = vpow.pop %v3287
        %v3289 = vmul.f32 %v3247, 1.442695
        %v3290 = vpow.pop %v3289
        %v3291 = vmul.f32 %v3248, 1.442695
        %v3292 = vpow.pop %v3291
        %v3293 = vmul.f32 %v3249, 1.442695
        %v3294 = vpow.pop %v3293
        %v3295 = vmul.f32 %v3250, 1.442695
        %v3296 = vpow.pop %v3295
        %v3297 = vmul.f32 %v3251, 1.442695
        %v3298 = vpow.pop %v3297
        %v3299 = vmul.f32 %v3252, 1.442695
        %v3300 = vpow.pop %v3299
        %v3301 = vmul.f32 %v3253, 1.442695
        %v3302 = vpow.pop %v3301
        %v3303 = vmul.f32 %v3254, 1.442695
        %v3304 = vpow.pop %v3303
        %v3305 = vmul.f32 %v3255, 1.442695
        %v3306 = vpow.pop %v3305
        %v3307 = vmul.f32 %v3256, 1.442695
        %v3308 = vpow.pop %v3307
        %v3309 = vmul.f32 %v3257, 1.442695
        %v3310 = vpow.pop %v3309
        %v3311 = vmul.f32 %v3258, 1.442695
        %v3312 = vpow.pop %v3311
        %v3313 = vmul.f32 %v3259, 1.442695
        %v3314 = vpow.pop %v3313
        %v3315 = vmul.f32 %v3260, 1.442695
        %v3316 = vpow.pop %v3315
        %v3317 = vmul.f32 %v3261, 1.442695
        %v3318 = vpow.pop %v3317
        %v3319 = vmul.f32 %v3262, 1.442695
        %v3320 = vpow.pop %v3319
        %v3321 = vmul.f32 %v3263, 1.442695
        %v3322 = vpow.pop %v3321
        %v3323 = vmul.f32 %v3264, 1.442695
        %v3324 = vpow.pop %v3323
        %v3325 = vmul.f32 %v3265, 1.442695
        %v3326 = vpow.pop %v3325
        %v3327 = vmul.f32 %v3266, 1.442695
        %v3328 = vpow.pop %v3327
        %v3329 = vmul.f32 %v3267, 1.442695
        %v3330 = vpow.pop %v3329
        %v3331 = vmul.f32 %v3268, 1.442695
        %v3332 = vpow.pop %v3331
        %v3333 = vmul.f32 %v3270, %v285
        %v3334 = vmul.f32 %v3272, %v286
        %v3335 = vmul.f32 %v3274, %v287
        %v3336 = vmul.f32 %v3276, %v288
        %v3337 = vmul.f32 %v3278, %v289
        %v3338 = vmul.f32 %v3280, %v290
        %v3339 = vmul.f32 %v3282, %v291
        %v3340 = vmul.f32 %v3284, %v292
        %v3341 = vmul.f32 %v3286, %v293
        %v3342 = vmul.f32 %v3288, %v294
        %v3343 = vmul.f32 %v3290, %v295
        %v3344 = vmul.f32 %v3292, %v296
        %v3345 = vmul.f32 %v3294, %v297
        %v3346 = vmul.f32 %v3296, %v298
        %v3347 = vmul.f32 %v3298, %v299
        %v3348 = vmul.f32 %v3300, %v300
        %v3349 = vmul.f32 %v3302, %v301
        %v3350 = vmul.f32 %v3304, %v302
        %v3351 = vmul.f32 %v3306, %v303
        %v3352 = vmul.f32 %v3308, %v304
        %v3353 = vmul.f32 %v3310, %v305
        %v3354 = vmul.f32 %v3312, %v306
        %v3355 = vmul.f32 %v3314, %v307
        %v3356 = vmul.f32 %v3316, %v308
        %v3357 = vmul.f32 %v3318, %v309
        %v3358 = vmul.f32 %v3320, %v310
        %v3359 = vmul.f32 %v3322, %v311
        %v3360 = vmul.f32 %v3324, %v312
        %v3361 = vmul.f32 %v3326, %v313
        %v3362 = vmul.f32 %v3328, %v314
        %v3363 = vmul.f32 %v3330, %v315
        %v3364 = vmul.f32 %v3332, %v316
        %v3365 = vadd.f32 %v3333, %v3334
        %3366 = vadd.xlane.f32.xlu0 %v3365
        %v3367 = vpop.xlane.xlu0 %3366
        %v3368 = vadd.f32 %v3335, %v3336
        %3369 = vadd.xlane.f32.xlu0 %v3368
        %v3370 = vpop.xlane.xlu0 %3369
        %v3371 = vadd.f32 %v3337, %v3338
        %3372 = vadd.xlane.f32.xlu0 %v3371
        %v3373 = vpop.xlane.xlu0 %3372
        %v3374 = vadd.f32 %v3339, %v3340
        %3375 = vadd.xlane.f32.xlu0 %v3374
        %v3376 = vpop.xlane.xlu0 %3375
        %v3377 = vadd.f32 %v3341, %v3342
        %3378 = vadd.xlane.f32.xlu0 %v3377
        %v3379 = vpop.xlane.xlu0 %3378
        %v3380 = vadd.f32 %v3343, %v3344
        %3381 = vadd.xlane.f32.xlu0 %v3380
        %v3382 = vpop.xlane.xlu0 %3381
        %v3383 = vadd.f32 %v3345, %v3346
        %3384 = vadd.xlane.f32.xlu0 %v3383
        %v3385 = vpop.xlane.xlu0 %3384
        %v3386 = vadd.f32 %v3347, %v3348
        %3387 = vadd.xlane.f32.xlu0 %v3386
        %v3388 = vpop.xlane.xlu0 %3387
        %v3389 = vadd.f32 %v3349, %v3350
        %3390 = vadd.xlane.f32.xlu0 %v3389
        %v3391 = vpop.xlane.xlu0 %3390
        %v3392 = vadd.f32 %v3351, %v3352
        %3393 = vadd.xlane.f32.xlu0 %v3392
        %v3394 = vpop.xlane.xlu0 %3393
        %v3395 = vadd.f32 %v3353, %v3354
        %3396 = vadd.xlane.f32.xlu0 %v3395
        %v3397 = vpop.xlane.xlu0 %3396
        %v3398 = vadd.f32 %v3355, %v3356
        %3399 = vadd.xlane.f32.xlu0 %v3398
        %v3400 = vpop.xlane.xlu0 %3399
        %v3401 = vadd.f32 %v3357, %v3358
        %3402 = vadd.xlane.f32.xlu0 %v3401
        %v3403 = vpop.xlane.xlu0 %3402
        %v3404 = vadd.f32 %v3359, %v3360
        %3405 = vadd.xlane.f32.xlu0 %v3404
        %v3406 = vpop.xlane.xlu0 %3405
        %v3407 = vadd.f32 %v3361, %v3362
        %3408 = vadd.xlane.f32.xlu0 %v3407
        %v3409 = vpop.xlane.xlu0 %3408
        %v3410 = vadd.f32 %v3363, %v3364
        %3411 = vadd.xlane.f32.xlu0 %v3410
        %v3412 = vpop.xlane.xlu0 %3411
        %v3413 = vmax.f32 %v3367, 1e-30
        %v3414 = vmax.f32 %v3370, 1e-30
        %v3415 = vmax.f32 %v3373, 1e-30
        %v3416 = vmax.f32 %v3376, 1e-30
        %v3417 = vmax.f32 %v3379, 1e-30
        %v3418 = vmax.f32 %v3382, 1e-30
        %v3419 = vmax.f32 %v3385, 1e-30
        %v3420 = vmax.f32 %v3388, 1e-30
        %v3421 = vmax.f32 %v3391, 1e-30
        %v3422 = vmax.f32 %v3394, 1e-30
        %v3423 = vmax.f32 %v3397, 1e-30
        %v3424 = vmax.f32 %v3400, 1e-30
        %v3425 = vmax.f32 %v3403, 1e-30
        %v3426 = vmax.f32 %v3406, 1e-30
        %v3427 = vmax.f32 %v3409, 1e-30
        %v3428 = vmax.f32 %v3412, 1e-30
        %v3429 = vrcp.pop %v3413
        %v3430 = vrcp.pop %v3414
        %v3431 = vrcp.pop %v3415
        %v3432 = vrcp.pop %v3416
        %v3433 = vrcp.pop %v3417
        %v3434 = vrcp.pop %v3418
        %v3435 = vrcp.pop %v3419
        %v3436 = vrcp.pop %v3420
        %v3437 = vrcp.pop %v3421
        %v3438 = vrcp.pop %v3422
        %v3439 = vrcp.pop %v3423
        %v3440 = vrcp.pop %v3424
        %v3441 = vrcp.pop %v3425
        %v3442 = vrcp.pop %v3426
        %v3443 = vrcp.pop %v3427
        %v3444 = vrcp.pop %v3428
        %v3445 = vmul.f32 %v3333, %v3429
        %v3446 = vmul.f32 %v3334, %v3429
        %v3447 = vmul.f32 %v3335, %v3430
        %v3448 = vmul.f32 %v3336, %v3430
        %v3449 = vmul.f32 %v3337, %v3431
        %v3450 = vmul.f32 %v3338, %v3431
        %v3451 = vmul.f32 %v3339, %v3432
        %v3452 = vmul.f32 %v3340, %v3432
        %v3453 = vmul.f32 %v3341, %v3433
        %v3454 = vmul.f32 %v3342, %v3433
        %v3455 = vmul.f32 %v3343, %v3434
        %v3456 = vmul.f32 %v3344, %v3434
        %v3457 = vmul.f32 %v3345, %v3435
        %v3458 = vmul.f32 %v3346, %v3435
        %v3459 = vmul.f32 %v3347, %v3436
        %v3460 = vmul.f32 %v3348, %v3436
        %v3461 = vmul.f32 %v3349, %v3437
        %v3462 = vmul.f32 %v3350, %v3437
        %v3463 = vmul.f32 %v3351, %v3438
        %v3464 = vmul.f32 %v3352, %v3438
        %v3465 = vmul.f32 %v3353, %v3439
        %v3466 = vmul.f32 %v3354, %v3439
        %v3467 = vmul.f32 %v3355, %v3440
        %v3468 = vmul.f32 %v3356, %v3440
        %v3469 = vmul.f32 %v3357, %v3441
        %v3470 = vmul.f32 %v3358, %v3441
        %v3471 = vmul.f32 %v3359, %v3442
        %v3472 = vmul.f32 %v3360, %v3442
        %v3473 = vmul.f32 %v3361, %v3443
        %v3474 = vmul.f32 %v3362, %v3443
        %v3475 = vmul.f32 %v3363, %v3444
        %v3476 = vmul.f32 %v3364, %v3444
        %s3477 = scalar_lea.vmem %s182, 768 [#allocation2]
        %3478 = vst [vmem:[%s3477] sm:$0xff] %v3445
        %3479 = vst [vmem:[%s3477 + $0x8] sm:$0xff] %v3446
        %3480 = vst [vmem:[%s3477 + $0x10] sm:$0xff] %v3447
        %3481 = vst [vmem:[%s3477 + $0x18] sm:$0xff] %v3448
        %3482 = vst [vmem:[%s3477 + $0x20] sm:$0xff] %v3449
        %3483 = vst [vmem:[%s3477 + $0x28] sm:$0xff] %v3450
        %3484 = vst [vmem:[%s3477 + $0x30] sm:$0xff] %v3451
        %3485 = vst [vmem:[%s3477 + $0x38] sm:$0xff] %v3452
        %3486 = vst [vmem:[%s3477 + $0x40] sm:$0xff] %v3453
        %3487 = vst [vmem:[%s3477 + $0x48] sm:$0xff] %v3454
        %3488 = vst [vmem:[%s3477 + $0x50] sm:$0xff] %v3455
        %3489 = vst [vmem:[%s3477 + $0x58] sm:$0xff] %v3456
        %3490 = vst [vmem:[%s3477 + $0x60] sm:$0xff] %v3457
        %3491 = vst [vmem:[%s3477 + $0x68] sm:$0xff] %v3458
        %3492 = vst [vmem:[%s3477 + $0x70] sm:$0xff] %v3459
        %3493 = vst [vmem:[%s3477 + $0x78] sm:$0xff] %v3460
        %3494 = vst [vmem:[%s3477 + $0x80] sm:$0xff] %v3461
        %3495 = vst [vmem:[%s3477 + $0x88] sm:$0xff] %v3462
        %3496 = vst [vmem:[%s3477 + $0x90] sm:$0xff] %v3463
        %3497 = vst [vmem:[%s3477 + $0x98] sm:$0xff] %v3464
        %3498 = vst [vmem:[%s3477 + $0xa0] sm:$0xff] %v3465
        %3499 = vst [vmem:[%s3477 + $0xa8] sm:$0xff] %v3466
        %3500 = vst [vmem:[%s3477 + $0xb0] sm:$0xff] %v3467
        %3501 = vst [vmem:[%s3477 + $0xb8] sm:$0xff] %v3468
        %3502 = vst [vmem:[%s3477 + $0xc0] sm:$0xff] %v3469
        %3503 = vst [vmem:[%s3477 + $0xc8] sm:$0xff] %v3470
        %3504 = vst [vmem:[%s3477 + $0xd0] sm:$0xff] %v3471
        %3505 = vst [vmem:[%s3477 + $0xd8] sm:$0xff] %v3472
        %3506 = vst [vmem:[%s3477 + $0xe0] sm:$0xff] %v3473
        %3507 = vst [vmem:[%s3477 + $0xe8] sm:$0xff] %v3474
        %3508 = vst [vmem:[%s3477 + $0xf0] sm:$0xff] %v3475
        %3509 = vst [vmem:[%s3477 + $0xf8] sm:$0xff] %v3476
        %s3510 = sand.u32 %s98, 1
        %s3511 = scalar_lea.sflag [#allocation3], %s3510
        %s3512 = sand.u32 %s98, 1
        %s3513 = smul.addr %s3512, 1024
        %s3514 = scalar_lea.vmem [#allocation2], %s3513
        // Predicated region
        $region33: #{tpu_custom_call.1} parent=31 // pred_check
          %p3515 = pneg %p108
        $region34: #{tpu_custom_call.1} parent=31 // pred_check_branch
          %3517 = sbr.rel (%p3515) target = $region36
        $region35: #{tpu_custom_call.1} parent=31 // pred_region
          #allocation5 [shape = 'u32[6]{0}', space=smem, size = 0x18, scoped, tag = 'DMA stride descriptor']
          %s3518 = smul.u32 16, %s17
          %s3520 = ssub.s32 16384, 16384
          %3521 = vsyncadd %s3511, %s3520
          %s3522 = smul.addr %s3518, 2
          %s3523 = smul.addr %s3522, 128
          %s3524 = scalar_lea.hbm %s3, %s3523
          %s3526 = sshll.u32 1, 14
          %s3527 = sxor.u32 4294967295, %s3526
          %s3530 = sshll.u32 7, 18
          %s3531 = sxor.u32 4294967295, %s3530
          %s3532 = sand.u32 0, %s3531
          %s3534 = sor.u32 %s3532, 0
          %s3536 = sshll.u32 3, 24
          %s3537 = sxor.u32 4294967295, %s3536
          %s3538 = sand.u32 %s3534, %s3537
          %s3540 = sor.u32 %s3538, 0
          %s3541 = sshll.u32 %s3514, 4
          %s3542 = int_to_ptr.vmem [resolvable:$true] %s3541
          %3548 = sst [smem:[#allocation5]] 4096
          %s3549 = scalar_lea.smem [#allocation5], 1
          %3550 = sst [smem:[%s3549]] 8192
          %s3551 = scalar_lea.smem [#allocation5], 2
          %3552 = sst [smem:[%s3551]] 16
          %s3553 = scalar_lea.smem [#allocation5], 3
          %3554 = sst [smem:[%s3553]] 256
          %s3555 = scalar_lea.smem [#allocation5], 4
          %3556 = sst [smem:[%s3555]] 256
          %s3557 = scalar_lea.smem [#allocation5], 5
          %3558 = sst [smem:[%s3557]] 16
          %3560 = dma.general %s3542, 16384, %s3524, %s3511, [#allocation4], [#allocation5], %s3540, 0
        $region36: #{tpu_custom_call.1} parent=31 // pred_fallthru
          _
      $region32: #{tpu_custom_call.1} parent=5 // pred_fallthru
        _
      %p3561 = scmp.le.s32.totalorder 2, %s12
      // Predicated region
      $region37: #{tpu_custom_call.1} parent=5 // pred_check
        %p3562 = pneg %p3561
      $region38: #{tpu_custom_call.1} parent=5 // pred_check_branch
        %3564 = sbr.rel (%p3562) target = $region40
      $region39: #{tpu_custom_call.1} parent=5 // pred_region
        %s3565 = ssub.s32 %s12, 2
        // Predicated region
        $region41: #{tpu_custom_call.1} parent=39 // pred_check
          %p3566 = pneg %p114
        $region42: #{tpu_custom_call.1} parent=39 // pred_check_branch
          %3568 = sbr.rel (%p3566) target = $region44
        $region43: #{tpu_custom_call.1} parent=39 // pred_region
          %s3569 = sand.u32 %s99, 1
          %s3570 = scalar_lea.sflag [#allocation3], %s3569
          %s3571 = sand.u32 %s99, 1
          %s3572 = smul.addr %s3571, 1024
          %s3573 = scalar_lea.vmem [#allocation2], %s3572
          %3574 = dma.done %s3570, 16384
        $region44: #{tpu_custom_call.1} parent=39 // pred_fallthru
          _
      $region40: #{tpu_custom_call.1} parent=5 // pred_fallthru
        _
    $region6: #{tpu_custom_call.1} parent=1 // loop_footer
      %s16 = sadd.s32 1, %s12
    $region7: #{tpu_custom_call.1} parent=1 // loop_footer_branch
      %11 = sbr.rel target = $region3
    $region8: #{tpu_custom_call.1} parent=1 // loop_exit
      _
    %3575 = vsyncpa [#allocation3], 1
    %s3576 = scalar_lea.sflag [#allocation3], 1
    %3577 = vsyncpa %s3576, 1

</llo_original>
